<compile_context>
chip_gen: v5e
topology: v5e:2x2
jax: 0.10.0
libtpu: 0.0.40
codegen_flags: <defaults>
</compile_context>

<pallas_src>
import numpy as np
import jax
import jax.numpy as jnp
from jax.experimental import pallas as pl
from jax.experimental.pallas import tpu as pltpu

# ---------------------------------------------------------------------------
# Static configuration (consistent with the module's __init__)
# ---------------------------------------------------------------------------
N_NODES   = 16          # number of graph nodes
IN_CH     = 16          # in_channels
OUT_CH    = 32          # out_channels
HEADS     = 8           # attention heads
NUM_HOPS  = 2           # num_hops
PER_HOP   = OUT_CH // NUM_HOPS          # 'concat' combine -> split evenly
F_HEAD    = PER_HOP // HEADS            # per-head output dim
NEG_SLOPE = 0.2                         # GATConv leaky_relu slope
LN_EPS    = 1e-5                        # torch.nn.LayerNorm default eps
MASK_NEG  = -1e9                        # f32-safe additive mask sentinel

HH    = NUM_HOPS * HEADS                # 16 (hop, head) segments
L_TOT = HH * N_NODES                    # 256 logit lanes: col = (hop*HEADS+head)*N + src
XF    = N_NODES * IN_CH                 # 256 flattened feature lanes: idx = node*Cin + c

GRAPHS_PER_STEP = 16                    # stacked M = 16*16 = 256 rows per grid step


# ---------------------------------------------------------------------------
# Fused Pallas kernel: 2x GATConv + concat + residual linear + LayerNorm
# ---------------------------------------------------------------------------
def fused_mresgat_kernel(x_ref, xf_ref, cbig_ref, cout_ref, crow_ref, y_ref):
    f32, bf16 = jnp.float32, jnp.bfloat16
    G = x_ref.shape[0]                                     # graphs in this grid step

    # ---- resident constants (constant index_map -> DMA'd once for the whole grid) ----
    d_big = cbig_ref[0:IN_CH, :]                           # (Cin, 256) bf16: W@att_dst per (hop,head)
    m_src = cbig_ref[IN_CH:IN_CH + XF, :]                  # (256, 256) bf16: flat-x -> alpha_src row
    adj_b = cbig_ref[IN_CH + XF:IN_CH + XF + N_NODES, :].astype(f32)   # (N, 256) log-mult / -1e9
    blk_m = cout_ref[0:L_TOT, :]                           # (256, OUT) bf16 block-diag head mask
    w_all = cout_ref[L_TOT:L_TOT + IN_CH, :]               # (Cin, OUT) bf16 both hops' lin weights
    w_res = cout_ref[L_TOT + IN_CH:L_TOT + 2 * IN_CH, :]   # (Cin, OUT) bf16 res_linear weight
    bias_row  = crow_ref[0:1, :]                           # (1, OUT) f32: GAT biases + res bias
    gamma_row = crow_ref[1:2, :]
    beta_row  = crow_ref[2:3, :]

    x2 = x_ref[...].reshape(G * N_NODES, IN_CH).astype(bf16)    # stacked nodes, M = G*N = 256
    xf = xf_ref[...].astype(bf16)                                # (G, 256) flattened per-graph x

    # ---- per-node projections, stacked across all graphs of this step (M = 256) ----
    dst2 = jnp.dot(x2, d_big, preferred_element_type=f32)        # (GN, 256) alpha_dst per (hop,head)
    h2   = jnp.dot(x2, w_all, preferred_element_type=f32)        # (GN, OUT) projected features
    res2 = jnp.dot(x2, w_res, preferred_element_type=f32)        # (GN, OUT) residual projection

    # ---- per-graph source row: src[g, hh*N + j] = x[g, j, :] . (W_hh @ att_src_hh) ----
    src = jnp.dot(xf, m_src, preferred_element_type=f32)         # (G, 256)

    # ---- attention logits + masked segmented softmax (per dst node, hop, head) ----
    e = dst2.reshape(G, N_NODES, L_TOT) + src[:, None, :]
    e = jnp.where(e >= 0.0, e, NEG_SLOPE * e)                    # leaky_relu
    e = e + adj_b[None, :, :]                                    # log(multiplicity) or -1e9
    m = jnp.max(e, axis=-1, keepdims=True)                       # shared max; exact per segment
    p = jnp.exp(e - m)                                           # masked lanes -> exactly 0
    p2 = p.reshape(G * N_NODES, L_TOT).astype(bf16)

    # ---- softmax denominator expanded to output columns (host-folded seg_sum@h2hf == blk_m) ----
    denom2 = jnp.dot(p2, blk_m, preferred_element_type=f32)      # (GN, OUT)

    # ---- attention-weighted aggregation (per-graph batched matmul) ----
    h_rep = jnp.tile(h2.reshape(G, N_NODES, OUT_CH).astype(bf16), (1, HH, 1)) * blk_m[None]
    agg = jnp.einsum('gnc,gcf->gnf',
                     p2.reshape(G, N_NODES, L_TOT), h_rep,
                     preferred_element_type=f32).reshape(G * N_NODES, OUT_CH)

    gat2 = agg * pl.reciprocal(denom2, approx=True)              # EUP, off the VALU slot

    # ---- residual + biases + LayerNorm (f32 on the VPU) ----
    y = gat2 + res2 + bias_row
    mu  = jnp.mean(y, axis=-1, keepdims=True)
    var = jnp.mean((y - mu) ** 2, axis=-1, keepdims=True)
    yn  = (y - mu) * jax.lax.rsqrt(var + LN_EPS)
    y = yn * gamma_row + beta_row
    y_ref[...] = y.reshape(G, N_NODES, OUT_CH).astype(y_ref.dtype)


# ---------------------------------------------------------------------------
# One-time host-side constant folding / packing (pure numpy)
# ---------------------------------------------------------------------------
def build_constants(params, adjs):
    """Fold params + adjacency multiplicity masks into 3 lane-dense constant slabs."""
    d_big    = np.zeros((IN_CH, L_TOT), np.float32)
    m_src    = np.zeros((XF, L_TOT), np.float32)
    adj_bias = np.zeros((N_NODES, L_TOT), np.float32)
    blk_m    = np.zeros((L_TOT, OUT_CH), np.float32)
    w_all    = np.zeros((IN_CH, OUT_CH), np.float32)
    gat_bias = np.zeros((OUT_CH,), np.float32)

    j_idx = np.arange(N_NODES)
    c_idx = np.arange(IN_CH)
    for hop in range(NUM_HOPS):
        gp = params["gat"][hop]
        W     = np.asarray(gp["W"], np.float32)          # (Cin, HEADS*F_HEAD)
        a_src = np.asarray(gp["a_src"], np.float32)      # (HEADS, F_HEAD)
        a_dst = np.asarray(gp["a_dst"], np.float32)
        w_all[:, hop * PER_HOP:(hop + 1) * PER_HOP] = W
        gat_bias[hop * PER_HOP:(hop + 1) * PER_HOP] = np.asarray(gp["bias"], np.float32)

        counts = np.asarray(adjs[hop], np.float32)       # (N, N): counts[dst, src], diag == 1
        bias_hop = np.where(counts > 0.0,
                            np.log(np.maximum(counts, 1e-30)),
                            MASK_NEG).astype(np.float32)

        for hd in range(HEADS):
            hh   = hop * HEADS + hd
            col0 = hh * N_NODES                          # logit lanes for this (hop, head)
            c0   = hop * PER_HOP + hd * F_HEAD           # output columns for this (hop, head)
            w_head = W[:, hd * F_HEAD:(hd + 1) * F_HEAD]             # (Cin, F)
            d_big[:, col0:col0 + N_NODES] = (w_head @ a_dst[hd])[:, None]
            s_vec = w_head @ a_src[hd]                                # (Cin,)
            rows = j_idx[:, None] * IN_CH + c_idx[None, :]            # flat-x index j*Cin + c
            cols = (col0 + j_idx)[:, None]
            m_src[rows, cols] = s_vec[None, :]
            adj_bias[:, col0:col0 + N_NODES] = bias_hop
            blk_m[col0:col0 + N_NODES, c0:c0 + F_HEAD] = 1.0

    w_res = np.asarray(params["W_res"], np.float32)
    b_res = np.asarray(params["b_res"], np.float32)
    gamma = np.asarray(params["gamma"], np.float32)
    beta  = np.asarray(params["beta"], np.float32)

    cBig = np.concatenate([d_big, m_src, adj_bias], axis=0)     # (16+256+16, 256)
    cOut = np.concatenate([blk_m, w_all, w_res], axis=0)        # (256+16+16, 32)
    cRow = np.stack([gat_bias + b_res, gamma, beta], axis=0)    # (3, 32)
    return {
        "cBig": jnp.asarray(cBig, jnp.bfloat16),   # MXU-feeding / additive-mask slab
        "cOut": jnp.asarray(cOut, jnp.bfloat16),   # MXU-feeding slab (32-lane)
        "cRow": jnp.asarray(cRow, jnp.float32),    # bias / LayerNorm affine (kept f32)
    }


# ---------------------------------------------------------------------------
# Forward wrapper: 1-D "parallel" grid over graph chunks; constants stay resident
# ---------------------------------------------------------------------------
@jax.jit
def multihop_resgat_forward(x, consts):
    """x: (B, N_NODES, IN_CH) — B independent feature sets on the same graph."""
    B = x.shape[0]
    assert B % GRAPHS_PER_STEP == 0
    G = GRAPHS_PER_STEP
    xflat = x.reshape(B, XF)          # wrapper-side layout plumbing (same bytes as x)

    def const_spec(arr):
        nd = arr.ndim
        return pl.BlockSpec(arr.shape, lambda b, _nd=nd: (0,) * _nd)

    return pl.pallas_call(
        fused_mresgat_kernel,
        out_shape=jax.ShapeDtypeStruct((B, N_NODES, OUT_CH), jnp.float32),
        grid=(B // G,),
        in_specs=[
            pl.BlockSpec((G, N_NODES, IN_CH), lambda b: (b, 0, 0)),   # streams per step
            pl.BlockSpec((G, XF),             lambda b: (b, 0)),      # streams per step
            const_spec(consts["cBig"]),                               # resident constants
            const_spec(consts["cOut"]),
            const_spec(consts["cRow"]),
        ],
        out_specs=pl.BlockSpec((G, N_NODES, OUT_CH), lambda b: (b, 0, 0)),
        compiler_params=pltpu.CompilerParams(
            dimension_semantics=("parallel",)),                       # v7x: use both TCs
    )(x, xflat, consts["cBig"], consts["cOut"], consts["cRow"])


# ---------------------------------------------------------------------------
# Host-side graph utilities (numpy, dynamic-shape edge bookkeeping)
# ---------------------------------------------------------------------------
def _remove_self_loops(edge_index):
    keep = edge_index[0] != edge_index[1]
    return edge_index[:, keep]


def _add_self_loops(edge_index, num_nodes):
    loops = np.arange(num_nodes, dtype=edge_index.dtype)
    return np.concatenate([edge_index, np.stack([loops, loops])], axis=1)


def _next_hop_edges(edge_index, num_nodes):
    """Mirror of MultiHopResGATLayer._get_next_hop_edges."""
    ei = _remove_self_loops(edge_index)
    row, col = ei[0], ei[1]
    next_row = row[col]
    next_col = col[col]
    nei = np.stack([next_row, next_col], axis=0)
    return _add_self_loops(nei, num_nodes)


def _dense_adj_counts(edge_index, num_nodes):
    """counts[dst, src] = edge multiplicity; self-loops normalized to exactly 1
    (GATConv does remove_self_loops + add_self_loops)."""
    cnt = np.zeros((num_nodes, num_nodes), dtype=np.float32)
    np.add.at(cnt, (edge_index[1], edge_index[0]), 1.0)
    np.fill_diagonal(cnt, 0.0)
    cnt += np.eye(num_nodes, dtype=np.float32)
    return cnt


# ---------------------------------------------------------------------------
# Deterministic parameter initialization
# ---------------------------------------------------------------------------
def init_params(key):
    params = {"gat": []}
    for _ in range(NUM_HOPS):
        k1, k2, k3, key = jax.random.split(key, 4)
        params["gat"].append({
            "W": 0.2 * jax.random.normal(k1, (IN_CH, HEADS * F_HEAD), jnp.float32),
            "a_src": 0.2 * jax.random.normal(k2, (HEADS, F_HEAD), jnp.float32),
            "a_dst": 0.2 * jax.random.normal(k3, (HEADS, F_HEAD), jnp.float32),
            "bias": jnp.zeros((HEADS * F_HEAD,), jnp.float32),   # PyG default: zeros
        })
    k1, k2, key = jax.random.split(key, 3)
    params["W_res"] = 0.2 * jax.random.normal(k1, (IN_CH, OUT_CH), jnp.float32)
    params["b_res"] = 0.05 * jax.random.normal(k2, (OUT_CH,), jnp.float32)
    params["gamma"] = jnp.ones((OUT_CH,), jnp.float32)           # LayerNorm defaults
    params["beta"] = jnp.zeros((OUT_CH,), jnp.float32)
    return params


# ---------------------------------------------------------------------------
if __name__ == "__main__":
    key = jax.random.PRNGKey(0)
    kx, kp = jax.random.split(key)

    # Batched node features: B feature sets on the same 16-node graph
    B = 64
    x = jax.random.normal(kx, (B, N_NODES, IN_CH), jnp.float32)

    # Edge index: ring + skip-1 ring (E = 2N >= N so the next-hop gather is valid)
    src = np.concatenate([np.arange(N_NODES), np.arange(N_NODES)])
    dst = np.concatenate([(np.arange(N_NODES) + 1) % N_NODES,
                          (np.arange(N_NODES) + 2) % N_NODES])
    edge_index = np.stack([src, dst]).astype(np.int64)            # (2, 32)

    # Per-hop dense multiplicity masks (hop-1 edges via _get_next_hop_edges)
    adjs = []
    curr = edge_index
    for i in range(NUM_HOPS):
        adjs.append(_dense_adj_counts(curr, N_NODES))
        if i < NUM_HOPS - 1:
            curr = _next_hop_edges(curr, N_NODES)

    params = init_params(kp)
    consts = build_constants(params, adjs)   # folded/packed once, resident across the grid

    y = multihop_resgat_forward(x, consts)
    y = jax.block_until_ready(y)

    assert y.shape == (B, N_NODES, OUT_CH)
    assert bool(jnp.all(jnp.isfinite(y)))
    print("KERNEL_OK")
</pallas_src>

<mosaic_0001>
module attributes {stable_mosaic.version = 11 : i64} {
  func.func @fused_mresgat_kernel(%arg0: i32, %arg1: memref<16x16x16xf32, #tpu.memory_space<vmem>>, %arg2: memref<16x256xf32, #tpu.memory_space<vmem>>, %arg3: memref<288x256xbf16, #tpu.memory_space<vmem>>, %arg4: memref<288x32xbf16, #tpu.memory_space<vmem>>, %arg5: memref<3x32xf32, #tpu.memory_space<vmem>>, %arg6: memref<16x16x32xf32, #tpu.memory_space<vmem>>) attributes {dimension_semantics = [#tpu.dimension_semantics<parallel>], iteration_bounds = array<i64: 4>, scalar_prefetch = 0 : i64, scratch_operands = 0 : i64, tpu.core_type = #tpu.core_type<tc>, window_params = [{transform_indices = @transform_0, window_bounds = array<i64: 16, 16, 16>}, {transform_indices = @transform_1, window_bounds = array<i64: 16, 256>}, {pipeline_mode = #tpu.pipeline_mode<synchronous>, transform_indices = @transform_2, window_bounds = array<i64: 288, 256>}, {pipeline_mode = #tpu.pipeline_mode<synchronous>, transform_indices = @transform_3, window_bounds = array<i64: 288, 32>}, {pipeline_mode = #tpu.pipeline_mode<synchronous>, transform_indices = @transform_4, window_bounds = array<i64: 3, 32>}, {transform_indices = @transform_5, window_bounds = array<i64: 16, 16, 32>}]} {
    %c0 = arith.constant 0 : index
    %c0_0 = arith.constant 0 : index
    %0 = vector.load %arg3[%c0, %c0_0] : memref<288x256xbf16, #tpu.memory_space<vmem>>, vector<16x256xbf16>
    %c16 = arith.constant 16 : index
    %c0_1 = arith.constant 0 : index
    %1 = vector.load %arg3[%c16, %c0_1] : memref<288x256xbf16, #tpu.memory_space<vmem>>, vector<256x256xbf16>
    %c272 = arith.constant 272 : index
    %c0_2 = arith.constant 0 : index
    %2 = vector.load %arg3[%c272, %c0_2] : memref<288x256xbf16, #tpu.memory_space<vmem>>, vector<16x256xbf16>
    %3 = arith.extf %2 : vector<16x256xbf16> to vector<16x256xf32>
    %c0_3 = arith.constant 0 : index
    %c0_4 = arith.constant 0 : index
    %4 = vector.load %arg4[%c0_3, %c0_4] : memref<288x32xbf16, #tpu.memory_space<vmem>>, vector<256x32xbf16>
    %c256 = arith.constant 256 : index
    %c0_5 = arith.constant 0 : index
    %5 = vector.load %arg4[%c256, %c0_5] : memref<288x32xbf16, #tpu.memory_space<vmem>>, vector<16x32xbf16>
    %c272_6 = arith.constant 272 : index
    %c0_7 = arith.constant 0 : index
    %6 = vector.load %arg4[%c272_6, %c0_7] : memref<288x32xbf16, #tpu.memory_space<vmem>>, vector<16x32xbf16>
    %c0_8 = arith.constant 0 : index
    %c0_9 = arith.constant 0 : index
    %7 = vector.load %arg5[%c0_8, %c0_9] : memref<3x32xf32, #tpu.memory_space<vmem>>, vector<1x32xf32>
    %c1 = arith.constant 1 : index
    %c0_10 = arith.constant 0 : index
    %8 = vector.load %arg5[%c1, %c0_10] : memref<3x32xf32, #tpu.memory_space<vmem>>, vector<1x32xf32>
    %c2 = arith.constant 2 : index
    %c0_11 = arith.constant 0 : index
    %9 = vector.load %arg5[%c2, %c0_11] : memref<3x32xf32, #tpu.memory_space<vmem>>, vector<1x32xf32>
    %c0_12 = arith.constant 0 : index
    %c0_13 = arith.constant 0 : index
    %c0_14 = arith.constant 0 : index
    %10 = vector.load %arg1[%c0_12, %c0_13, %c0_14] : memref<16x16x16xf32, #tpu.memory_space<vmem>>, vector<16x16x16xf32>
    %11 = vector.shape_cast %10 : vector<16x16x16xf32> to vector<256x16xf32>
    %12 = arith.truncf %11 : vector<256x16xf32> to vector<256x16xbf16>
    %c0_15 = arith.constant 0 : index
    %c0_16 = arith.constant 0 : index
    %13 = vector.load %arg2[%c0_15, %c0_16] : memref<16x256xf32, #tpu.memory_space<vmem>>, vector<16x256xf32>
    %14 = arith.truncf %13 : vector<16x256xf32> to vector<16x256xbf16>
    %cst = arith.constant dense<0.000000e+00> : vector<256x256xf32>
    %15 = tpu.matmul %12, %0, %cst {dimension_numbers = #tpu.dot_dimension_numbers<[1], [0], [0], [1], [0, 0, 1, 1], [], []>} : vector<256x16xbf16>, vector<16x256xbf16>, vector<256x256xf32> -> vector<256x256xf32>
    %cst_17 = arith.constant dense<0.000000e+00> : vector<256x32xf32>
    %16 = tpu.matmul %12, %5, %cst_17 {dimension_numbers = #tpu.dot_dimension_numbers<[1], [0], [0], [1], [0, 0, 1, 1], [], []>} : vector<256x16xbf16>, vector<16x32xbf16>, vector<256x32xf32> -> vector<256x32xf32>
    %cst_18 = arith.constant dense<0.000000e+00> : vector<256x32xf32>
    %17 = tpu.matmul %12, %6, %cst_18 {dimension_numbers = #tpu.dot_dimension_numbers<[1], [0], [0], [1], [0, 0, 1, 1], [], []>} : vector<256x16xbf16>, vector<16x32xbf16>, vector<256x32xf32> -> vector<256x32xf32>
    %cst_19 = arith.constant dense<0.000000e+00> : vector<16x256xf32>
    %18 = tpu.matmul %14, %1, %cst_19 {dimension_numbers = #tpu.dot_dimension_numbers<[1], [0], [0], [1], [0, 0, 1, 1], [], []>} : vector<16x256xbf16>, vector<256x256xbf16>, vector<16x256xf32> -> vector<16x256xf32>
    %19 = vector.shape_cast %15 : vector<256x256xf32> to vector<16x16x256xf32>
    %20 = vector.shape_cast %18 : vector<16x256xf32> to vector<16x1x256xf32>
    %21 = vector.broadcast %20 : vector<16x1x256xf32> to vector<16x16x256xf32>
    %22 = arith.addf %19, %21 : vector<16x16x256xf32>
    %cst_20 = arith.constant 0.000000e+00 : f32
    %23 = vector.broadcast %cst_20 : f32 to vector<16x16x256xf32>
    %24 = arith.cmpf oge, %22, %23 : vector<16x16x256xf32>
    %cst_21 = arith.constant 2.000000e-01 : f32
    %25 = vector.broadcast %cst_21 : f32 to vector<16x16x256xf32>
    %26 = arith.mulf %25, %22 : vector<16x16x256xf32>
    %27 = arith.select %24, %22, %26 : vector<16x16x256xi1>, vector<16x16x256xf32>
    %28 = vector.shape_cast %3 : vector<16x256xf32> to vector<1x16x256xf32>
    %29 = vector.broadcast %28 : vector<1x16x256xf32> to vector<16x16x256xf32>
    %30 = arith.addf %27, %29 : vector<16x16x256xf32>
    %cst_22 = arith.constant dense<0xFF800000> : vector<16x16xf32>
    %31 = vector.multi_reduction <maximumf>, %30, %cst_22 [2] : vector<16x16x256xf32> to vector<16x16xf32>
    %32 = vector.shape_cast %31 : vector<16x16xf32> to vector<16x16x1xf32>
    %33 = vector.broadcast %32 : vector<16x16x1xf32> to vector<16x16x256xf32>
    %34 = arith.subf %30, %33 : vector<16x16x256xf32>
    %35 = math.exp %34 : vector<16x16x256xf32>
    %36 = vector.shape_cast %35 : vector<16x16x256xf32> to vector<256x256xf32>
    %37 = arith.truncf %36 : vector<256x256xf32> to vector<256x256xbf16>
    %cst_23 = arith.constant dense<0.000000e+00> : vector<256x32xf32>
    %38 = tpu.matmul %37, %4, %cst_23 {dimension_numbers = #tpu.dot_dimension_numbers<[1], [0], [0], [1], [0, 0, 1, 1], [], []>} : vector<256x256xbf16>, vector<256x32xbf16>, vector<256x32xf32> -> vector<256x32xf32>
    %39 = vector.shape_cast %16 : vector<256x32xf32> to vector<16x16x32xf32>
    %40 = arith.truncf %39 : vector<16x16x32xf32> to vector<16x16x32xbf16>
    %41 = tpu.concatenate %40, %40, %40, %40, %40, %40, %40, %40, %40, %40, %40, %40, %40, %40, %40, %40 in 1 : vector<16x16x32xbf16>, vector<16x16x32xbf16>, vector<16x16x32xbf16>, vector<16x16x32xbf16>, vector<16x16x32xbf16>, vector<16x16x32xbf16>, vector<16x16x32xbf16>, vector<16x16x32xbf16>, vector<16x16x32xbf16>, vector<16x16x32xbf16>, vector<16x16x32xbf16>, vector<16x16x32xbf16>, vector<16x16x32xbf16>, vector<16x16x32xbf16>, vector<16x16x32xbf16>, vector<16x16x32xbf16> -> vector<16x256x32xbf16>
    %42 = vector.shape_cast %4 : vector<256x32xbf16> to vector<1x256x32xbf16>
    %43 = vector.broadcast %42 : vector<1x256x32xbf16> to vector<16x256x32xbf16>
    %44 = arith.mulf %41, %43 : vector<16x256x32xbf16>
    %45 = vector.shape_cast %37 : vector<256x256xbf16> to vector<16x16x256xbf16>
    "tpu.trace_start"() <{level = 10 : i32, message = "gnc,gcf->gnf"}> : () -> ()
    %cst_24 = arith.constant dense<0.000000e+00> : vector<16x16x32xf32>
    %46 = tpu.matmul %45, %44, %cst_24 {dimension_numbers = #tpu.dot_dimension_numbers<[2], [1], [1], [2], [0, 0, 0, 1, 1, 2], [0], [0]>} : vector<16x16x256xbf16>, vector<16x256x32xbf16>, vector<16x16x32xf32> -> vector<16x16x32xf32>
    "tpu.trace_stop"() : () -> ()
    %47 = vector.shape_cast %46 : vector<16x16x32xf32> to vector<256x32xf32>
    %48 = tpu.reciprocal %38 {approx = true} : vector<256x32xf32> -> vector<256x32xf32>
    %49 = arith.mulf %47, %48 : vector<256x32xf32>
    %50 = arith.addf %49, %17 : vector<256x32xf32>
    %51 = vector.broadcast %7 : vector<1x32xf32> to vector<256x32xf32>
    %52 = arith.addf %50, %51 : vector<256x32xf32>
    %cst_25 = arith.constant dense<0.000000e+00> : vector<256xf32>
    %53 = vector.multi_reduction <add>, %52, %cst_25 [1] : vector<256x32xf32> to vector<256xf32>
    %54 = vector.shape_cast %53 : vector<256xf32> to vector<256x1xf32>
    %cst_26 = arith.constant 3.200000e+01 : f32
    %55 = vector.broadcast %cst_26 : f32 to vector<256x1xf32>
    %56 = arith.divf %54, %55 : vector<256x1xf32>
    %57 = vector.broadcast %56 : vector<256x1xf32> to vector<256x32xf32>
    %58 = arith.subf %52, %57 : vector<256x32xf32>
    %59 = arith.mulf %58, %58 : vector<256x32xf32>
    %cst_27 = arith.constant dense<0.000000e+00> : vector<256xf32>
    %60 = vector.multi_reduction <add>, %59, %cst_27 [1] : vector<256x32xf32> to vector<256xf32>
    %61 = vector.shape_cast %60 : vector<256xf32> to vector<256x1xf32>
    %cst_28 = arith.constant 3.200000e+01 : f32
    %62 = vector.broadcast %cst_28 : f32 to vector<256x1xf32>
    %63 = arith.divf %61, %62 : vector<256x1xf32>
    %64 = vector.broadcast %56 : vector<256x1xf32> to vector<256x32xf32>
    %65 = arith.subf %52, %64 : vector<256x32xf32>
    %cst_29 = arith.constant 9.99999974E-6 : f32
    %66 = vector.broadcast %cst_29 : f32 to vector<256x1xf32>
    %67 = arith.addf %63, %66 : vector<256x1xf32>
    %68 = math.rsqrt %67 : vector<256x1xf32>
    %69 = vector.broadcast %68 : vector<256x1xf32> to vector<256x32xf32>
    %70 = arith.mulf %65, %69 : vector<256x32xf32>
    %71 = vector.broadcast %8 : vector<1x32xf32> to vector<256x32xf32>
    %72 = arith.mulf %70, %71 : vector<256x32xf32>
    %73 = vector.broadcast %9 : vector<1x32xf32> to vector<256x32xf32>
    %74 = arith.addf %72, %73 : vector<256x32xf32>
    %75 = vector.shape_cast %74 : vector<256x32xf32> to vector<16x16x32xf32>
    %c0_30 = arith.constant 0 : index
    %c0_31 = arith.constant 0 : index
    %c0_32 = arith.constant 0 : index
    %76 = vector.load %arg6[%c0_30, %c0_31, %c0_32] : memref<16x16x32xf32, #tpu.memory_space<vmem>>, vector<16x16x32xf32>
    tpu.vector_store %arg6[%c0_30, %c0_31, %c0_32], %75 {strides = array<i32>} : memref<16x16x32xf32, #tpu.memory_space<vmem>>, vector<16x16x32xf32>,
    return
  }
  func.func @transform_0(%arg0: i32) -> (i32, i32, i32) {
    %c0_i32 = arith.constant 0 : i32
    %c0_i32_0 = arith.constant 0 : i32
    %c0_i32_1 = arith.constant 0 : i32
    return %arg0, %c0_i32, %c0_i32_0 : i32, i32, i32
  }
  func.func @transform_1(%arg0: i32) -> (i32, i32) {
    %c0_i32 = arith.constant 0 : i32
    %c0_i32_0 = arith.constant 0 : i32
    return %arg0, %c0_i32 : i32, i32
  }
  func.func @transform_2(%arg0: i32) -> (i32, i32) {
    %c0_i32 = arith.constant 0 : i32
    %c0_i32_0 = arith.constant 0 : i32
    %c0_i32_1 = arith.constant 0 : i32
    return %c0_i32, %c0_i32_0 : i32, i32
  }
  func.func @transform_3(%arg0: i32) -> (i32, i32) {
    %c0_i32 = arith.constant 0 : i32
    %c0_i32_0 = arith.constant 0 : i32
    %c0_i32_1 = arith.constant 0 : i32
    return %c0_i32, %c0_i32_0 : i32, i32
  }
  func.func @transform_4(%arg0: i32) -> (i32, i32) {
    %c0_i32 = arith.constant 0 : i32
    %c0_i32_0 = arith.constant 0 : i32
    %c0_i32_1 = arith.constant 0 : i32
    return %c0_i32, %c0_i32_0 : i32, i32
  }
  func.func @transform_5(%arg0: i32) -> (i32, i32, i32) {
    %c0_i32 = arith.constant 0 : i32
    %c0_i32_0 = arith.constant 0 : i32
    %c0_i32_1 = arith.constant 0 : i32
    return %arg0, %c0_i32, %c0_i32_0 : i32, i32, i32
  }
}

</mosaic_0001>

<llo_original>
// kernel: multihop_resgat_forward.1
$region0: #{multihop_resgat_forward.1}
  #allocation0 [shape = 'u32[]', space=smem, size = 0x4, offset = 0x4, fixed_abs, tag = 'smem constant byte address 0x4 - core index']
  #allocation1 [shape = 'u32[72,128]{1,0:T(1,128)}', space=vmem, size = 0x9000, scoped, tag = 'internal scratch']
  %s0 = inlined_call_operand.vmem [shape: f32[64,16,16], index: 0, kind: input, shape index: {}]
  %s1 = inlined_call_operand.vmem [shape: f32[64,256], index: 1, kind: input, shape index: {}]
  %s2 = inlined_call_operand.vmem [shape: bf16[288,256], index: 2, kind: input, shape index: {}]
  %s3 = inlined_call_operand.vmem [shape: bf16[288,32], index: 3, kind: input, shape index: {}]
  %s4 = inlined_call_operand.vmem [shape: f32[3,32], index: 4, kind: input, shape index: {}]
  %s5 = inlined_call_operand.vmem [shape: f32[64,16,32], index: 5, kind: output, shape index: {}]
  %s6 = sld [smem:[#allocation0]]
  $region53: #{multihop_resgat_forward.1} parent=0
    _
  %s8 = ssub.s32 1, %s6
  %s9 = scalar_select 0, %s8, %s6
  loop: start=0, step=1, limit=6
  $region2: #{multihop_resgat_forward.1} parent=0 // loop_pre_header
    _
  $region3: #{multihop_resgat_forward.1} parent=0 // loop_header
    %s11 = sphi 0, %s15
    %p12 = scmp.ge.s32.totalorder %s11, 6
    %s21 = sphi 0, %s23
    %s24 = sphi 0, %s21
    %s25 = sphi 0, %s24
    %s41 = sphi 0, %s25
    %s47 = sphi 0, %s49
    %s50 = sphi 0, %s47
    %s51 = sphi 0, %s50
    %s67 = sphi 0, %s51
    %s71 = sphi 0, %s71
    %s73 = sphi 0, %s71
    %s74 = sphi 0, %s73
    %s88 = sphi 0, %s74
    %s92 = sphi 0, %s92
    %s94 = sphi 0, %s92
    %s95 = sphi 0, %s94
    %s109 = sphi 0, %s95
    %s113 = sphi 0, %s113
    %s115 = sphi 0, %s113
    %s116 = sphi 0, %s115
    %s130 = sphi 0, %s116
    %s136 = sphi 0, %s138
    %s139 = sphi 0, %s136
    %s140 = sphi 0, %s139
    %s156 = sphi 0, %s140
  $region4: #{multihop_resgat_forward.1} parent=0 // loop_header_branch
    %14 = sbr.rel (%p12) target = $region8
  $region5: #{multihop_resgat_forward.1} parent=0 // loop_body
    %s16 = ssub.s32 %s11, 1
    %s17 = ssub.s32 %s11, 2
    %s18 = sadd.s32 %s11, 1
    %s19 = ssub.s32 %s11, %s18
    %p20 = scmp.eq.s32.totalorder %s19, 0
    %s22 = sadd.s32 %s21, 1
    %s23 = scalar_select %p20, %s21, %s22
    %p26 = pneg %p20
    %p27 = scmp.eq.s32.totalorder %s11, 3
    %p28 = por %p26, %p27
    %p29 = scmp.ne.s32.totalorder %s21, %s24
    %p30 = scmp.eq.s32.totalorder %s11, 0
    %p31 = por %p29, %p30
    %p32 = scmp.ne.s32.totalorder %s21, %s24
    %p33 = scmp.eq.s32.totalorder %s16, 3
    %p34 = por %p32, %p33
    %p35 = scmp.ne.s32.totalorder %s24, %s25
    %p36 = scmp.eq.s32.totalorder %s16, 0
    %p37 = por %p35, %p36
    %p38 = scmp.ne.s32.totalorder %s24, %s25
    %p39 = scmp.eq.s32.totalorder %s17, 3
    %p40 = por %p38, %p39
    %p42 = scmp.ne.s32.totalorder %s25, %s41
    %p43 = scmp.eq.s32.totalorder %s17, 0
    %p44 = por %p42, %p43
    %s45 = ssub.s32 %s11, %s18
    %p46 = scmp.eq.s32.totalorder %s45, 0
    %s48 = sadd.s32 %s47, 1
    %s49 = scalar_select %p46, %s47, %s48
    %p52 = pneg %p46
    %p53 = scmp.eq.s32.totalorder %s11, 3
    %p54 = por %p52, %p53
    %p55 = scmp.ne.s32.totalorder %s47, %s50
    %p56 = scmp.eq.s32.totalorder %s11, 0
    %p57 = por %p55, %p56
    %p58 = scmp.ne.s32.totalorder %s47, %s50
    %p59 = scmp.eq.s32.totalorder %s16, 3
    %p60 = por %p58, %p59
    %p61 = scmp.ne.s32.totalorder %s50, %s51
    %p62 = scmp.eq.s32.totalorder %s16, 0
    %p63 = por %p61, %p62
    %p64 = scmp.ne.s32.totalorder %s50, %s51
    %p65 = scmp.eq.s32.totalorder %s17, 3
    %p66 = por %p64, %p65
    %p68 = scmp.ne.s32.totalorder %s51, %s67
    %p69 = scmp.eq.s32.totalorder %s17, 0
    %p70 = por %p68, %p69
    %s72 = sadd.s32 %s71, 1
    %p75 = scmp.eq.s32.totalorder %s11, 3
    %p76 = scmp.ne.s32.totalorder %s71, %s73
    %p77 = scmp.eq.s32.totalorder %s11, 0
    %p78 = por %p76, %p77
    %p79 = scmp.ne.s32.totalorder %s71, %s73
    %p80 = scmp.eq.s32.totalorder %s16, 3
    %p81 = por %p79, %p80
    %p82 = scmp.ne.s32.totalorder %s73, %s74
    %p83 = scmp.eq.s32.totalorder %s16, 0
    %p84 = por %p82, %p83
    %p85 = scmp.ne.s32.totalorder %s73, %s74
    %p86 = scmp.eq.s32.totalorder %s17, 3
    %p87 = por %p85, %p86
    %p89 = scmp.ne.s32.totalorder %s74, %s88
    %p90 = scmp.eq.s32.totalorder %s17, 0
    %p91 = por %p89, %p90
    %s93 = sadd.s32 %s92, 1
    %p96 = scmp.eq.s32.totalorder %s11, 3
    %p97 = scmp.ne.s32.totalorder %s92, %s94
    %p98 = scmp.eq.s32.totalorder %s11, 0
    %p99 = por %p97, %p98
    %p100 = scmp.ne.s32.totalorder %s92, %s94
    %p101 = scmp.eq.s32.totalorder %s16, 3
    %p102 = por %p100, %p101
    %p103 = scmp.ne.s32.totalorder %s94, %s95
    %p104 = scmp.eq.s32.totalorder %s16, 0
    %p105 = por %p103, %p104
    %p106 = scmp.ne.s32.totalorder %s94, %s95
    %p107 = scmp.eq.s32.totalorder %s17, 3
    %p108 = por %p106, %p107
    %p110 = scmp.ne.s32.totalorder %s95, %s109
    %p111 = scmp.eq.s32.totalorder %s17, 0
    %p112 = por %p110, %p111
    %s114 = sadd.s32 %s113, 1
    %p117 = scmp.eq.s32.totalorder %s11, 3
    %p118 = scmp.ne.s32.totalorder %s113, %s115
    %p119 = scmp.eq.s32.totalorder %s11, 0
    %p120 = por %p118, %p119
    %p121 = scmp.ne.s32.totalorder %s113, %s115
    %p122 = scmp.eq.s32.totalorder %s16, 3
    %p123 = por %p121, %p122
    %p124 = scmp.ne.s32.totalorder %s115, %s116
    %p125 = scmp.eq.s32.totalorder %s16, 0
    %p126 = por %p124, %p125
    %p127 = scmp.ne.s32.totalorder %s115, %s116
    %p128 = scmp.eq.s32.totalorder %s17, 3
    %p129 = por %p127, %p128
    %p131 = scmp.ne.s32.totalorder %s116, %s130
    %p132 = scmp.eq.s32.totalorder %s17, 0
    %p133 = por %p131, %p132
    %s134 = ssub.s32 %s11, %s18
    %p135 = scmp.eq.s32.totalorder %s134, 0
    %s137 = sadd.s32 %s136, 1
    %s138 = scalar_select %p135, %s136, %s137
    %p141 = pneg %p135
    %p142 = scmp.eq.s32.totalorder %s11, 3
    %p143 = por %p141, %p142
    %p144 = scmp.ne.s32.totalorder %s136, %s139
    %p145 = scmp.eq.s32.totalorder %s11, 0
    %p146 = por %p144, %p145
    %p147 = scmp.ne.s32.totalorder %s136, %s139
    %p148 = scmp.eq.s32.totalorder %s16, 3
    %p149 = por %p147, %p148
    %p150 = scmp.ne.s32.totalorder %s139, %s140
    %p151 = scmp.eq.s32.totalorder %s16, 0
    %p152 = por %p150, %p151
    %p153 = scmp.ne.s32.totalorder %s139, %s140
    %p154 = scmp.eq.s32.totalorder %s17, 3
    %p155 = por %p153, %p154
    %p157 = scmp.ne.s32.totalorder %s140, %s156
    %p158 = scmp.eq.s32.totalorder %s17, 0
    %p159 = por %p157, %p158
    %p160 = scmp.le.s32.totalorder 1, %s11
    %p161 = scmp.lt.s32.totalorder %s11, 5
    %p162 = pnand %p160, %p161
    %p163 = pneg %p162
    // Predicated region
    $region9: #{multihop_resgat_forward.1} parent=5 // pred_check
      _
    $region10: #{multihop_resgat_forward.1} parent=5 // pred_check_branch
      %165 = sbr.rel (%p162) target = $region12
    $region11: #{multihop_resgat_forward.1} parent=5 // pred_region
      %s166 = ssub.s32 %s11, 1
      // Predicated region
      $region13: #{multihop_resgat_forward.1} parent=11 // pred_check
        %p167 = pneg %p84
      $region14: #{multihop_resgat_forward.1} parent=11 // pred_check_branch
        %169 = sbr.rel (%p167) target = $region16
      $region15: #{multihop_resgat_forward.1} parent=11 // pred_region
        _
      $region16: #{multihop_resgat_forward.1} parent=11 // pred_fallthru
        _
      // Predicated region
      $region17: #{multihop_resgat_forward.1} parent=11 // pred_check
        %p170 = pneg %p105
      $region18: #{multihop_resgat_forward.1} parent=11 // pred_check_branch
        %172 = sbr.rel (%p170) target = $region20
      $region19: #{multihop_resgat_forward.1} parent=11 // pred_region
        _
      $region20: #{multihop_resgat_forward.1} parent=11 // pred_fallthru
        _
      // Predicated region
      $region21: #{multihop_resgat_forward.1} parent=11 // pred_check
        %p173 = pneg %p126
      $region22: #{multihop_resgat_forward.1} parent=11 // pred_check_branch
        %175 = sbr.rel (%p173) target = $region24
      $region23: #{multihop_resgat_forward.1} parent=11 // pred_region
        _
      $region24: #{multihop_resgat_forward.1} parent=11 // pred_fallthru
        _
    $region12: #{multihop_resgat_forward.1} parent=5 // pred_fallthru
      _
    %p176 = scmp.lt.s32.totalorder %s11, 4
    // Predicated region
    $region25: #{multihop_resgat_forward.1} parent=5 // pred_check
      %p177 = pneg %p176
    $region26: #{multihop_resgat_forward.1} parent=5 // pred_check_branch
      %179 = sbr.rel (%p177) target = $region28
    $region27: #{multihop_resgat_forward.1} parent=5 // pred_region
      // Predicated region
      $region29: #{multihop_resgat_forward.1} parent=27 // pred_check
        %p180 = pneg %p31
      $region30: #{multihop_resgat_forward.1} parent=27 // pred_check_branch
        %182 = sbr.rel (%p180) target = $region32
      $region31: #{multihop_resgat_forward.1} parent=27 // pred_region
        %s183 = smul.u32 16, %s11
        %p184 = scmp.lt.s32.totalorder %s183, 63
        %s185 = scalar_select %p184, %s183, 63
        %s186 = smul.addr %s185, 2
        %s187 = smul.addr %s186, 8
        %s188 = scalar_lea.vmem %s0, %s187
        %s189 = smul.u32 16, %s11
      $region32: #{multihop_resgat_forward.1} parent=27 // pred_fallthru
        _
      // Predicated region
      $region33: #{multihop_resgat_forward.1} parent=27 // pred_check
        %p190 = pneg %p57
      $region34: #{multihop_resgat_forward.1} parent=27 // pred_check_branch
        %192 = sbr.rel (%p190) target = $region36
      $region35: #{multihop_resgat_forward.1} parent=27 // pred_region
        %s193 = smul.u32 2, %s11
        %p194 = scmp.lt.s32.totalorder %s193, 7
        %s195 = scalar_select %p194, %s193, 7
        %s196 = smul.addr %s195, 2
        %s197 = smul.addr %s196, 8
        %s198 = scalar_lea.vmem %s1, %s197
        %s199 = smul.u32 2, %s11
      $region36: #{multihop_resgat_forward.1} parent=27 // pred_fallthru
        _
    $region28: #{multihop_resgat_forward.1} parent=5 // pred_fallthru
      _
    %p200 = scmp.le.s32.totalorder 1, %s11
    %p201 = scmp.lt.s32.totalorder %s11, 5
    %p202 = pnand %p200, %p201
    %p203 = pneg %p202
    // Predicated region
    $region37: #{multihop_resgat_forward.1} parent=5 // pred_check
      _
    $region38: #{multihop_resgat_forward.1} parent=5 // pred_check_branch
      %205 = sbr.rel (%p202) target = $region40
    $region39: #{multihop_resgat_forward.1} parent=5 // pred_region
      %s206 = ssub.s32 %s11, 1
      %s207 = smul.u32 16, %s16
      %p208 = scmp.lt.s32.totalorder %s207, 63
      %s209 = scalar_select %p208, %s207, 63
      %s210 = smul.addr %s209, 2
      %s211 = smul.addr %s210, 8
      %s212 = scalar_lea.vmem %s0, %s211
      %p213 = pneg %p37
      %p214 = pneg %p34
      %s215 = smul.u32 2, %s16
      %p216 = scmp.lt.s32.totalorder %s215, 7
      %s217 = scalar_select %p216, %s215, 7
      %s218 = smul.addr %s217, 2
      %s219 = smul.addr %s218, 8
      %s220 = scalar_lea.vmem %s1, %s219
      %p221 = pneg %p63
      %p222 = pneg %p60
      %p223 = pneg %p84
      %p224 = pneg %p81
      %p225 = pneg %p105
      %p226 = pneg %p102
      %p227 = pneg %p126
      %p228 = pneg %p123
      %p229 = pneg %p152
      %p230 = pneg %p149
      %s231 = smul.u32 16, %s16
      %p232 = scmp.lt.s32.totalorder %s231, 63
      %s233 = scalar_select %p232, %s231, 63
      %s234 = smul.addr %s233, 2
      %s235 = smul.addr %s234, 8
      %s236 = scalar_lea.vmem %s5, %s235
      %s237 = smul.u32 16, %s16
      %p238 = scmp.lt.s32.totalorder %s237, 63
      %s239 = scalar_select %p238, %s237, 63
      %s240 = smul.addr %s239, 2
      %s241 = smul.addr %s240, 8
      %s242 = scalar_lea.vmem %s0, %s241
      %s243 = smul.u32 16, %s16
      %s244 = smul.u32 2, %s16
      %p245 = scmp.lt.s32.totalorder %s244, 7
      %s246 = scalar_select %p245, %s244, 7
      %s247 = smul.addr %s246, 2
      %s248 = smul.addr %s247, 8
      %s249 = scalar_lea.vmem %s1, %s248
      %s250 = smul.u32 2, %s16
      %s251 = smul.u32 16, %s16
      %p252 = scmp.lt.s32.totalorder %s251, 63
      %s253 = scalar_select %p252, %s251, 63
      %s254 = smul.addr %s253, 2
      %s255 = smul.addr %s254, 8
      %s256 = scalar_lea.vmem %s5, %s255
      %s257 = smul.u32 16, %s16
      %v259 = vld [vmem:[%s2] sm:$0xff]
      %v260 = vld [vmem:[%s2 + $0x8] sm:$0xff]
      %v261 = vld [vmem:[%s2 + $0x10] sm:$0xff]
      %v262 = vld [vmem:[%s2 + $0x18] sm:$0xff]
      %v263 = vld [vmem:[%s2 + $0x20] sm:$0xff]
      %v264 = vld [vmem:[%s2 + $0x28] sm:$0xff]
      %v265 = vld [vmem:[%s2 + $0x30] sm:$0xff]
      %v266 = vld [vmem:[%s2 + $0x38] sm:$0xff]
      %v267 = vld [vmem:[%s2 + $0x40] sm:$0xff]
      %v268 = vld [vmem:[%s2 + $0x48] sm:$0xff]
      %v269 = vld [vmem:[%s2 + $0x50] sm:$0xff]
      %v270 = vld [vmem:[%s2 + $0x58] sm:$0xff]
      %v271 = vld [vmem:[%s2 + $0x60] sm:$0xff]
      %v272 = vld [vmem:[%s2 + $0x68] sm:$0xff]
      %v273 = vld [vmem:[%s2 + $0x70] sm:$0xff]
      %v274 = vld [vmem:[%s2 + $0x78] sm:$0xff]
      %v275 = vld [vmem:[%s2 + $0x80] sm:$0xff]
      %v276 = vld [vmem:[%s2 + $0x88] sm:$0xff]
      %v277 = vld [vmem:[%s2 + $0x90] sm:$0xff]
      %v278 = vld [vmem:[%s2 + $0x98] sm:$0xff]
      %v279 = vld [vmem:[%s2 + $0xa0] sm:$0xff]
      %v280 = vld [vmem:[%s2 + $0xa8] sm:$0xff]
      %v281 = vld [vmem:[%s2 + $0xb0] sm:$0xff]
      %v282 = vld [vmem:[%s2 + $0xb8] sm:$0xff]
      %v283 = vld [vmem:[%s2 + $0xc0] sm:$0xff]
      %v284 = vld [vmem:[%s2 + $0xc8] sm:$0xff]
      %v285 = vld [vmem:[%s2 + $0xd0] sm:$0xff]
      %v286 = vld [vmem:[%s2 + $0xd8] sm:$0xff]
      %v287 = vld [vmem:[%s2 + $0xe0] sm:$0xff]
      %v288 = vld [vmem:[%s2 + $0xe8] sm:$0xff]
      %v289 = vld [vmem:[%s2 + $0xf0] sm:$0xff]
      %v290 = vld [vmem:[%s2 + $0xf8] sm:$0xff]
      %v291 = vld [vmem:[%s2 + $0x100] sm:$0xff]
      %v292 = vld [vmem:[%s2 + $0x108] sm:$0xff]
      %v293 = vld [vmem:[%s2 + $0x110] sm:$0xff]
      %v294 = vld [vmem:[%s2 + $0x118] sm:$0xff]
      %v295 = vunpack.c.l.bf16 %v293
      %v296 = vunpack.c.h.bf16 %v293
      %v297 = vunpack.c.l.bf16 %v294
      %v298 = vunpack.c.h.bf16 %v294
      %v299 = vld [vmem:[%s3] sm:$0xf]
      %v300 = vld [vmem:[%s3 + $0x4] sm:$0xf]
      %v301 = vld [vmem:[%s3 + $0x8] sm:$0xf]
      %v302 = vld [vmem:[%s3 + $0xc] sm:$0xf]
      %v303 = vld [vmem:[%s3 + $0x10] sm:$0xf]
      %v304 = vld [vmem:[%s3 + $0x14] sm:$0xf]
      %v305 = vld [vmem:[%s3 + $0x18] sm:$0xf]
      %v306 = vld [vmem:[%s3 + $0x1c] sm:$0xf]
      %v307 = vld [vmem:[%s3 + $0x20] sm:$0xf]
      %v308 = vld [vmem:[%s3 + $0x24] sm:$0xf]
      %v309 = vld [vmem:[%s3 + $0x28] sm:$0xf]
      %v310 = vld [vmem:[%s3 + $0x2c] sm:$0xf]
      %v311 = vld [vmem:[%s3 + $0x30] sm:$0xf]
      %v312 = vld [vmem:[%s3 + $0x34] sm:$0xf]
      %v313 = vld [vmem:[%s3 + $0x38] sm:$0xf]
      %v314 = vld [vmem:[%s3 + $0x3c] sm:$0xf]
      %v315 = vld [vmem:[%s3 + $0x40] sm:$0xf]
      %v316 = vld [vmem:[%s3 + $0x44] sm:$0xf]
      %v317 = vld [vmem:[%s3 + $0x48] sm:$0xf]
      %v318 = vld [vmem:[%s3 + $0x4c] sm:$0xf]
      %v319 = vld [vmem:[%s3 + $0x50] sm:$0xf]
      %v320 = vld [vmem:[%s3 + $0x54] sm:$0xf]
      %v321 = vld [vmem:[%s3 + $0x58] sm:$0xf]
      %v322 = vld [vmem:[%s3 + $0x5c] sm:$0xf]
      %v323 = vld [vmem:[%s3 + $0x60] sm:$0xf]
      %v324 = vld [vmem:[%s3 + $0x64] sm:$0xf]
      %v325 = vld [vmem:[%s3 + $0x68] sm:$0xf]
      %v326 = vld [vmem:[%s3 + $0x6c] sm:$0xf]
      %v327 = vld [vmem:[%s3 + $0x70] sm:$0xf]
      %v328 = vld [vmem:[%s3 + $0x74] sm:$0xf]
      %v329 = vld [vmem:[%s3 + $0x78] sm:$0xf]
      %v330 = vld [vmem:[%s3 + $0x7c] sm:$0xf]
      %v331 = vld [vmem:[%s3 + $0x80] sm:$0xf]
      %v332 = vld [vmem:[%s3 + $0x84] sm:$0xf]
      %v333 = vld [vmem:[%s3 + $0x88] sm:$0xf]
      %v334 = vld [vmem:[%s3 + $0x8c] sm:$0xf]
      %v335 = vld [vmem:[%s4] sm:$0x1]
      %v336 = vld [vmem:[%s4 + $0x1] sm:$0x1]
      %v337 = vld [vmem:[%s4 + $0x2] sm:$0x1]
      %v338 = vld [vmem:[%s242] sm:$0xff]
      %v339 = vld [vmem:[%s242 + $0x8] sm:$0xff]
      %v340 = vld [vmem:[%s242 + $0x10] sm:$0xff]
      %v341 = vld [vmem:[%s242 + $0x18] sm:$0xff]
      %v342 = vld [vmem:[%s242 + $0x20] sm:$0xff]
      %v343 = vld [vmem:[%s242 + $0x28] sm:$0xff]
      %v344 = vld [vmem:[%s242 + $0x30] sm:$0xff]
      %v345 = vld [vmem:[%s242 + $0x38] sm:$0xff]
      %v346 = vld [vmem:[%s242 + $0x40] sm:$0xff]
      %v347 = vld [vmem:[%s242 + $0x48] sm:$0xff]
      %v348 = vld [vmem:[%s242 + $0x50] sm:$0xff]
      %v349 = vld [vmem:[%s242 + $0x58] sm:$0xff]
      %v350 = vld [vmem:[%s242 + $0x60] sm:$0xff]
      %v351 = vld [vmem:[%s242 + $0x68] sm:$0xff]
      %v352 = vld [vmem:[%s242 + $0x70] sm:$0xff]
      %v353 = vld [vmem:[%s242 + $0x78] sm:$0xff]
      %v354 = vld [vmem:[%s242 + $0x80] sm:$0xff]
      %v355 = vld [vmem:[%s242 + $0x88] sm:$0xff]
      %v356 = vld [vmem:[%s242 + $0x90] sm:$0xff]
      %v357 = vld [vmem:[%s242 + $0x98] sm:$0xff]
      %v358 = vld [vmem:[%s242 + $0xa0] sm:$0xff]
      %v359 = vld [vmem:[%s242 + $0xa8] sm:$0xff]
      %v360 = vld [vmem:[%s242 + $0xb0] sm:$0xff]
      %v361 = vld [vmem:[%s242 + $0xb8] sm:$0xff]
      %v362 = vld [vmem:[%s242 + $0xc0] sm:$0xff]
      %v363 = vld [vmem:[%s242 + $0xc8] sm:$0xff]
      %v364 = vld [vmem:[%s242 + $0xd0] sm:$0xff]
      %v365 = vld [vmem:[%s242 + $0xd8] sm:$0xff]
      %v366 = vld [vmem:[%s242 + $0xe0] sm:$0xff]
      %v367 = vld [vmem:[%s242 + $0xe8] sm:$0xff]
      %v368 = vld [vmem:[%s242 + $0xf0] sm:$0xff]
      %v369 = vld [vmem:[%s242 + $0xf8] sm:$0xff]
      %v370 = vpack.c.bf16 %v339, %v338
      %v371 = vpack.c.bf16 %v341, %v340
      %v372 = vpack.c.bf16 %v343, %v342
      %v373 = vpack.c.bf16 %v345, %v344
      %v374 = vpack.c.bf16 %v347, %v346
      %v375 = vpack.c.bf16 %v349, %v348
      %v376 = vpack.c.bf16 %v351, %v350
      %v377 = vpack.c.bf16 %v353, %v352
      %v378 = vpack.c.bf16 %v355, %v354
      %v379 = vpack.c.bf16 %v357, %v356
      %v380 = vpack.c.bf16 %v359, %v358
      %v381 = vpack.c.bf16 %v361, %v360
      %v382 = vpack.c.bf16 %v363, %v362
      %v383 = vpack.c.bf16 %v365, %v364
      %v384 = vpack.c.bf16 %v367, %v366
      %v385 = vpack.c.bf16 %v369, %v368
      %v386 = vld [vmem:[%s249] sm:$0xff]
      %v387 = vld [vmem:[%s249 + $0x8] sm:$0xff]
      %v388 = vld [vmem:[%s249 + $0x10] sm:$0xff]
      %v389 = vld [vmem:[%s249 + $0x18] sm:$0xff]
      %v390 = vpack.c.bf16 %v388, %v386
      %v391 = vpack.c.bf16 %v389, %v387
      %v394 = vunpack.c.l.b16 %v259
      %v395 = vunpack.c.h.b16 %v259
      %v396 = vunpack.c.l.b16 %v260
      %v397 = vunpack.c.h.b16 %v260
      %v398 = vpack.c.b16 %v396, %v394
      %v399 = vpack.c.b16 %v397, %v395
      %vm402 = vcmask 130048
      %v404 = vsel %vm402, %v370, 0
      %v407 = vsel %vm402, %v371, 0
      %v410 = vsel %vm402, %v372, 0
      %v413 = vsel %vm402, %v373, 0
      %v416 = vsel %vm402, %v374, 0
      %v419 = vsel %vm402, %v375, 0
      %v422 = vsel %vm402, %v376, 0
      %v425 = vsel %vm402, %v377, 0
      %v428 = vsel %vm402, %v378, 0
      %v431 = vsel %vm402, %v379, 0
      %v434 = vsel %vm402, %v380, 0
      %v437 = vsel %vm402, %v381, 0
      %v440 = vsel %vm402, %v382, 0
      %v443 = vsel %vm402, %v383, 0
      %v446 = vsel %vm402, %v384, 0
      %v449 = vsel %vm402, %v385, 0
      %451 = vmatpush.bf16.msra.mxu0 0
      %452 = vmatpush.bf16.msra.mxu0 0
      %453 = vmatpush.bf16.msra.mxu0 0
      %454 = vmatpush.bf16.msra.mxu0 0
      %455 = vmatpush.bf16.msra.mxu0 0
      %456 = vmatpush.bf16.msra.mxu0 0
      %457 = vmatpush.bf16.msra.mxu0 0
      %458 = vmatpush.bf16.msra.mxu0 %v398
      %459 = vmatmul.bf16.gmra.mxu0 %v404
      %v460 = vpop.f32.mrf.mxu0
      %v461 = vadd.f32 0.0, %v460
      %v462 = vpop.f32.mrf.mxu0
      %v463 = vadd.f32 0.0, %v462
      %464 = vmatmul.bf16.gmra.mxu0 %v407
      %v465 = vpop.f32.mrf.mxu0
      %v466 = vadd.f32 0.0, %v465
      %v467 = vpop.f32.mrf.mxu0
      %v468 = vadd.f32 0.0, %v467
      %469 = vmatmul.bf16.gmra.mxu0 %v410
      %v470 = vpop.f32.mrf.mxu0
      %v471 = vadd.f32 0.0, %v470
      %v472 = vpop.f32.mrf.mxu0
      %v473 = vadd.f32 0.0, %v472
      %474 = vmatmul.bf16.gmra.mxu0 %v413
      %v475 = vpop.f32.mrf.mxu0
      %v476 = vadd.f32 0.0, %v475
      %v477 = vpop.f32.mrf.mxu0
      %v478 = vadd.f32 0.0, %v477
      %479 = vmatmul.bf16.gmra.mxu0 %v416
      %v480 = vpop.f32.mrf.mxu0
      %v481 = vadd.f32 0.0, %v480
      %v482 = vpop.f32.mrf.mxu0
      %v483 = vadd.f32 0.0, %v482
      %484 = vmatmul.bf16.gmra.mxu0 %v419
      %v485 = vpop.f32.mrf.mxu0
      %v486 = vadd.f32 0.0, %v485
      %v487 = vpop.f32.mrf.mxu0
      %v488 = vadd.f32 0.0, %v487
      %489 = vmatmul.bf16.gmra.mxu0 %v422
      %v490 = vpop.f32.mrf.mxu0
      %v491 = vadd.f32 0.0, %v490
      %v492 = vpop.f32.mrf.mxu0
      %v493 = vadd.f32 0.0, %v492
      %494 = vmatmul.bf16.gmra.mxu0 %v425
      %v495 = vpop.f32.mrf.mxu0
      %v496 = vadd.f32 0.0, %v495
      %v497 = vpop.f32.mrf.mxu0
      %v498 = vadd.f32 0.0, %v497
      %499 = vmatmul.bf16.gmra.mxu0 %v428
      %v500 = vpop.f32.mrf.mxu0
      %v501 = vadd.f32 0.0, %v500
      %v502 = vpop.f32.mrf.mxu0
      %v503 = vadd.f32 0.0, %v502
      %504 = vmatmul.bf16.gmra.mxu0 %v431
      %v505 = vpop.f32.mrf.mxu0
      %v506 = vadd.f32 0.0, %v505
      %v507 = vpop.f32.mrf.mxu0
      %v508 = vadd.f32 0.0, %v507
      %509 = vmatmul.bf16.gmra.mxu0 %v434
      %v510 = vpop.f32.mrf.mxu0
      %v511 = vadd.f32 0.0, %v510
      %v512 = vpop.f32.mrf.mxu0
      %v513 = vadd.f32 0.0, %v512
      %514 = vmatmul.bf16.gmra.mxu0 %v437
      %v515 = vpop.f32.mrf.mxu0
      %v516 = vadd.f32 0.0, %v515
      %v517 = vpop.f32.mrf.mxu0
      %v518 = vadd.f32 0.0, %v517
      %519 = vmatmul.bf16.gmra.mxu0 %v440
      %v520 = vpop.f32.mrf.mxu0
      %v521 = vadd.f32 0.0, %v520
      %v522 = vpop.f32.mrf.mxu0
      %v523 = vadd.f32 0.0, %v522
      %524 = vmatmul.bf16.gmra.mxu0 %v443
      %v525 = vpop.f32.mrf.mxu0
      %v526 = vadd.f32 0.0, %v525
      %v527 = vpop.f32.mrf.mxu0
      %v528 = vadd.f32 0.0, %v527
      %529 = vmatmul.bf16.gmra.mxu0 %v446
      %v530 = vpop.f32.mrf.mxu0
      %v531 = vadd.f32 0.0, %v530
      %v532 = vpop.f32.mrf.mxu0
      %v533 = vadd.f32 0.0, %v532
      %534 = vmatmul.bf16.gmra.mxu0 %v449
      %v535 = vpop.f32.mrf.mxu0
      %v536 = vadd.f32 0.0, %v535
      %v537 = vpop.f32.mrf.mxu0
      %v538 = vadd.f32 0.0, %v537
      %539 = vdwg.mxu0
      %540 = vmatpush.bf16.msra.mxu0 0
      %541 = vmatpush.bf16.msra.mxu0 0
      %542 = vmatpush.bf16.msra.mxu0 0
      %543 = vmatpush.bf16.msra.mxu0 0
      %544 = vmatpush.bf16.msra.mxu0 0
      %545 = vmatpush.bf16.msra.mxu0 0
      %546 = vmatpush.bf16.msra.mxu0 0
      %547 = vmatpush.bf16.msra.mxu0 %v399
      %548 = vmatmul.bf16.gmra.mxu0 %v404
      %v549 = vpop.f32.mrf.mxu0
      %v550 = vadd.f32 0.0, %v549
      %v551 = vpop.f32.mrf.mxu0
      %v552 = vadd.f32 0.0, %v551
      %553 = vmatmul.bf16.gmra.mxu0 %v407
      %v554 = vpop.f32.mrf.mxu0
      %v555 = vadd.f32 0.0, %v554
      %v556 = vpop.f32.mrf.mxu0
      %v557 = vadd.f32 0.0, %v556
      %558 = vmatmul.bf16.gmra.mxu0 %v410
      %v559 = vpop.f32.mrf.mxu0
      %v560 = vadd.f32 0.0, %v559
      %v561 = vpop.f32.mrf.mxu0
      %v562 = vadd.f32 0.0, %v561
      %563 = vmatmul.bf16.gmra.mxu0 %v413
      %v564 = vpop.f32.mrf.mxu0
      %v565 = vadd.f32 0.0, %v564
      %v566 = vpop.f32.mrf.mxu0
      %v567 = vadd.f32 0.0, %v566
      %568 = vmatmul.bf16.gmra.mxu0 %v416
      %v569 = vpop.f32.mrf.mxu0
      %v570 = vadd.f32 0.0, %v569
      %v571 = vpop.f32.mrf.mxu0
      %v572 = vadd.f32 0.0, %v571
      %573 = vmatmul.bf16.gmra.mxu0 %v419
      %v574 = vpop.f32.mrf.mxu0
      %v575 = vadd.f32 0.0, %v574
      %v576 = vpop.f32.mrf.mxu0
      %v577 = vadd.f32 0.0, %v576
      %578 = vmatmul.bf16.gmra.mxu0 %v422
      %v579 = vpop.f32.mrf.mxu0
      %v580 = vadd.f32 0.0, %v579
      %v581 = vpop.f32.mrf.mxu0
      %v582 = vadd.f32 0.0, %v581
      %583 = vmatmul.bf16.gmra.mxu0 %v425
      %v584 = vpop.f32.mrf.mxu0
      %v585 = vadd.f32 0.0, %v584
      %v586 = vpop.f32.mrf.mxu0
      %v587 = vadd.f32 0.0, %v586
      %588 = vmatmul.bf16.gmra.mxu0 %v428
      %v589 = vpop.f32.mrf.mxu0
      %v590 = vadd.f32 0.0, %v589
      %v591 = vpop.f32.mrf.mxu0
      %v592 = vadd.f32 0.0, %v591
      %593 = vmatmul.bf16.gmra.mxu0 %v431
      %v594 = vpop.f32.mrf.mxu0
      %v595 = vadd.f32 0.0, %v594
      %v596 = vpop.f32.mrf.mxu0
      %v597 = vadd.f32 0.0, %v596
      %598 = vmatmul.bf16.gmra.mxu0 %v434
      %v599 = vpop.f32.mrf.mxu0
      %v600 = vadd.f32 0.0, %v599
      %v601 = vpop.f32.mrf.mxu0
      %v602 = vadd.f32 0.0, %v601
      %603 = vmatmul.bf16.gmra.mxu0 %v437
      %v604 = vpop.f32.mrf.mxu0
      %v605 = vadd.f32 0.0, %v604
      %v606 = vpop.f32.mrf.mxu0
      %v607 = vadd.f32 0.0, %v606
      %608 = vmatmul.bf16.gmra.mxu0 %v440
      %v609 = vpop.f32.mrf.mxu0
      %v610 = vadd.f32 0.0, %v609
      %v611 = vpop.f32.mrf.mxu0
      %v612 = vadd.f32 0.0, %v611
      %613 = vmatmul.bf16.gmra.mxu0 %v443
      %v614 = vpop.f32.mrf.mxu0
      %v615 = vadd.f32 0.0, %v614
      %v616 = vpop.f32.mrf.mxu0
      %v617 = vadd.f32 0.0, %v616
      %618 = vmatmul.bf16.gmra.mxu0 %v446
      %v619 = vpop.f32.mrf.mxu0
      %v620 = vadd.f32 0.0, %v619
      %v621 = vpop.f32.mrf.mxu0
      %v622 = vadd.f32 0.0, %v621
      %623 = vmatmul.bf16.gmra.mxu0 %v449
      %v624 = vpop.f32.mrf.mxu0
      %v625 = vadd.f32 0.0, %v624
      %v626 = vpop.f32.mrf.mxu0
      %v627 = vadd.f32 0.0, %v626
      %628 = vdwg.mxu0
      %v631 = vunpack.c.l.b16 %v331
      %v632 = vunpack.c.l.b16 %v332
      %v633 = vpack.c.b16 %v632, %v631
      %635 = vmatpush.bf16.msra.mxu0 0
      %636 = vmatpush.bf16.msra.mxu0 0
      %637 = vmatpush.bf16.msra.mxu0 0
      %638 = vmatpush.bf16.msra.mxu0 0
      %639 = vmatpush.bf16.msra.mxu0 0
      %640 = vmatpush.bf16.msra.mxu0 0
      %641 = vmatpush.bf16.msra.mxu0 0
      %642 = vmatpush.bf16.msra.mxu0 %v633
      %643 = vmatmul.bf16.gmra.mxu0 %v404
      %v644 = vpop.f32.mrf.mxu0
      %v645 = vadd.f32 0.0, %v644
      %v646 = vpop.f32.mrf.mxu0
      %v647 = vadd.f32 0.0, %v646
      %648 = vmatmul.bf16.gmra.mxu0 %v407
      %v649 = vpop.f32.mrf.mxu0
      %v650 = vadd.f32 0.0, %v649
      %v651 = vpop.f32.mrf.mxu0
      %v652 = vadd.f32 0.0, %v651
      %653 = vmatmul.bf16.gmra.mxu0 %v410
      %v654 = vpop.f32.mrf.mxu0
      %v655 = vadd.f32 0.0, %v654
      %v656 = vpop.f32.mrf.mxu0
      %v657 = vadd.f32 0.0, %v656
      %658 = vmatmul.bf16.gmra.mxu0 %v413
      %v659 = vpop.f32.mrf.mxu0
      %v660 = vadd.f32 0.0, %v659
      %v661 = vpop.f32.mrf.mxu0
      %v662 = vadd.f32 0.0, %v661
      %663 = vmatmul.bf16.gmra.mxu0 %v416
      %v664 = vpop.f32.mrf.mxu0
      %v665 = vadd.f32 0.0, %v664
      %v666 = vpop.f32.mrf.mxu0
      %v667 = vadd.f32 0.0, %v666
      %668 = vmatmul.bf16.gmra.mxu0 %v419
      %v669 = vpop.f32.mrf.mxu0
      %v670 = vadd.f32 0.0, %v669
      %v671 = vpop.f32.mrf.mxu0
      %v672 = vadd.f32 0.0, %v671
      %673 = vmatmul.bf16.gmra.mxu0 %v422
      %v674 = vpop.f32.mrf.mxu0
      %v675 = vadd.f32 0.0, %v674
      %v676 = vpop.f32.mrf.mxu0
      %v677 = vadd.f32 0.0, %v676
      %678 = vmatmul.bf16.gmra.mxu0 %v425
      %v679 = vpop.f32.mrf.mxu0
      %v680 = vadd.f32 0.0, %v679
      %v681 = vpop.f32.mrf.mxu0
      %v682 = vadd.f32 0.0, %v681
      %683 = vmatmul.bf16.gmra.mxu0 %v428
      %v684 = vpop.f32.mrf.mxu0
      %v685 = vadd.f32 0.0, %v684
      %v686 = vpop.f32.mrf.mxu0
      %v687 = vadd.f32 0.0, %v686
      %688 = vmatmul.bf16.gmra.mxu0 %v431
      %v689 = vpop.f32.mrf.mxu0
      %v690 = vadd.f32 0.0, %v689
      %v691 = vpop.f32.mrf.mxu0
      %v692 = vadd.f32 0.0, %v691
      %693 = vmatmul.bf16.gmra.mxu0 %v434
      %v694 = vpop.f32.mrf.mxu0
      %v695 = vadd.f32 0.0, %v694
      %v696 = vpop.f32.mrf.mxu0
      %v697 = vadd.f32 0.0, %v696
      %698 = vmatmul.bf16.gmra.mxu0 %v437
      %v699 = vpop.f32.mrf.mxu0
      %v700 = vadd.f32 0.0, %v699
      %v701 = vpop.f32.mrf.mxu0
      %v702 = vadd.f32 0.0, %v701
      %703 = vmatmul.bf16.gmra.mxu0 %v440
      %v704 = vpop.f32.mrf.mxu0
      %v705 = vadd.f32 0.0, %v704
      %v706 = vpop.f32.mrf.mxu0
      %v707 = vadd.f32 0.0, %v706
      %708 = vmatmul.bf16.gmra.mxu0 %v443
      %v709 = vpop.f32.mrf.mxu0
      %v710 = vadd.f32 0.0, %v709
      %v711 = vpop.f32.mrf.mxu0
      %v712 = vadd.f32 0.0, %v711
      %713 = vmatmul.bf16.gmra.mxu0 %v446
      %v714 = vpop.f32.mrf.mxu0
      %v715 = vadd.f32 0.0, %v714
      %v716 = vpop.f32.mrf.mxu0
      %v717 = vadd.f32 0.0, %v716
      %718 = vmatmul.bf16.gmra.mxu0 %v449
      %v719 = vpop.f32.mrf.mxu0
      %v720 = vadd.f32 0.0, %v719
      %v721 = vpop.f32.mrf.mxu0
      %v722 = vadd.f32 0.0, %v721
      %723 = vdwg.mxu0
      %v726 = vunpack.c.l.b16 %v333
      %v727 = vunpack.c.l.b16 %v334
      %v728 = vpack.c.b16 %v727, %v726
      %730 = vmatpush.bf16.msra.mxu0 0
      %731 = vmatpush.bf16.msra.mxu0 0
      %732 = vmatpush.bf16.msra.mxu0 0
      %733 = vmatpush.bf16.msra.mxu0 0
      %734 = vmatpush.bf16.msra.mxu0 0
      %735 = vmatpush.bf16.msra.mxu0 0
      %736 = vmatpush.bf16.msra.mxu0 0
      %737 = vmatpush.bf16.msra.mxu0 %v728
      %738 = vmatmul.bf16.gmra.mxu0 %v404
      %v739 = vpop.f32.mrf.mxu0
      %v740 = vadd.f32 0.0, %v739
      %v741 = vpop.f32.mrf.mxu0
      %v742 = vadd.f32 0.0, %v741
      %743 = vmatmul.bf16.gmra.mxu0 %v407
      %v744 = vpop.f32.mrf.mxu0
      %v745 = vadd.f32 0.0, %v744
      %v746 = vpop.f32.mrf.mxu0
      %v747 = vadd.f32 0.0, %v746
      %748 = vmatmul.bf16.gmra.mxu0 %v410
      %v749 = vpop.f32.mrf.mxu0
      %v750 = vadd.f32 0.0, %v749
      %v751 = vpop.f32.mrf.mxu0
      %v752 = vadd.f32 0.0, %v751
      %753 = vmatmul.bf16.gmra.mxu0 %v413
      %v754 = vpop.f32.mrf.mxu0
      %v755 = vadd.f32 0.0, %v754
      %v756 = vpop.f32.mrf.mxu0
      %v757 = vadd.f32 0.0, %v756
      %758 = vmatmul.bf16.gmra.mxu0 %v416
      %v759 = vpop.f32.mrf.mxu0
      %v760 = vadd.f32 0.0, %v759
      %v761 = vpop.f32.mrf.mxu0
      %v762 = vadd.f32 0.0, %v761
      %763 = vmatmul.bf16.gmra.mxu0 %v419
      %v764 = vpop.f32.mrf.mxu0
      %v765 = vadd.f32 0.0, %v764
      %v766 = vpop.f32.mrf.mxu0
      %v767 = vadd.f32 0.0, %v766
      %768 = vmatmul.bf16.gmra.mxu0 %v422
      %v769 = vpop.f32.mrf.mxu0
      %v770 = vadd.f32 0.0, %v769
      %v771 = vpop.f32.mrf.mxu0
      %v772 = vadd.f32 0.0, %v771
      %773 = vmatmul.bf16.gmra.mxu0 %v425
      %v774 = vpop.f32.mrf.mxu0
      %v775 = vadd.f32 0.0, %v774
      %v776 = vpop.f32.mrf.mxu0
      %v777 = vadd.f32 0.0, %v776
      %778 = vmatmul.bf16.gmra.mxu0 %v428
      %v779 = vpop.f32.mrf.mxu0
      %v780 = vadd.f32 0.0, %v779
      %v781 = vpop.f32.mrf.mxu0
      %v782 = vadd.f32 0.0, %v781
      %783 = vmatmul.bf16.gmra.mxu0 %v431
      %v784 = vpop.f32.mrf.mxu0
      %v785 = vadd.f32 0.0, %v784
      %v786 = vpop.f32.mrf.mxu0
      %v787 = vadd.f32 0.0, %v786
      %788 = vmatmul.bf16.gmra.mxu0 %v434
      %v789 = vpop.f32.mrf.mxu0
      %v790 = vadd.f32 0.0, %v789
      %v791 = vpop.f32.mrf.mxu0
      %v792 = vadd.f32 0.0, %v791
      %793 = vmatmul.bf16.gmra.mxu0 %v437
      %v794 = vpop.f32.mrf.mxu0
      %v795 = vadd.f32 0.0, %v794
      %v796 = vpop.f32.mrf.mxu0
      %v797 = vadd.f32 0.0, %v796
      %798 = vmatmul.bf16.gmra.mxu0 %v440
      %v799 = vpop.f32.mrf.mxu0
      %v800 = vadd.f32 0.0, %v799
      %v801 = vpop.f32.mrf.mxu0
      %v802 = vadd.f32 0.0, %v801
      %803 = vmatmul.bf16.gmra.mxu0 %v443
      %v804 = vpop.f32.mrf.mxu0
      %v805 = vadd.f32 0.0, %v804
      %v806 = vpop.f32.mrf.mxu0
      %v807 = vadd.f32 0.0, %v806
      %808 = vmatmul.bf16.gmra.mxu0 %v446
      %v809 = vpop.f32.mrf.mxu0
      %v810 = vadd.f32 0.0, %v809
      %v811 = vpop.f32.mrf.mxu0
      %v812 = vadd.f32 0.0, %v811
      %813 = vmatmul.bf16.gmra.mxu0 %v449
      %v814 = vpop.f32.mrf.mxu0
      %v815 = vadd.f32 0.0, %v814
      %v816 = vpop.f32.mrf.mxu0
      %v817 = vadd.f32 0.0, %v816
      %818 = vdwg.mxu0
      %v851 = vunpack.c.l.b16 %v261
      %v852 = vunpack.c.h.b16 %v261
      %v853 = vunpack.c.l.b16 %v262
      %v854 = vunpack.c.h.b16 %v262
      %v855 = vunpack.c.l.b16 %v263
      %v856 = vunpack.c.h.b16 %v263
      %v857 = vunpack.c.l.b16 %v264
      %v858 = vunpack.c.h.b16 %v264
      %v859 = vunpack.c.l.b16 %v265
      %v860 = vunpack.c.h.b16 %v265
      %v861 = vunpack.c.l.b16 %v266
      %v862 = vunpack.c.h.b16 %v266
      %v863 = vunpack.c.l.b16 %v267
      %v864 = vunpack.c.h.b16 %v267
      %v865 = vunpack.c.l.b16 %v268
      %v866 = vunpack.c.h.b16 %v268
      %v867 = vunpack.c.l.b16 %v269
      %v868 = vunpack.c.h.b16 %v269
      %v869 = vunpack.c.l.b16 %v270
      %v870 = vunpack.c.h.b16 %v270
      %v871 = vunpack.c.l.b16 %v271
      %v872 = vunpack.c.h.b16 %v271
      %v873 = vunpack.c.l.b16 %v272
      %v874 = vunpack.c.h.b16 %v272
      %v875 = vunpack.c.l.b16 %v273
      %v876 = vunpack.c.h.b16 %v273
      %v877 = vunpack.c.l.b16 %v274
      %v878 = vunpack.c.h.b16 %v274
      %v879 = vunpack.c.l.b16 %v275
      %v880 = vunpack.c.h.b16 %v275
      %v881 = vunpack.c.l.b16 %v276
      %v882 = vunpack.c.h.b16 %v276
      %v883 = vunpack.c.l.b16 %v277
      %v884 = vunpack.c.h.b16 %v277
      %v885 = vunpack.c.l.b16 %v278
      %v886 = vunpack.c.h.b16 %v278
      %v887 = vunpack.c.l.b16 %v279
      %v888 = vunpack.c.h.b16 %v279
      %v889 = vunpack.c.l.b16 %v280
      %v890 = vunpack.c.h.b16 %v280
      %v891 = vunpack.c.l.b16 %v281
      %v892 = vunpack.c.h.b16 %v281
      %v893 = vunpack.c.l.b16 %v282
      %v894 = vunpack.c.h.b16 %v282
      %v895 = vunpack.c.l.b16 %v283
      %v896 = vunpack.c.h.b16 %v283
      %v897 = vunpack.c.l.b16 %v284
      %v898 = vunpack.c.h.b16 %v284
      %v899 = vunpack.c.l.b16 %v285
      %v900 = vunpack.c.h.b16 %v285
      %v901 = vunpack.c.l.b16 %v286
      %v902 = vunpack.c.h.b16 %v286
      %v903 = vunpack.c.l.b16 %v287
      %v904 = vunpack.c.h.b16 %v287
      %v905 = vunpack.c.l.b16 %v288
      %v906 = vunpack.c.h.b16 %v288
      %v907 = vunpack.c.l.b16 %v289
      %v908 = vunpack.c.h.b16 %v289
      %v909 = vunpack.c.l.b16 %v290
      %v910 = vunpack.c.h.b16 %v290
      %v911 = vunpack.c.l.b16 %v291
      %v912 = vunpack.c.h.b16 %v291
      %v913 = vunpack.c.l.b16 %v292
      %v914 = vunpack.c.h.b16 %v292
      %v915 = vpack.c.b16 %v853, %v851
      %v916 = vpack.c.b16 %v854, %v852
      %v917 = vpack.c.b16 %v857, %v855
      %v918 = vpack.c.b16 %v858, %v856
      %v919 = vpack.c.b16 %v861, %v859
      %v920 = vpack.c.b16 %v862, %v860
      %v921 = vpack.c.b16 %v865, %v863
      %v922 = vpack.c.b16 %v866, %v864
      %v923 = vpack.c.b16 %v869, %v867
      %v924 = vpack.c.b16 %v870, %v868
      %v925 = vpack.c.b16 %v873, %v871
      %v926 = vpack.c.b16 %v874, %v872
      %v927 = vpack.c.b16 %v877, %v875
      %v928 = vpack.c.b16 %v878, %v876
      %v929 = vpack.c.b16 %v881, %v879
      %v930 = vpack.c.b16 %v882, %v880
      %v931 = vpack.c.b16 %v885, %v883
      %v932 = vpack.c.b16 %v886, %v884
      %v933 = vpack.c.b16 %v889, %v887
      %v934 = vpack.c.b16 %v890, %v888
      %v935 = vpack.c.b16 %v893, %v891
      %v936 = vpack.c.b16 %v894, %v892
      %v937 = vpack.c.b16 %v897, %v895
      %v938 = vpack.c.b16 %v898, %v896
      %v939 = vpack.c.b16 %v901, %v899
      %v940 = vpack.c.b16 %v902, %v900
      %v941 = vpack.c.b16 %v905, %v903
      %v942 = vpack.c.b16 %v906, %v904
      %v943 = vpack.c.b16 %v909, %v907
      %v944 = vpack.c.b16 %v910, %v908
      %v945 = vpack.c.b16 %v913, %v911
      %v946 = vpack.c.b16 %v914, %v912
      %979 = vmatpush.bf16.msra.mxu0 %v929
      %980 = vmatpush.bf16.msra.mxu0 %v927
      %981 = vmatpush.bf16.msra.mxu0 %v925
      %982 = vmatpush.bf16.msra.mxu0 %v923
      %983 = vmatpush.bf16.msra.mxu0 %v921
      %984 = vmatpush.bf16.msra.mxu0 %v919
      %985 = vmatpush.bf16.msra.mxu0 %v917
      %986 = vmatpush.bf16.msra.mxu0 %v915
      %987 = vmatmul.bf16.gmra.mxu0 %v390
      %v988 = vpop.f32.mrf.mxu0
      %v989 = vadd.f32 0.0, %v988
      %v990 = vpop.f32.mrf.mxu0
      %v991 = vadd.f32 0.0, %v990
      %992 = vdwg.mxu0
      %993 = vmatpush.bf16.msra.mxu0 %v945
      %994 = vmatpush.bf16.msra.mxu0 %v943
      %995 = vmatpush.bf16.msra.mxu0 %v941
      %996 = vmatpush.bf16.msra.mxu0 %v939
      %997 = vmatpush.bf16.msra.mxu0 %v937
      %998 = vmatpush.bf16.msra.mxu0 %v935
      %999 = vmatpush.bf16.msra.mxu0 %v933
      %1000 = vmatpush.bf16.msra.mxu0 %v931
      %1001 = vmatmul.bf16.gmra.mxu0 %v391
      %v1002 = vpop.f32.mrf.mxu0
      %v1003 = vadd.f32 %v989, %v1002
      %v1004 = vpop.f32.mrf.mxu0
      %v1005 = vadd.f32 %v991, %v1004
      %1006 = vdwg.mxu0
      %1007 = vmatpush.bf16.msra.mxu0 %v930
      %1008 = vmatpush.bf16.msra.mxu0 %v928
      %1009 = vmatpush.bf16.msra.mxu0 %v926
      %1010 = vmatpush.bf16.msra.mxu0 %v924
      %1011 = vmatpush.bf16.msra.mxu0 %v922
      %1012 = vmatpush.bf16.msra.mxu0 %v920
      %1013 = vmatpush.bf16.msra.mxu0 %v918
      %1014 = vmatpush.bf16.msra.mxu0 %v916
      %1015 = vmatmul.bf16.gmra.mxu0 %v390
      %v1016 = vpop.f32.mrf.mxu0
      %v1017 = vadd.f32 0.0, %v1016
      %v1018 = vpop.f32.mrf.mxu0
      %v1019 = vadd.f32 0.0, %v1018
      %1020 = vdwg.mxu0
      %1021 = vmatpush.bf16.msra.mxu0 %v946
      %1022 = vmatpush.bf16.msra.mxu0 %v944
      %1023 = vmatpush.bf16.msra.mxu0 %v942
      %1024 = vmatpush.bf16.msra.mxu0 %v940
      %1025 = vmatpush.bf16.msra.mxu0 %v938
      %1026 = vmatpush.bf16.msra.mxu0 %v936
      %1027 = vmatpush.bf16.msra.mxu0 %v934
      %1028 = vmatpush.bf16.msra.mxu0 %v932
      %1029 = vmatmul.bf16.gmra.mxu0 %v391
      %v1030 = vpop.f32.mrf.mxu0
      %v1031 = vadd.f32 %v1017, %v1030
      %v1032 = vpop.f32.mrf.mxu0
      %v1033 = vadd.f32 %v1019, %v1032
      %1034 = vdwg.mxu0
      %v1039 = vrot.slane %v1031, 7
      %v1040 = vrot.slane %v1033, 7
      %vm1041 = vcmask 1040384
      %v1042 = vsel %vm1041, %v1003, %v1039
      %vm1043 = vcmask 1041409
      %v1044 = vsel %vm1043, %v1003, %v1039
      %v1045 = vrot.slane %v1044, 1
      %vm1046 = vcmask 1042434
      %v1047 = vsel %vm1046, %v1003, %v1039
      %v1048 = vrot.slane %v1047, 2
      %vm1049 = vcmask 1043459
      %v1050 = vsel %vm1049, %v1003, %v1039
      %v1051 = vrot.slane %v1050, 3
      %vm1052 = vcmask 1044484
      %v1053 = vsel %vm1052, %v1003, %v1039
      %v1054 = vrot.slane %v1053, 4
      %vm1055 = vcmask 1045509
      %v1056 = vsel %vm1055, %v1003, %v1039
      %v1057 = vrot.slane %v1056, 5
      %vm1058 = vcmask 1046534
      %v1059 = vsel %vm1058, %v1003, %v1039
      %v1060 = vrot.slane %v1059, 6
      %vm1061 = vcmask 1046528
      %v1062 = vsel %vm1061, %v1039, %v1003
      %v1063 = vrot.slane %v1062, 7
      %v1064 = vsel %vm1041, %v1005, %v1040
      %v1065 = vsel %vm1043, %v1005, %v1040
      %v1066 = vrot.slane %v1065, 1
      %v1067 = vsel %vm1046, %v1005, %v1040
      %v1068 = vrot.slane %v1067, 2
      %v1069 = vsel %vm1049, %v1005, %v1040
      %v1070 = vrot.slane %v1069, 3
      %v1071 = vsel %vm1052, %v1005, %v1040
      %v1072 = vrot.slane %v1071, 4
      %v1073 = vsel %vm1055, %v1005, %v1040
      %v1074 = vrot.slane %v1073, 5
      %v1075 = vsel %vm1058, %v1005, %v1040
      %v1076 = vrot.slane %v1075, 6
      %v1077 = vsel %vm1061, %v1040, %v1005
      %v1078 = vrot.slane %v1077, 7
      %v1079 = vperm.slane %v1042, 0
      %v1080 = vperm.slane %v1042, 1
      %v1081 = vperm.slane %v1045, 0
      %v1082 = vperm.slane %v1045, 1
      %v1083 = vperm.slane %v1048, 0
      %v1084 = vperm.slane %v1048, 1
      %v1085 = vperm.slane %v1051, 0
      %v1086 = vperm.slane %v1051, 1
      %v1087 = vperm.slane %v1054, 0
      %v1088 = vperm.slane %v1054, 1
      %v1089 = vperm.slane %v1057, 0
      %v1090 = vperm.slane %v1057, 1
      %v1091 = vperm.slane %v1060, 0
      %v1092 = vperm.slane %v1060, 1
      %v1093 = vperm.slane %v1063, 0
      %v1094 = vperm.slane %v1063, 1
      %v1095 = vperm.slane %v1064, 0
      %v1096 = vperm.slane %v1064, 1
      %v1097 = vperm.slane %v1066, 0
      %v1098 = vperm.slane %v1066, 1
      %v1099 = vperm.slane %v1068, 0
      %v1100 = vperm.slane %v1068, 1
      %v1101 = vperm.slane %v1070, 0
      %v1102 = vperm.slane %v1070, 1
      %v1103 = vperm.slane %v1072, 0
      %v1104 = vperm.slane %v1072, 1
      %v1105 = vperm.slane %v1074, 0
      %v1106 = vperm.slane %v1074, 1
      %v1107 = vperm.slane %v1076, 0
      %v1108 = vperm.slane %v1076, 1
      %v1109 = vperm.slane %v1078, 0
      %v1110 = vperm.slane %v1078, 1
      %v1143 = vadd.f32 %v461, %v1079
      %v1144 = vadd.f32 %v550, %v1080
      %v1145 = vadd.f32 %v463, %v1079
      %v1146 = vadd.f32 %v552, %v1080
      %v1147 = vadd.f32 %v466, %v1081
      %v1148 = vadd.f32 %v555, %v1082
      %v1149 = vadd.f32 %v468, %v1081
      %v1150 = vadd.f32 %v557, %v1082
      %v1151 = vadd.f32 %v471, %v1083
      %v1152 = vadd.f32 %v560, %v1084
      %v1153 = vadd.f32 %v473, %v1083
      %v1154 = vadd.f32 %v562, %v1084
      %v1155 = vadd.f32 %v476, %v1085
      %v1156 = vadd.f32 %v565, %v1086
      %v1157 = vadd.f32 %v478, %v1085
      %v1158 = vadd.f32 %v567, %v1086
      %v1159 = vadd.f32 %v481, %v1087
      %v1160 = vadd.f32 %v570, %v1088
      %v1161 = vadd.f32 %v483, %v1087
      %v1162 = vadd.f32 %v572, %v1088
      %v1163 = vadd.f32 %v486, %v1089
      %v1164 = vadd.f32 %v575, %v1090
      %v1165 = vadd.f32 %v488, %v1089
      %v1166 = vadd.f32 %v577, %v1090
      %v1167 = vadd.f32 %v491, %v1091
      %v1168 = vadd.f32 %v580, %v1092
      %v1169 = vadd.f32 %v493, %v1091
      %v1170 = vadd.f32 %v582, %v1092
      %v1171 = vadd.f32 %v496, %v1093
      %v1172 = vadd.f32 %v585, %v1094
      %v1173 = vadd.f32 %v498, %v1093
      %v1174 = vadd.f32 %v587, %v1094
      %v1175 = vadd.f32 %v501, %v1095
      %v1176 = vadd.f32 %v590, %v1096
      %v1177 = vadd.f32 %v503, %v1095
      %v1178 = vadd.f32 %v592, %v1096
      %v1179 = vadd.f32 %v506, %v1097
      %v1180 = vadd.f32 %v595, %v1098
      %v1181 = vadd.f32 %v508, %v1097
      %v1182 = vadd.f32 %v597, %v1098
      %v1183 = vadd.f32 %v511, %v1099
      %v1184 = vadd.f32 %v600, %v1100
      %v1185 = vadd.f32 %v513, %v1099
      %v1186 = vadd.f32 %v602, %v1100
      %v1187 = vadd.f32 %v516, %v1101
      %v1188 = vadd.f32 %v605, %v1102
      %v1189 = vadd.f32 %v518, %v1101
      %v1190 = vadd.f32 %v607, %v1102
      %v1191 = vadd.f32 %v521, %v1103
      %v1192 = vadd.f32 %v610, %v1104
      %v1193 = vadd.f32 %v523, %v1103
      %v1194 = vadd.f32 %v612, %v1104
      %v1195 = vadd.f32 %v526, %v1105
      %v1196 = vadd.f32 %v615, %v1106
      %v1197 = vadd.f32 %v528, %v1105
      %v1198 = vadd.f32 %v617, %v1106
      %v1199 = vadd.f32 %v531, %v1107
      %v1200 = vadd.f32 %v620, %v1108
      %v1201 = vadd.f32 %v533, %v1107
      %v1202 = vadd.f32 %v622, %v1108
      %v1203 = vadd.f32 %v536, %v1109
      %v1204 = vadd.f32 %v625, %v1110
      %v1205 = vadd.f32 %v538, %v1109
      %v1206 = vadd.f32 %v627, %v1110
      %vm1207 = vcmp.ge.f32.partialorder %v1143, 0.0
      %vm1208 = vcmp.ge.f32.partialorder %v1144, 0.0
      %vm1209 = vcmp.ge.f32.partialorder %v1145, 0.0
      %vm1210 = vcmp.ge.f32.partialorder %v1146, 0.0
      %vm1211 = vcmp.ge.f32.partialorder %v1147, 0.0
      %vm1212 = vcmp.ge.f32.partialorder %v1148, 0.0
      %vm1213 = vcmp.ge.f32.partialorder %v1149, 0.0
      %vm1214 = vcmp.ge.f32.partialorder %v1150, 0.0
      %vm1215 = vcmp.ge.f32.partialorder %v1151, 0.0
      %vm1216 = vcmp.ge.f32.partialorder %v1152, 0.0
      %vm1217 = vcmp.ge.f32.partialorder %v1153, 0.0
      %vm1218 = vcmp.ge.f32.partialorder %v1154, 0.0
      %vm1219 = vcmp.ge.f32.partialorder %v1155, 0.0
      %vm1220 = vcmp.ge.f32.partialorder %v1156, 0.0
      %vm1221 = vcmp.ge.f32.partialorder %v1157, 0.0
      %vm1222 = vcmp.ge.f32.partialorder %v1158, 0.0
      %vm1223 = vcmp.ge.f32.partialorder %v1159, 0.0
      %vm1224 = vcmp.ge.f32.partialorder %v1160, 0.0
      %vm1225 = vcmp.ge.f32.partialorder %v1161, 0.0
      %vm1226 = vcmp.ge.f32.partialorder %v1162, 0.0
      %vm1227 = vcmp.ge.f32.partialorder %v1163, 0.0
      %vm1228 = vcmp.ge.f32.partialorder %v1164, 0.0
      %vm1229 = vcmp.ge.f32.partialorder %v1165, 0.0
      %vm1230 = vcmp.ge.f32.partialorder %v1166, 0.0
      %vm1231 = vcmp.ge.f32.partialorder %v1167, 0.0
      %vm1232 = vcmp.ge.f32.partialorder %v1168, 0.0
      %vm1233 = vcmp.ge.f32.partialorder %v1169, 0.0
      %vm1234 = vcmp.ge.f32.partialorder %v1170, 0.0
      %vm1235 = vcmp.ge.f32.partialorder %v1171, 0.0
      %vm1236 = vcmp.ge.f32.partialorder %v1172, 0.0
      %vm1237 = vcmp.ge.f32.partialorder %v1173, 0.0
      %vm1238 = vcmp.ge.f32.partialorder %v1174, 0.0
      %vm1239 = vcmp.ge.f32.partialorder %v1175, 0.0
      %vm1240 = vcmp.ge.f32.partialorder %v1176, 0.0
      %vm1241 = vcmp.ge.f32.partialorder %v1177, 0.0
      %vm1242 = vcmp.ge.f32.partialorder %v1178, 0.0
      %vm1243 = vcmp.ge.f32.partialorder %v1179, 0.0
      %vm1244 = vcmp.ge.f32.partialorder %v1180, 0.0
      %vm1245 = vcmp.ge.f32.partialorder %v1181, 0.0
      %vm1246 = vcmp.ge.f32.partialorder %v1182, 0.0
      %vm1247 = vcmp.ge.f32.partialorder %v1183, 0.0
      %vm1248 = vcmp.ge.f32.partialorder %v1184, 0.0
      %vm1249 = vcmp.ge.f32.partialorder %v1185, 0.0
      %vm1250 = vcmp.ge.f32.partialorder %v1186, 0.0
      %vm1251 = vcmp.ge.f32.partialorder %v1187, 0.0
      %vm1252 = vcmp.ge.f32.partialorder %v1188, 0.0
      %vm1253 = vcmp.ge.f32.partialorder %v1189, 0.0
      %vm1254 = vcmp.ge.f32.partialorder %v1190, 0.0
      %vm1255 = vcmp.ge.f32.partialorder %v1191, 0.0
      %vm1256 = vcmp.ge.f32.partialorder %v1192, 0.0
      %vm1257 = vcmp.ge.f32.partialorder %v1193, 0.0
      %vm1258 = vcmp.ge.f32.partialorder %v1194, 0.0
      %vm1259 = vcmp.ge.f32.partialorder %v1195, 0.0
      %vm1260 = vcmp.ge.f32.partialorder %v1196, 0.0
      %vm1261 = vcmp.ge.f32.partialorder %v1197, 0.0
      %vm1262 = vcmp.ge.f32.partialorder %v1198, 0.0
      %vm1263 = vcmp.ge.f32.partialorder %v1199, 0.0
      %vm1264 = vcmp.ge.f32.partialorder %v1200, 0.0
      %vm1265 = vcmp.ge.f32.partialorder %v1201, 0.0
      %vm1266 = vcmp.ge.f32.partialorder %v1202, 0.0
      %vm1267 = vcmp.ge.f32.partialorder %v1203, 0.0
      %vm1268 = vcmp.ge.f32.partialorder %v1204, 0.0
      %vm1269 = vcmp.ge.f32.partialorder %v1205, 0.0
      %vm1270 = vcmp.ge.f32.partialorder %v1206, 0.0
      %v1271 = vmul.f32 %v1143, 0.2
      %v1272 = vmul.f32 %v1144, 0.2
      %v1273 = vmul.f32 %v1145, 0.2
      %v1274 = vmul.f32 %v1146, 0.2
      %v1275 = vmul.f32 %v1147, 0.2
      %v1276 = vmul.f32 %v1148, 0.2
      %v1277 = vmul.f32 %v1149, 0.2
      %v1278 = vmul.f32 %v1150, 0.2
      %v1279 = vmul.f32 %v1151, 0.2
      %v1280 = vmul.f32 %v1152, 0.2
      %v1281 = vmul.f32 %v1153, 0.2
      %v1282 = vmul.f32 %v1154, 0.2
      %v1283 = vmul.f32 %v1155, 0.2
      %v1284 = vmul.f32 %v1156, 0.2
      %v1285 = vmul.f32 %v1157, 0.2
      %v1286 = vmul.f32 %v1158, 0.2
      %v1287 = vmul.f32 %v1159, 0.2
      %v1288 = vmul.f32 %v1160, 0.2
      %v1289 = vmul.f32 %v1161, 0.2
      %v1290 = vmul.f32 %v1162, 0.2
      %v1291 = vmul.f32 %v1163, 0.2
      %v1292 = vmul.f32 %v1164, 0.2
      %v1293 = vmul.f32 %v1165, 0.2
      %v1294 = vmul.f32 %v1166, 0.2
      %v1295 = vmul.f32 %v1167, 0.2
      %v1296 = vmul.f32 %v1168, 0.2
      %v1297 = vmul.f32 %v1169, 0.2
      %v1298 = vmul.f32 %v1170, 0.2
      %v1299 = vmul.f32 %v1171, 0.2
      %v1300 = vmul.f32 %v1172, 0.2
      %v1301 = vmul.f32 %v1173, 0.2
      %v1302 = vmul.f32 %v1174, 0.2
      %v1303 = vmul.f32 %v1175, 0.2
      %v1304 = vmul.f32 %v1176, 0.2
      %v1305 = vmul.f32 %v1177, 0.2
      %v1306 = vmul.f32 %v1178, 0.2
      %v1307 = vmul.f32 %v1179, 0.2
      %v1308 = vmul.f32 %v1180, 0.2
      %v1309 = vmul.f32 %v1181, 0.2
      %v1310 = vmul.f32 %v1182, 0.2
      %v1311 = vmul.f32 %v1183, 0.2
      %v1312 = vmul.f32 %v1184, 0.2
      %v1313 = vmul.f32 %v1185, 0.2
      %v1314 = vmul.f32 %v1186, 0.2
      %v1315 = vmul.f32 %v1187, 0.2
      %v1316 = vmul.f32 %v1188, 0.2
      %v1317 = vmul.f32 %v1189, 0.2
      %v1318 = vmul.f32 %v1190, 0.2
      %v1319 = vmul.f32 %v1191, 0.2
      %v1320 = vmul.f32 %v1192, 0.2
      %v1321 = vmul.f32 %v1193, 0.2
      %v1322 = vmul.f32 %v1194, 0.2
      %v1323 = vmul.f32 %v1195, 0.2
      %v1324 = vmul.f32 %v1196, 0.2
      %v1325 = vmul.f32 %v1197, 0.2
      %v1326 = vmul.f32 %v1198, 0.2
      %v1327 = vmul.f32 %v1199, 0.2
      %v1328 = vmul.f32 %v1200, 0.2
      %v1329 = vmul.f32 %v1201, 0.2
      %v1330 = vmul.f32 %v1202, 0.2
      %v1331 = vmul.f32 %v1203, 0.2
      %v1332 = vmul.f32 %v1204, 0.2
      %v1333 = vmul.f32 %v1205, 0.2
      %v1334 = vmul.f32 %v1206, 0.2
      %v1335 = vsel %vm1207, %v1143, %v1271
      %v1336 = vsel %vm1208, %v1144, %v1272
      %v1337 = vsel %vm1209, %v1145, %v1273
      %v1338 = vsel %vm1210, %v1146, %v1274
      %v1339 = vsel %vm1211, %v1147, %v1275
      %v1340 = vsel %vm1212, %v1148, %v1276
      %v1341 = vsel %vm1213, %v1149, %v1277
      %v1342 = vsel %vm1214, %v1150, %v1278
      %v1343 = vsel %vm1215, %v1151, %v1279
      %v1344 = vsel %vm1216, %v1152, %v1280
      %v1345 = vsel %vm1217, %v1153, %v1281
      %v1346 = vsel %vm1218, %v1154, %v1282
      %v1347 = vsel %vm1219, %v1155, %v1283
      %v1348 = vsel %vm1220, %v1156, %v1284
      %v1349 = vsel %vm1221, %v1157, %v1285
      %v1350 = vsel %vm1222, %v1158, %v1286
      %v1351 = vsel %vm1223, %v1159, %v1287
      %v1352 = vsel %vm1224, %v1160, %v1288
      %v1353 = vsel %vm1225, %v1161, %v1289
      %v1354 = vsel %vm1226, %v1162, %v1290
      %v1355 = vsel %vm1227, %v1163, %v1291
      %v1356 = vsel %vm1228, %v1164, %v1292
      %v1357 = vsel %vm1229, %v1165, %v1293
      %v1358 = vsel %vm1230, %v1166, %v1294
      %v1359 = vsel %vm1231, %v1167, %v1295
      %v1360 = vsel %vm1232, %v1168, %v1296
      %v1361 = vsel %vm1233, %v1169, %v1297
      %v1362 = vsel %vm1234, %v1170, %v1298
      %v1363 = vsel %vm1235, %v1171, %v1299
      %v1364 = vsel %vm1236, %v1172, %v1300
      %v1365 = vsel %vm1237, %v1173, %v1301
      %v1366 = vsel %vm1238, %v1174, %v1302
      %v1367 = vsel %vm1239, %v1175, %v1303
      %v1368 = vsel %vm1240, %v1176, %v1304
      %v1369 = vsel %vm1241, %v1177, %v1305
      %v1370 = vsel %vm1242, %v1178, %v1306
      %v1371 = vsel %vm1243, %v1179, %v1307
      %v1372 = vsel %vm1244, %v1180, %v1308
      %v1373 = vsel %vm1245, %v1181, %v1309
      %v1374 = vsel %vm1246, %v1182, %v1310
      %v1375 = vsel %vm1247, %v1183, %v1311
      %v1376 = vsel %vm1248, %v1184, %v1312
      %v1377 = vsel %vm1249, %v1185, %v1313
      %v1378 = vsel %vm1250, %v1186, %v1314
      %v1379 = vsel %vm1251, %v1187, %v1315
      %v1380 = vsel %vm1252, %v1188, %v1316
      %v1381 = vsel %vm1253, %v1189, %v1317
      %v1382 = vsel %vm1254, %v1190, %v1318
      %v1383 = vsel %vm1255, %v1191, %v1319
      %v1384 = vsel %vm1256, %v1192, %v1320
      %v1385 = vsel %vm1257, %v1193, %v1321
      %v1386 = vsel %vm1258, %v1194, %v1322
      %v1387 = vsel %vm1259, %v1195, %v1323
      %v1388 = vsel %vm1260, %v1196, %v1324
      %v1389 = vsel %vm1261, %v1197, %v1325
      %v1390 = vsel %vm1262, %v1198, %v1326
      %v1391 = vsel %vm1263, %v1199, %v1327
      %v1392 = vsel %vm1264, %v1200, %v1328
      %v1393 = vsel %vm1265, %v1201, %v1329
      %v1394 = vsel %vm1266, %v1202, %v1330
      %v1395 = vsel %vm1267, %v1203, %v1331
      %v1396 = vsel %vm1268, %v1204, %v1332
      %v1397 = vsel %vm1269, %v1205, %v1333
      %v1398 = vsel %vm1270, %v1206, %v1334
      %v1399 = vadd.f32 %v1335, %v295
      %v1400 = vadd.f32 %v1336, %v296
      %v1401 = vadd.f32 %v1337, %v297
      %v1402 = vadd.f32 %v1338, %v298
      %v1403 = vadd.f32 %v1339, %v295
      %v1404 = vadd.f32 %v1340, %v296
      %v1405 = vadd.f32 %v1341, %v297
      %v1406 = vadd.f32 %v1342, %v298
      %v1407 = vadd.f32 %v1343, %v295
      %v1408 = vadd.f32 %v1344, %v296
      %v1409 = vadd.f32 %v1345, %v297
      %v1410 = vadd.f32 %v1346, %v298
      %v1411 = vadd.f32 %v1347, %v295
      %v1412 = vadd.f32 %v1348, %v296
      %v1413 = vadd.f32 %v1349, %v297
      %v1414 = vadd.f32 %v1350, %v298
      %v1415 = vadd.f32 %v1351, %v295
      %v1416 = vadd.f32 %v1352, %v296
      %v1417 = vadd.f32 %v1353, %v297
      %v1418 = vadd.f32 %v1354, %v298
      %v1419 = vadd.f32 %v1355, %v295
      %v1420 = vadd.f32 %v1356, %v296
      %v1421 = vadd.f32 %v1357, %v297
      %v1422 = vadd.f32 %v1358, %v298
      %v1423 = vadd.f32 %v1359, %v295
      %v1424 = vadd.f32 %v1360, %v296
      %v1425 = vadd.f32 %v1361, %v297
      %v1426 = vadd.f32 %v1362, %v298
      %v1427 = vadd.f32 %v1363, %v295
      %v1428 = vadd.f32 %v1364, %v296
      %v1429 = vadd.f32 %v1365, %v297
      %v1430 = vadd.f32 %v1366, %v298
      %v1431 = vadd.f32 %v1367, %v295
      %v1432 = vadd.f32 %v1368, %v296
      %v1433 = vadd.f32 %v1369, %v297
      %v1434 = vadd.f32 %v1370, %v298
      %v1435 = vadd.f32 %v1371, %v295
      %v1436 = vadd.f32 %v1372, %v296
      %v1437 = vadd.f32 %v1373, %v297
      %v1438 = vadd.f32 %v1374, %v298
      %v1439 = vadd.f32 %v1375, %v295
      %v1440 = vadd.f32 %v1376, %v296
      %v1441 = vadd.f32 %v1377, %v297
      %v1442 = vadd.f32 %v1378, %v298
      %v1443 = vadd.f32 %v1379, %v295
      %v1444 = vadd.f32 %v1380, %v296
      %v1445 = vadd.f32 %v1381, %v297
      %v1446 = vadd.f32 %v1382, %v298
      %v1447 = vadd.f32 %v1383, %v295
      %v1448 = vadd.f32 %v1384, %v296
      %v1449 = vadd.f32 %v1385, %v297
      %v1450 = vadd.f32 %v1386, %v298
      %v1451 = vadd.f32 %v1387, %v295
      %v1452 = vadd.f32 %v1388, %v296
      %v1453 = vadd.f32 %v1389, %v297
      %v1454 = vadd.f32 %v1390, %v298
      %v1455 = vadd.f32 %v1391, %v295
      %v1456 = vadd.f32 %v1392, %v296
      %v1457 = vadd.f32 %v1393, %v297
      %v1458 = vadd.f32 %v1394, %v298
      %v1459 = vadd.f32 %v1395, %v295
      %v1460 = vadd.f32 %v1396, %v296
      %v1461 = vadd.f32 %v1397, %v297
      %v1462 = vadd.f32 %v1398, %v298
      %v1463 = vmax.f32 %v1399, %v1400
      %1464 = vmax.xlane.f32.xlu0 %v1463
      %v1465 = vpop.xlane.xlu0 %1464
      %v1466 = vmax.f32 %v1401, %v1402
      %1467 = vmax.xlane.f32.xlu0 %v1466
      %v1468 = vpop.xlane.xlu0 %1467
      %v1469 = vmax.f32 %v1403, %v1404
      %1470 = vmax.xlane.f32.xlu0 %v1469
      %v1471 = vpop.xlane.xlu0 %1470
      %v1472 = vmax.f32 %v1405, %v1406
      %1473 = vmax.xlane.f32.xlu0 %v1472
      %v1474 = vpop.xlane.xlu0 %1473
      %v1475 = vmax.f32 %v1407, %v1408
      %1476 = vmax.xlane.f32.xlu0 %v1475
      %v1477 = vpop.xlane.xlu0 %1476
      %v1478 = vmax.f32 %v1409, %v1410
      %1479 = vmax.xlane.f32.xlu0 %v1478
      %v1480 = vpop.xlane.xlu0 %1479
      %v1481 = vmax.f32 %v1411, %v1412
      %1482 = vmax.xlane.f32.xlu0 %v1481
      %v1483 = vpop.xlane.xlu0 %1482
      %v1484 = vmax.f32 %v1413, %v1414
      %1485 = vmax.xlane.f32.xlu0 %v1484
      %v1486 = vpop.xlane.xlu0 %1485
      %v1487 = vmax.f32 %v1415, %v1416
      %1488 = vmax.xlane.f32.xlu0 %v1487
      %v1489 = vpop.xlane.xlu0 %1488
      %v1490 = vmax.f32 %v1417, %v1418
      %1491 = vmax.xlane.f32.xlu0 %v1490
      %v1492 = vpop.xlane.xlu0 %1491
      %v1493 = vmax.f32 %v1419, %v1420
      %1494 = vmax.xlane.f32.xlu0 %v1493
      %v1495 = vpop.xlane.xlu0 %1494
      %v1496 = vmax.f32 %v1421, %v1422
      %1497 = vmax.xlane.f32.xlu0 %v1496
      %v1498 = vpop.xlane.xlu0 %1497
      %v1499 = vmax.f32 %v1423, %v1424
      %1500 = vmax.xlane.f32.xlu0 %v1499
      %v1501 = vpop.xlane.xlu0 %1500
      %v1502 = vmax.f32 %v1425, %v1426
      %1503 = vmax.xlane.f32.xlu0 %v1502
      %v1504 = vpop.xlane.xlu0 %1503
      %v1505 = vmax.f32 %v1427, %v1428
      %1506 = vmax.xlane.f32.xlu0 %v1505
      %v1507 = vpop.xlane.xlu0 %1506
      %v1508 = vmax.f32 %v1429, %v1430
      %1509 = vmax.xlane.f32.xlu0 %v1508
      %v1510 = vpop.xlane.xlu0 %1509
      %v1511 = vmax.f32 %v1431, %v1432
      %1512 = vmax.xlane.f32.xlu0 %v1511
      %v1513 = vpop.xlane.xlu0 %1512
      %v1514 = vmax.f32 %v1433, %v1434
      %1515 = vmax.xlane.f32.xlu0 %v1514
      %v1516 = vpop.xlane.xlu0 %1515
      %v1517 = vmax.f32 %v1435, %v1436
      %1518 = vmax.xlane.f32.xlu0 %v1517
      %v1519 = vpop.xlane.xlu0 %1518
      %v1520 = vmax.f32 %v1437, %v1438
      %1521 = vmax.xlane.f32.xlu0 %v1520
      %v1522 = vpop.xlane.xlu0 %1521
      %v1523 = vmax.f32 %v1439, %v1440
      %1524 = vmax.xlane.f32.xlu0 %v1523
      %v1525 = vpop.xlane.xlu0 %1524
      %v1526 = vmax.f32 %v1441, %v1442
      %1527 = vmax.xlane.f32.xlu0 %v1526
      %v1528 = vpop.xlane.xlu0 %1527
      %v1529 = vmax.f32 %v1443, %v1444
      %1530 = vmax.xlane.f32.xlu0 %v1529
      %v1531 = vpop.xlane.xlu0 %1530
      %v1532 = vmax.f32 %v1445, %v1446
      %1533 = vmax.xlane.f32.xlu0 %v1532
      %v1534 = vpop.xlane.xlu0 %1533
      %v1535 = vmax.f32 %v1447, %v1448
      %1536 = vmax.xlane.f32.xlu0 %v1535
      %v1537 = vpop.xlane.xlu0 %1536
      %v1538 = vmax.f32 %v1449, %v1450
      %1539 = vmax.xlane.f32.xlu0 %v1538
      %v1540 = vpop.xlane.xlu0 %1539
      %v1541 = vmax.f32 %v1451, %v1452
      %1542 = vmax.xlane.f32.xlu0 %v1541
      %v1543 = vpop.xlane.xlu0 %1542
      %v1544 = vmax.f32 %v1453, %v1454
      %1545 = vmax.xlane.f32.xlu0 %v1544
      %v1546 = vpop.xlane.xlu0 %1545
      %v1547 = vmax.f32 %v1455, %v1456
      %1548 = vmax.xlane.f32.xlu0 %v1547
      %v1549 = vpop.xlane.xlu0 %1548
      %v1550 = vmax.f32 %v1457, %v1458
      %1551 = vmax.xlane.f32.xlu0 %v1550
      %v1552 = vpop.xlane.xlu0 %1551
      %v1553 = vmax.f32 %v1459, %v1460
      %1554 = vmax.xlane.f32.xlu0 %v1553
      %v1555 = vpop.xlane.xlu0 %1554
      %v1556 = vmax.f32 %v1461, %v1462
      %1557 = vmax.xlane.f32.xlu0 %v1556
      %v1558 = vpop.xlane.xlu0 %1557
      %v1559 = vsub.f32 %v1399, %v1465
      %v1560 = vsub.f32 %v1400, %v1465
      %v1561 = vsub.f32 %v1401, %v1468
      %v1562 = vsub.f32 %v1402, %v1468
      %v1563 = vsub.f32 %v1403, %v1471
      %v1564 = vsub.f32 %v1404, %v1471
      %v1565 = vsub.f32 %v1405, %v1474
      %v1566 = vsub.f32 %v1406, %v1474
      %v1567 = vsub.f32 %v1407, %v1477
      %v1568 = vsub.f32 %v1408, %v1477
      %v1569 = vsub.f32 %v1409, %v1480
      %v1570 = vsub.f32 %v1410, %v1480
      %v1571 = vsub.f32 %v1411, %v1483
      %v1572 = vsub.f32 %v1412, %v1483
      %v1573 = vsub.f32 %v1413, %v1486
      %v1574 = vsub.f32 %v1414, %v1486
      %v1575 = vsub.f32 %v1415, %v1489
      %v1576 = vsub.f32 %v1416, %v1489
      %v1577 = vsub.f32 %v1417, %v1492
      %v1578 = vsub.f32 %v1418, %v1492
      %v1579 = vsub.f32 %v1419, %v1495
      %v1580 = vsub.f32 %v1420, %v1495
      %v1581 = vsub.f32 %v1421, %v1498
      %v1582 = vsub.f32 %v1422, %v1498
      %v1583 = vsub.f32 %v1423, %v1501
      %v1584 = vsub.f32 %v1424, %v1501
      %v1585 = vsub.f32 %v1425, %v1504
      %v1586 = vsub.f32 %v1426, %v1504
      %v1587 = vsub.f32 %v1427, %v1507
      %v1588 = vsub.f32 %v1428, %v1507
      %v1589 = vsub.f32 %v1429, %v1510
      %v1590 = vsub.f32 %v1430, %v1510
      %v1591 = vsub.f32 %v1431, %v1513
      %v1592 = vsub.f32 %v1432, %v1513
      %v1593 = vsub.f32 %v1433, %v1516
      %v1594 = vsub.f32 %v1434, %v1516
      %v1595 = vsub.f32 %v1435, %v1519
      %v1596 = vsub.f32 %v1436, %v1519
      %v1597 = vsub.f32 %v1437, %v1522
      %v1598 = vsub.f32 %v1438, %v1522
      %v1599 = vsub.f32 %v1439, %v1525
      %v1600 = vsub.f32 %v1440, %v1525
      %v1601 = vsub.f32 %v1441, %v1528
      %v1602 = vsub.f32 %v1442, %v1528
      %v1603 = vsub.f32 %v1443, %v1531
      %v1604 = vsub.f32 %v1444, %v1531
      %v1605 = vsub.f32 %v1445, %v1534
      %v1606 = vsub.f32 %v1446, %v1534
      %v1607 = vsub.f32 %v1447, %v1537
      %v1608 = vsub.f32 %v1448, %v1537
      %v1609 = vsub.f32 %v1449, %v1540
      %v1610 = vsub.f32 %v1450, %v1540
      %v1611 = vsub.f32 %v1451, %v1543
      %v1612 = vsub.f32 %v1452, %v1543
      %v1613 = vsub.f32 %v1453, %v1546
      %v1614 = vsub.f32 %v1454, %v1546
      %v1615 = vsub.f32 %v1455, %v1549
      %v1616 = vsub.f32 %v1456, %v1549
      %v1617 = vsub.f32 %v1457, %v1552
      %v1618 = vsub.f32 %v1458, %v1552
      %v1619 = vsub.f32 %v1459, %v1555
      %v1620 = vsub.f32 %v1460, %v1555
      %v1621 = vsub.f32 %v1461, %v1558
      %v1622 = vsub.f32 %v1462, %v1558
      %v1623 = vmul.f32 %v1559, 1.442695
      %v1624 = vpow.pop %v1623
      %v1625 = vmul.f32 %v1560, 1.442695
      %v1626 = vpow.pop %v1625
      %v1627 = vmul.f32 %v1561, 1.442695
      %v1628 = vpow.pop %v1627
      %v1629 = vmul.f32 %v1562, 1.442695
      %v1630 = vpow.pop %v1629
      %v1631 = vmul.f32 %v1563, 1.442695
      %v1632 = vpow.pop %v1631
      %v1633 = vmul.f32 %v1564, 1.442695
      %v1634 = vpow.pop %v1633
      %v1635 = vmul.f32 %v1565, 1.442695
      %v1636 = vpow.pop %v1635
      %v1637 = vmul.f32 %v1566, 1.442695
      %v1638 = vpow.pop %v1637
      %v1639 = vmul.f32 %v1567, 1.442695
      %v1640 = vpow.pop %v1639
      %v1641 = vmul.f32 %v1568, 1.442695
      %v1642 = vpow.pop %v1641
      %v1643 = vmul.f32 %v1569, 1.442695
      %v1644 = vpow.pop %v1643
      %v1645 = vmul.f32 %v1570, 1.442695
      %v1646 = vpow.pop %v1645
      %v1647 = vmul.f32 %v1571, 1.442695
      %v1648 = vpow.pop %v1647
      %v1649 = vmul.f32 %v1572, 1.442695
      %v1650 = vpow.pop %v1649
      %v1651 = vmul.f32 %v1573, 1.442695
      %v1652 = vpow.pop %v1651
      %v1653 = vmul.f32 %v1574, 1.442695
      %v1654 = vpow.pop %v1653
      %v1655 = vmul.f32 %v1575, 1.442695
      %v1656 = vpow.pop %v1655
      %v1657 = vmul.f32 %v1576, 1.442695
      %v1658 = vpow.pop %v1657
      %v1659 = vmul.f32 %v1577, 1.442695
      %v1660 = vpow.pop %v1659
      %v1661 = vmul.f32 %v1578, 1.442695
      %v1662 = vpow.pop %v1661
      %v1663 = vmul.f32 %v1579, 1.442695
      %v1664 = vpow.pop %v1663
      %v1665 = vmul.f32 %v1580, 1.442695
      %v1666 = vpow.pop %v1665
      %v1667 = vmul.f32 %v1581, 1.442695
      %v1668 = vpow.pop %v1667
      %v1669 = vmul.f32 %v1582, 1.442695
      %v1670 = vpow.pop %v1669
      %v1671 = vmul.f32 %v1583, 1.442695
      %v1672 = vpow.pop %v1671
      %v1673 = vmul.f32 %v1584, 1.442695
      %v1674 = vpow.pop %v1673
      %v1675 = vmul.f32 %v1585, 1.442695
      %v1676 = vpow.pop %v1675
      %v1677 = vmul.f32 %v1586, 1.442695
      %v1678 = vpow.pop %v1677
      %v1679 = vmul.f32 %v1587, 1.442695
      %v1680 = vpow.pop %v1679
      %v1681 = vmul.f32 %v1588, 1.442695
      %v1682 = vpow.pop %v1681
      %v1683 = vmul.f32 %v1589, 1.442695
      %v1684 = vpow.pop %v1683
      %v1685 = vmul.f32 %v1590, 1.442695
      %v1686 = vpow.pop %v1685
      %v1687 = vmul.f32 %v1591, 1.442695
      %v1688 = vpow.pop %v1687
      %v1689 = vmul.f32 %v1592, 1.442695
      %v1690 = vpow.pop %v1689
      %v1691 = vmul.f32 %v1593, 1.442695
      %v1692 = vpow.pop %v1691
      %v1693 = vmul.f32 %v1594, 1.442695
      %v1694 = vpow.pop %v1693
      %v1695 = vmul.f32 %v1595, 1.442695
      %v1696 = vpow.pop %v1695
      %v1697 = vmul.f32 %v1596, 1.442695
      %v1698 = vpow.pop %v1697
      %v1699 = vmul.f32 %v1597, 1.442695
      %v1700 = vpow.pop %v1699
      %v1701 = vmul.f32 %v1598, 1.442695
      %v1702 = vpow.pop %v1701
      %v1703 = vmul.f32 %v1599, 1.442695
      %v1704 = vpow.pop %v1703
      %v1705 = vmul.f32 %v1600, 1.442695
      %v1706 = vpow.pop %v1705
      %v1707 = vmul.f32 %v1601, 1.442695
      %v1708 = vpow.pop %v1707
      %v1709 = vmul.f32 %v1602, 1.442695
      %v1710 = vpow.pop %v1709
      %v1711 = vmul.f32 %v1603, 1.442695
      %v1712 = vpow.pop %v1711
      %v1713 = vmul.f32 %v1604, 1.442695
      %v1714 = vpow.pop %v1713
      %v1715 = vmul.f32 %v1605, 1.442695
      %v1716 = vpow.pop %v1715
      %v1717 = vmul.f32 %v1606, 1.442695
      %v1718 = vpow.pop %v1717
      %v1719 = vmul.f32 %v1607, 1.442695
      %v1720 = vpow.pop %v1719
      %v1721 = vmul.f32 %v1608, 1.442695
      %v1722 = vpow.pop %v1721
      %v1723 = vmul.f32 %v1609, 1.442695
      %v1724 = vpow.pop %v1723
      %v1725 = vmul.f32 %v1610, 1.442695
      %v1726 = vpow.pop %v1725
      %v1727 = vmul.f32 %v1611, 1.442695
      %v1728 = vpow.pop %v1727
      %v1729 = vmul.f32 %v1612, 1.442695
      %v1730 = vpow.pop %v1729
      %v1731 = vmul.f32 %v1613, 1.442695
      %v1732 = vpow.pop %v1731
      %v1733 = vmul.f32 %v1614, 1.442695
      %v1734 = vpow.pop %v1733
      %v1735 = vmul.f32 %v1615, 1.442695
      %v1736 = vpow.pop %v1735
      %v1737 = vmul.f32 %v1616, 1.442695
      %v1738 = vpow.pop %v1737
      %v1739 = vmul.f32 %v1617, 1.442695
      %v1740 = vpow.pop %v1739
      %v1741 = vmul.f32 %v1618, 1.442695
      %v1742 = vpow.pop %v1741
      %v1743 = vmul.f32 %v1619, 1.442695
      %v1744 = vpow.pop %v1743
      %v1745 = vmul.f32 %v1620, 1.442695
      %v1746 = vpow.pop %v1745
      %v1747 = vmul.f32 %v1621, 1.442695
      %v1748 = vpow.pop %v1747
      %v1749 = vmul.f32 %v1622, 1.442695
      %v1750 = vpow.pop %v1749
      %v1751 = vpack.c.bf16 %v1626, %v1624
      %v1752 = vpack.c.bf16 %v1630, %v1628
      %v1753 = vpack.c.bf16 %v1634, %v1632
      %v1754 = vpack.c.bf16 %v1638, %v1636
      %v1755 = vpack.c.bf16 %v1642, %v1640
      %v1756 = vpack.c.bf16 %v1646, %v1644
      %v1757 = vpack.c.bf16 %v1650, %v1648
      %v1758 = vpack.c.bf16 %v1654, %v1652
      %v1759 = vpack.c.bf16 %v1658, %v1656
      %v1760 = vpack.c.bf16 %v1662, %v1660
      %v1761 = vpack.c.bf16 %v1666, %v1664
      %v1762 = vpack.c.bf16 %v1670, %v1668
      %v1763 = vpack.c.bf16 %v1674, %v1672
      %v1764 = vpack.c.bf16 %v1678, %v1676
      %v1765 = vpack.c.bf16 %v1682, %v1680
      %v1766 = vpack.c.bf16 %v1686, %v1684
      %v1767 = vpack.c.bf16 %v1690, %v1688
      %v1768 = vpack.c.bf16 %v1694, %v1692
      %v1769 = vpack.c.bf16 %v1698, %v1696
      %v1770 = vpack.c.bf16 %v1702, %v1700
      %v1771 = vpack.c.bf16 %v1706, %v1704
      %v1772 = vpack.c.bf16 %v1710, %v1708
      %v1773 = vpack.c.bf16 %v1714, %v1712
      %v1774 = vpack.c.bf16 %v1718, %v1716
      %v1775 = vpack.c.bf16 %v1722, %v1720
      %v1776 = vpack.c.bf16 %v1726, %v1724
      %v1777 = vpack.c.bf16 %v1730, %v1728
      %v1778 = vpack.c.bf16 %v1734, %v1732
      %v1779 = vpack.c.bf16 %v1738, %v1736
      %v1780 = vpack.c.bf16 %v1742, %v1740
      %v1781 = vpack.c.bf16 %v1746, %v1744
      %v1782 = vpack.c.bf16 %v1750, %v1748
      %v1815 = vunpack.c.l.b16 %v1751
      %v1816 = vunpack.c.h.b16 %v1751
      %v1817 = vunpack.c.l.b16 %v1752
      %v1818 = vunpack.c.h.b16 %v1752
      %v1819 = vunpack.c.l.b16 %v1753
      %v1820 = vunpack.c.h.b16 %v1753
      %v1821 = vunpack.c.l.b16 %v1754
      %v1822 = vunpack.c.h.b16 %v1754
      %v1823 = vunpack.c.l.b16 %v1755
      %v1824 = vunpack.c.h.b16 %v1755
      %v1825 = vunpack.c.l.b16 %v1756
      %v1826 = vunpack.c.h.b16 %v1756
      %v1827 = vunpack.c.l.b16 %v1757
      %v1828 = vunpack.c.h.b16 %v1757
      %v1829 = vunpack.c.l.b16 %v1758
      %v1830 = vunpack.c.h.b16 %v1758
      %v1831 = vunpack.c.l.b16 %v1759
      %v1832 = vunpack.c.h.b16 %v1759
      %v1833 = vunpack.c.l.b16 %v1760
      %v1834 = vunpack.c.h.b16 %v1760
      %v1835 = vunpack.c.l.b16 %v1761
      %v1836 = vunpack.c.h.b16 %v1761
      %v1837 = vunpack.c.l.b16 %v1762
      %v1838 = vunpack.c.h.b16 %v1762
      %v1839 = vunpack.c.l.b16 %v1763
      %v1840 = vunpack.c.h.b16 %v1763
      %v1841 = vunpack.c.l.b16 %v1764
      %v1842 = vunpack.c.h.b16 %v1764
      %v1843 = vunpack.c.l.b16 %v1765
      %v1844 = vunpack.c.h.b16 %v1765
      %v1845 = vunpack.c.l.b16 %v1766
      %v1846 = vunpack.c.h.b16 %v1766
      %v1847 = vunpack.c.l.b16 %v1767
      %v1848 = vunpack.c.h.b16 %v1767
      %v1849 = vunpack.c.l.b16 %v1768
      %v1850 = vunpack.c.h.b16 %v1768
      %v1851 = vunpack.c.l.b16 %v1769
      %v1852 = vunpack.c.h.b16 %v1769
      %v1853 = vunpack.c.l.b16 %v1770
      %v1854 = vunpack.c.h.b16 %v1770
      %v1855 = vunpack.c.l.b16 %v1771
      %v1856 = vunpack.c.h.b16 %v1771
      %v1857 = vunpack.c.l.b16 %v1772
      %v1858 = vunpack.c.h.b16 %v1772
      %v1859 = vunpack.c.l.b16 %v1773
      %v1860 = vunpack.c.h.b16 %v1773
      %v1861 = vunpack.c.l.b16 %v1774
      %v1862 = vunpack.c.h.b16 %v1774
      %v1863 = vunpack.c.l.b16 %v1775
      %v1864 = vunpack.c.h.b16 %v1775
      %v1865 = vunpack.c.l.b16 %v1776
      %v1866 = vunpack.c.h.b16 %v1776
      %v1867 = vunpack.c.l.b16 %v1777
      %v1868 = vunpack.c.h.b16 %v1777
      %v1869 = vunpack.c.l.b16 %v1778
      %v1870 = vunpack.c.h.b16 %v1778
      %v1871 = vunpack.c.l.b16 %v1779
      %v1872 = vunpack.c.h.b16 %v1779
      %v1873 = vunpack.c.l.b16 %v1780
      %v1874 = vunpack.c.h.b16 %v1780
      %v1875 = vunpack.c.l.b16 %v1781
      %v1876 = vunpack.c.h.b16 %v1781
      %v1877 = vunpack.c.l.b16 %v1782
      %v1878 = vunpack.c.h.b16 %v1782
      %v1879 = vpack.c.b16 %v1817, %v1815
      %v1880 = vpack.c.b16 %v1818, %v1816
      %v1881 = vpack.c.b16 %v1821, %v1819
      %v1882 = vpack.c.b16 %v1822, %v1820
      %v1883 = vpack.c.b16 %v1825, %v1823
      %v1884 = vpack.c.b16 %v1826, %v1824
      %v1885 = vpack.c.b16 %v1829, %v1827
      %v1886 = vpack.c.b16 %v1830, %v1828
      %v1887 = vpack.c.b16 %v1833, %v1831
      %v1888 = vpack.c.b16 %v1834, %v1832
      %v1889 = vpack.c.b16 %v1837, %v1835
      %v1890 = vpack.c.b16 %v1838, %v1836
      %v1891 = vpack.c.b16 %v1841, %v1839
      %v1892 = vpack.c.b16 %v1842, %v1840
      %v1893 = vpack.c.b16 %v1845, %v1843
      %v1894 = vpack.c.b16 %v1846, %v1844
      %v1895 = vpack.c.b16 %v1849, %v1847
      %v1896 = vpack.c.b16 %v1850, %v1848
      %v1897 = vpack.c.b16 %v1853, %v1851
      %v1898 = vpack.c.b16 %v1854, %v1852
      %v1899 = vpack.c.b16 %v1857, %v1855
      %v1900 = vpack.c.b16 %v1858, %v1856
      %v1901 = vpack.c.b16 %v1861, %v1859
      %v1902 = vpack.c.b16 %v1862, %v1860
      %v1903 = vpack.c.b16 %v1865, %v1863
      %v1904 = vpack.c.b16 %v1866, %v1864
      %v1905 = vpack.c.b16 %v1869, %v1867
      %v1906 = vpack.c.b16 %v1870, %v1868
      %v1907 = vpack.c.b16 %v1873, %v1871
      %v1908 = vpack.c.b16 %v1874, %v1872
      %v1909 = vpack.c.b16 %v1877, %v1875
      %v1910 = vpack.c.b16 %v1878, %v1876
      %v1975 = vunpack.c.l.b16 %v299
      %v1976 = vunpack.c.l.b16 %v300
      %v1977 = vunpack.c.l.b16 %v301
      %v1978 = vunpack.c.l.b16 %v302
      %v1979 = vunpack.c.l.b16 %v303
      %v1980 = vunpack.c.l.b16 %v304
      %v1981 = vunpack.c.l.b16 %v305
      %v1982 = vunpack.c.l.b16 %v306
      %v1983 = vunpack.c.l.b16 %v307
      %v1984 = vunpack.c.l.b16 %v308
      %v1985 = vunpack.c.l.b16 %v309
      %v1986 = vunpack.c.l.b16 %v310
      %v1987 = vunpack.c.l.b16 %v311
      %v1988 = vunpack.c.l.b16 %v312
      %v1989 = vunpack.c.l.b16 %v313
      %v1990 = vunpack.c.l.b16 %v314
      %v1991 = vunpack.c.l.b16 %v315
      %v1992 = vunpack.c.l.b16 %v316
      %v1993 = vunpack.c.l.b16 %v317
      %v1994 = vunpack.c.l.b16 %v318
      %v1995 = vunpack.c.l.b16 %v319
      %v1996 = vunpack.c.l.b16 %v320
      %v1997 = vunpack.c.l.b16 %v321
      %v1998 = vunpack.c.l.b16 %v322
      %v1999 = vunpack.c.l.b16 %v323
      %v2000 = vunpack.c.l.b16 %v324
      %v2001 = vunpack.c.l.b16 %v325
      %v2002 = vunpack.c.l.b16 %v326
      %v2003 = vunpack.c.l.b16 %v327
      %v2004 = vunpack.c.l.b16 %v328
      %v2005 = vunpack.c.l.b16 %v329
      %v2006 = vunpack.c.l.b16 %v330
      %v2007 = vpack.c.b16 %v1976, %v1975
      %v2008 = vpack.c.b16 %v1978, %v1977
      %v2009 = vpack.c.b16 %v1980, %v1979
      %v2010 = vpack.c.b16 %v1982, %v1981
      %v2011 = vpack.c.b16 %v1984, %v1983
      %v2012 = vpack.c.b16 %v1986, %v1985
      %v2013 = vpack.c.b16 %v1988, %v1987
      %v2014 = vpack.c.b16 %v1990, %v1989
      %v2015 = vpack.c.b16 %v1992, %v1991
      %v2016 = vpack.c.b16 %v1994, %v1993
      %v2017 = vpack.c.b16 %v1996, %v1995
      %v2018 = vpack.c.b16 %v1998, %v1997
      %v2019 = vpack.c.b16 %v2000, %v1999
      %v2020 = vpack.c.b16 %v2002, %v2001
      %v2021 = vpack.c.b16 %v2004, %v2003
      %v2022 = vpack.c.b16 %v2006, %v2005
      %2039 = vmatpush.bf16.msra.mxu0 %v2014
      %2040 = vmatpush.bf16.msra.mxu0 %v2013
      %2041 = vmatpush.bf16.msra.mxu0 %v2012
      %2042 = vmatpush.bf16.msra.mxu0 %v2011
      %2043 = vmatpush.bf16.msra.mxu0 %v2010
      %2044 = vmatpush.bf16.msra.mxu0 %v2009
      %2045 = vmatpush.bf16.msra.mxu0 %v2008
      %2046 = vmatpush.bf16.msra.mxu0 %v2007
      %2047 = vmatmul.bf16.gmra.mxu0 %v1879
      %v2048 = vpop.f32.mrf.mxu0
      %v2049 = vadd.f32 0.0, %v2048
      %v2050 = vpop.f32.mrf.mxu0
      %v2051 = vadd.f32 0.0, %v2050
      %2052 = vmatmul.bf16.gmra.mxu0 %v1881
      %v2053 = vpop.f32.mrf.mxu0
      %v2054 = vadd.f32 0.0, %v2053
      %v2055 = vpop.f32.mrf.mxu0
      %v2056 = vadd.f32 0.0, %v2055
      %2057 = vmatmul.bf16.gmra.mxu0 %v1883
      %v2058 = vpop.f32.mrf.mxu0
      %v2059 = vadd.f32 0.0, %v2058
      %v2060 = vpop.f32.mrf.mxu0
      %v2061 = vadd.f32 0.0, %v2060
      %2062 = vmatmul.bf16.gmra.mxu0 %v1885
      %v2063 = vpop.f32.mrf.mxu0
      %v2064 = vadd.f32 0.0, %v2063
      %v2065 = vpop.f32.mrf.mxu0
      %v2066 = vadd.f32 0.0, %v2065
      %2067 = vmatmul.bf16.gmra.mxu0 %v1887
      %v2068 = vpop.f32.mrf.mxu0
      %v2069 = vadd.f32 0.0, %v2068
      %v2070 = vpop.f32.mrf.mxu0
      %v2071 = vadd.f32 0.0, %v2070
      %2072 = vmatmul.bf16.gmra.mxu0 %v1889
      %v2073 = vpop.f32.mrf.mxu0
      %v2074 = vadd.f32 0.0, %v2073
      %v2075 = vpop.f32.mrf.mxu0
      %v2076 = vadd.f32 0.0, %v2075
      %2077 = vmatmul.bf16.gmra.mxu0 %v1891
      %v2078 = vpop.f32.mrf.mxu0
      %v2079 = vadd.f32 0.0, %v2078
      %v2080 = vpop.f32.mrf.mxu0
      %v2081 = vadd.f32 0.0, %v2080
      %2082 = vmatmul.bf16.gmra.mxu0 %v1893
      %v2083 = vpop.f32.mrf.mxu0
      %v2084 = vadd.f32 0.0, %v2083
      %v2085 = vpop.f32.mrf.mxu0
      %v2086 = vadd.f32 0.0, %v2085
      %2087 = vmatmul.bf16.gmra.mxu0 %v1895
      %v2088 = vpop.f32.mrf.mxu0
      %v2089 = vadd.f32 0.0, %v2088
      %v2090 = vpop.f32.mrf.mxu0
      %v2091 = vadd.f32 0.0, %v2090
      %2092 = vmatmul.bf16.gmra.mxu0 %v1897
      %v2093 = vpop.f32.mrf.mxu0
      %v2094 = vadd.f32 0.0, %v2093
      %v2095 = vpop.f32.mrf.mxu0
      %v2096 = vadd.f32 0.0, %v2095
      %2097 = vmatmul.bf16.gmra.mxu0 %v1899
      %v2098 = vpop.f32.mrf.mxu0
      %v2099 = vadd.f32 0.0, %v2098
      %v2100 = vpop.f32.mrf.mxu0
      %v2101 = vadd.f32 0.0, %v2100
      %2102 = vmatmul.bf16.gmra.mxu0 %v1901
      %v2103 = vpop.f32.mrf.mxu0
      %v2104 = vadd.f32 0.0, %v2103
      %v2105 = vpop.f32.mrf.mxu0
      %v2106 = vadd.f32 0.0, %v2105
      %2107 = vmatmul.bf16.gmra.mxu0 %v1903
      %v2108 = vpop.f32.mrf.mxu0
      %v2109 = vadd.f32 0.0, %v2108
      %v2110 = vpop.f32.mrf.mxu0
      %v2111 = vadd.f32 0.0, %v2110
      %2112 = vmatmul.bf16.gmra.mxu0 %v1905
      %v2113 = vpop.f32.mrf.mxu0
      %v2114 = vadd.f32 0.0, %v2113
      %v2115 = vpop.f32.mrf.mxu0
      %v2116 = vadd.f32 0.0, %v2115
      %2117 = vmatmul.bf16.gmra.mxu0 %v1907
      %v2118 = vpop.f32.mrf.mxu0
      %v2119 = vadd.f32 0.0, %v2118
      %v2120 = vpop.f32.mrf.mxu0
      %v2121 = vadd.f32 0.0, %v2120
      %2122 = vmatmul.bf16.gmra.mxu0 %v1909
      %v2123 = vpop.f32.mrf.mxu0
      %v2124 = vadd.f32 0.0, %v2123
      %v2125 = vpop.f32.mrf.mxu0
      %v2126 = vadd.f32 0.0, %v2125
      %2127 = vdwg.mxu0
      %2128 = vmatpush.bf16.msra.mxu0 %v2022
      %2129 = vmatpush.bf16.msra.mxu0 %v2021
      %2130 = vmatpush.bf16.msra.mxu0 %v2020
      %2131 = vmatpush.bf16.msra.mxu0 %v2019
      %2132 = vmatpush.bf16.msra.mxu0 %v2018
      %2133 = vmatpush.bf16.msra.mxu0 %v2017
      %2134 = vmatpush.bf16.msra.mxu0 %v2016
      %2135 = vmatpush.bf16.msra.mxu0 %v2015
      %2136 = vmatmul.bf16.gmra.mxu0 %v1880
      %v2137 = vpop.f32.mrf.mxu0
      %v2138 = vadd.f32 %v2049, %v2137
      %v2139 = vpop.f32.mrf.mxu0
      %v2140 = vadd.f32 %v2051, %v2139
      %2141 = vmatmul.bf16.gmra.mxu0 %v1882
      %v2142 = vpop.f32.mrf.mxu0
      %v2143 = vadd.f32 %v2054, %v2142
      %v2144 = vpop.f32.mrf.mxu0
      %v2145 = vadd.f32 %v2056, %v2144
      %2146 = vmatmul.bf16.gmra.mxu0 %v1884
      %v2147 = vpop.f32.mrf.mxu0
      %v2148 = vadd.f32 %v2059, %v2147
      %v2149 = vpop.f32.mrf.mxu0
      %v2150 = vadd.f32 %v2061, %v2149
      %2151 = vmatmul.bf16.gmra.mxu0 %v1886
      %v2152 = vpop.f32.mrf.mxu0
      %v2153 = vadd.f32 %v2064, %v2152
      %v2154 = vpop.f32.mrf.mxu0
      %v2155 = vadd.f32 %v2066, %v2154
      %2156 = vmatmul.bf16.gmra.mxu0 %v1888
      %v2157 = vpop.f32.mrf.mxu0
      %v2158 = vadd.f32 %v2069, %v2157
      %v2159 = vpop.f32.mrf.mxu0
      %v2160 = vadd.f32 %v2071, %v2159
      %2161 = vmatmul.bf16.gmra.mxu0 %v1890
      %v2162 = vpop.f32.mrf.mxu0
      %v2163 = vadd.f32 %v2074, %v2162
      %v2164 = vpop.f32.mrf.mxu0
      %v2165 = vadd.f32 %v2076, %v2164
      %2166 = vmatmul.bf16.gmra.mxu0 %v1892
      %v2167 = vpop.f32.mrf.mxu0
      %v2168 = vadd.f32 %v2079, %v2167
      %v2169 = vpop.f32.mrf.mxu0
      %v2170 = vadd.f32 %v2081, %v2169
      %2171 = vmatmul.bf16.gmra.mxu0 %v1894
      %v2172 = vpop.f32.mrf.mxu0
      %v2173 = vadd.f32 %v2084, %v2172
      %v2174 = vpop.f32.mrf.mxu0
      %v2175 = vadd.f32 %v2086, %v2174
      %2176 = vmatmul.bf16.gmra.mxu0 %v1896
      %v2177 = vpop.f32.mrf.mxu0
      %v2178 = vadd.f32 %v2089, %v2177
      %v2179 = vpop.f32.mrf.mxu0
      %v2180 = vadd.f32 %v2091, %v2179
      %2181 = vmatmul.bf16.gmra.mxu0 %v1898
      %v2182 = vpop.f32.mrf.mxu0
      %v2183 = vadd.f32 %v2094, %v2182
      %v2184 = vpop.f32.mrf.mxu0
      %v2185 = vadd.f32 %v2096, %v2184
      %2186 = vmatmul.bf16.gmra.mxu0 %v1900
      %v2187 = vpop.f32.mrf.mxu0
      %v2188 = vadd.f32 %v2099, %v2187
      %v2189 = vpop.f32.mrf.mxu0
      %v2190 = vadd.f32 %v2101, %v2189
      %2191 = vmatmul.bf16.gmra.mxu0 %v1902
      %v2192 = vpop.f32.mrf.mxu0
      %v2193 = vadd.f32 %v2104, %v2192
      %v2194 = vpop.f32.mrf.mxu0
      %v2195 = vadd.f32 %v2106, %v2194
      %2196 = vmatmul.bf16.gmra.mxu0 %v1904
      %v2197 = vpop.f32.mrf.mxu0
      %v2198 = vadd.f32 %v2109, %v2197
      %v2199 = vpop.f32.mrf.mxu0
      %v2200 = vadd.f32 %v2111, %v2199
      %2201 = vmatmul.bf16.gmra.mxu0 %v1906
      %v2202 = vpop.f32.mrf.mxu0
      %v2203 = vadd.f32 %v2114, %v2202
      %v2204 = vpop.f32.mrf.mxu0
      %v2205 = vadd.f32 %v2116, %v2204
      %2206 = vmatmul.bf16.gmra.mxu0 %v1908
      %v2207 = vpop.f32.mrf.mxu0
      %v2208 = vadd.f32 %v2119, %v2207
      %v2209 = vpop.f32.mrf.mxu0
      %v2210 = vadd.f32 %v2121, %v2209
      %2211 = vmatmul.bf16.gmra.mxu0 %v1910
      %v2212 = vpop.f32.mrf.mxu0
      %v2213 = vadd.f32 %v2124, %v2212
      %v2214 = vpop.f32.mrf.mxu0
      %v2215 = vadd.f32 %v2126, %v2214
      %2216 = vdwg.mxu0
      %v2217 = vpack.c.bf16 %v645, %v645
      %v2218 = vpack.c.bf16 %v647, %v647
      %v2219 = vpack.c.bf16 %v650, %v650
      %v2220 = vpack.c.bf16 %v652, %v652
      %v2221 = vpack.c.bf16 %v655, %v655
      %v2222 = vpack.c.bf16 %v657, %v657
      %v2223 = vpack.c.bf16 %v660, %v660
      %v2224 = vpack.c.bf16 %v662, %v662
      %v2225 = vpack.c.bf16 %v665, %v665
      %v2226 = vpack.c.bf16 %v667, %v667
      %v2227 = vpack.c.bf16 %v670, %v670
      %v2228 = vpack.c.bf16 %v672, %v672
      %v2229 = vpack.c.bf16 %v675, %v675
      %v2230 = vpack.c.bf16 %v677, %v677
      %v2231 = vpack.c.bf16 %v680, %v680
      %v2232 = vpack.c.bf16 %v682, %v682
      %v2233 = vpack.c.bf16 %v685, %v685
      %v2234 = vpack.c.bf16 %v687, %v687
      %v2235 = vpack.c.bf16 %v690, %v690
      %v2236 = vpack.c.bf16 %v692, %v692
      %v2237 = vpack.c.bf16 %v695, %v695
      %v2238 = vpack.c.bf16 %v697, %v697
      %v2239 = vpack.c.bf16 %v700, %v700
      %v2240 = vpack.c.bf16 %v702, %v702
      %v2241 = vpack.c.bf16 %v705, %v705
      %v2242 = vpack.c.bf16 %v707, %v707
      %v2243 = vpack.c.bf16 %v710, %v710
      %v2244 = vpack.c.bf16 %v712, %v712
      %v2245 = vpack.c.bf16 %v715, %v715
      %v2246 = vpack.c.bf16 %v717, %v717
      %v2247 = vpack.c.bf16 %v720, %v720
      %v2248 = vpack.c.bf16 %v722, %v722
      %v2281 = vunpack.c.l.b16 %v2217
      %v2282 = vunpack.c.l.b16 %v2218
      %v2283 = vunpack.c.l.b16 %v2219
      %v2284 = vunpack.c.l.b16 %v2220
      %v2285 = vunpack.c.l.b16 %v2221
      %v2286 = vunpack.c.l.b16 %v2222
      %v2287 = vunpack.c.l.b16 %v2223
      %v2288 = vunpack.c.l.b16 %v2224
      %v2289 = vunpack.c.l.b16 %v2225
      %v2290 = vunpack.c.l.b16 %v2226
      %v2291 = vunpack.c.l.b16 %v2227
      %v2292 = vunpack.c.l.b16 %v2228
      %v2293 = vunpack.c.l.b16 %v2229
      %v2294 = vunpack.c.l.b16 %v2230
      %v2295 = vunpack.c.l.b16 %v2231
      %v2296 = vunpack.c.l.b16 %v2232
      %v2297 = vunpack.c.l.b16 %v2233
      %v2298 = vunpack.c.l.b16 %v2234
      %v2299 = vunpack.c.l.b16 %v2235
      %v2300 = vunpack.c.l.b16 %v2236
      %v2301 = vunpack.c.l.b16 %v2237
      %v2302 = vunpack.c.l.b16 %v2238
      %v2303 = vunpack.c.l.b16 %v2239
      %v2304 = vunpack.c.l.b16 %v2240
      %v2305 = vunpack.c.l.b16 %v2241
      %v2306 = vunpack.c.l.b16 %v2242
      %v2307 = vunpack.c.l.b16 %v2243
      %v2308 = vunpack.c.l.b16 %v2244
      %v2309 = vunpack.c.l.b16 %v2245
      %v2310 = vunpack.c.l.b16 %v2246
      %v2311 = vunpack.c.l.b16 %v2247
      %v2312 = vunpack.c.l.b16 %v2248
      %v2313 = vpack.c.b16 %v2282, %v2281
      %v2314 = vpack.c.b16 %v2284, %v2283
      %v2315 = vpack.c.b16 %v2286, %v2285
      %v2316 = vpack.c.b16 %v2288, %v2287
      %v2317 = vpack.c.b16 %v2290, %v2289
      %v2318 = vpack.c.b16 %v2292, %v2291
      %v2319 = vpack.c.b16 %v2294, %v2293
      %v2320 = vpack.c.b16 %v2296, %v2295
      %v2321 = vpack.c.b16 %v2298, %v2297
      %v2322 = vpack.c.b16 %v2300, %v2299
      %v2323 = vpack.c.b16 %v2302, %v2301
      %v2324 = vpack.c.b16 %v2304, %v2303
      %v2325 = vpack.c.b16 %v2306, %v2305
      %v2326 = vpack.c.b16 %v2308, %v2307
      %v2327 = vpack.c.b16 %v2310, %v2309
      %v2328 = vpack.c.b16 %v2312, %v2311
      %v2345 = vunpack.c.l.bf16 %v2313
      %v2346 = vunpack.c.h.bf16 %v2313
      %v2347 = vunpack.c.l.bf16 %v2314
      %v2348 = vunpack.c.h.bf16 %v2314
      %v2349 = vunpack.c.l.bf16 %v2315
      %v2350 = vunpack.c.h.bf16 %v2315
      %v2351 = vunpack.c.l.bf16 %v2316
      %v2352 = vunpack.c.h.bf16 %v2316
      %v2353 = vunpack.c.l.bf16 %v2317
      %v2354 = vunpack.c.h.bf16 %v2317
      %v2355 = vunpack.c.l.bf16 %v2318
      %v2356 = vunpack.c.h.bf16 %v2318
      %v2357 = vunpack.c.l.bf16 %v2319
      %v2358 = vunpack.c.h.bf16 %v2319
      %v2359 = vunpack.c.l.bf16 %v2320
      %v2360 = vunpack.c.h.bf16 %v2320
      %v2361 = vunpack.c.l.bf16 %v2321
      %v2362 = vunpack.c.h.bf16 %v2321
      %v2363 = vunpack.c.l.bf16 %v2322
      %v2364 = vunpack.c.h.bf16 %v2322
      %v2365 = vunpack.c.l.bf16 %v2323
      %v2366 = vunpack.c.h.bf16 %v2323
      %v2367 = vunpack.c.l.bf16 %v2324
      %v2368 = vunpack.c.h.bf16 %v2324
      %v2369 = vunpack.c.l.bf16 %v2325
      %v2370 = vunpack.c.h.bf16 %v2325
      %v2371 = vunpack.c.l.bf16 %v2326
      %v2372 = vunpack.c.h.bf16 %v2326
      %v2373 = vunpack.c.l.bf16 %v2327
      %v2374 = vunpack.c.h.bf16 %v2327
      %v2375 = vunpack.c.l.bf16 %v2328
      %v2376 = vunpack.c.h.bf16 %v2328
      %v2377 = vunpack.c.l.bf16 %v299
      %v2378 = vunpack.c.l.bf16 %v300
      %v2379 = vunpack.c.l.bf16 %v301
      %v2380 = vunpack.c.l.bf16 %v302
      %v2381 = vunpack.c.l.bf16 %v303
      %v2382 = vunpack.c.l.bf16 %v304
      %v2383 = vunpack.c.l.bf16 %v305
      %v2384 = vunpack.c.l.bf16 %v306
      %v2385 = vunpack.c.l.bf16 %v307
      %v2386 = vunpack.c.l.bf16 %v308
      %v2387 = vunpack.c.l.bf16 %v309
      %v2388 = vunpack.c.l.bf16 %v310
      %v2389 = vunpack.c.l.bf16 %v311
      %v2390 = vunpack.c.l.bf16 %v312
      %v2391 = vunpack.c.l.bf16 %v313
      %v2392 = vunpack.c.l.bf16 %v314
      %v2393 = vunpack.c.l.bf16 %v315
      %v2394 = vunpack.c.l.bf16 %v316
      %v2395 = vunpack.c.l.bf16 %v317
      %v2396 = vunpack.c.l.bf16 %v318
      %v2397 = vunpack.c.l.bf16 %v319
      %v2398 = vunpack.c.l.bf16 %v320
      %v2399 = vunpack.c.l.bf16 %v321
      %v2400 = vunpack.c.l.bf16 %v322
      %v2401 = vunpack.c.l.bf16 %v323
      %v2402 = vunpack.c.l.bf16 %v324
      %v2403 = vunpack.c.l.bf16 %v325
      %v2404 = vunpack.c.l.bf16 %v326
      %v2405 = vunpack.c.l.bf16 %v327
      %v2406 = vunpack.c.l.bf16 %v328
      %v2407 = vunpack.c.l.bf16 %v329
      %v2408 = vunpack.c.l.bf16 %v330
      %v2409 = vmul.f32 %v2345, %v2377
      %v2410 = vmul.f32 %v2346, %v2378
      %v2411 = vmul.f32 %v2345, %v2379
      %v2412 = vmul.f32 %v2346, %v2380
      %v2413 = vmul.f32 %v2345, %v2381
      %v2414 = vmul.f32 %v2346, %v2382
      %v2415 = vmul.f32 %v2345, %v2383
      %v2416 = vmul.f32 %v2346, %v2384
      %v2417 = vmul.f32 %v2345, %v2385
      %v2418 = vmul.f32 %v2346, %v2386
      %v2419 = vmul.f32 %v2345, %v2387
      %v2420 = vmul.f32 %v2346, %v2388
      %v2421 = vmul.f32 %v2345, %v2389
      %v2422 = vmul.f32 %v2346, %v2390
      %v2423 = vmul.f32 %v2345, %v2391
      %v2424 = vmul.f32 %v2346, %v2392
      %v2425 = vmul.f32 %v2345, %v2393
      %v2426 = vmul.f32 %v2346, %v2394
      %v2427 = vmul.f32 %v2345, %v2395
      %v2428 = vmul.f32 %v2346, %v2396
      %v2429 = vmul.f32 %v2345, %v2397
      %v2430 = vmul.f32 %v2346, %v2398
      %v2431 = vmul.f32 %v2345, %v2399
      %v2432 = vmul.f32 %v2346, %v2400
      %v2433 = vmul.f32 %v2345, %v2401
      %v2434 = vmul.f32 %v2346, %v2402
      %v2435 = vmul.f32 %v2345, %v2403
      %v2436 = vmul.f32 %v2346, %v2404
      %v2437 = vmul.f32 %v2345, %v2405
      %v2438 = vmul.f32 %v2346, %v2406
      %v2439 = vmul.f32 %v2345, %v2407
      %v2440 = vmul.f32 %v2346, %v2408
      %v2441 = vmul.f32 %v2347, %v2377
      %v2442 = vmul.f32 %v2348, %v2378
      %v2443 = vmul.f32 %v2347, %v2379
      %v2444 = vmul.f32 %v2348, %v2380
      %v2445 = vmul.f32 %v2347, %v2381
      %v2446 = vmul.f32 %v2348, %v2382
      %v2447 = vmul.f32 %v2347, %v2383
      %v2448 = vmul.f32 %v2348, %v2384
      %v2449 = vmul.f32 %v2347, %v2385
      %v2450 = vmul.f32 %v2348, %v2386
      %v2451 = vmul.f32 %v2347, %v2387
      %v2452 = vmul.f32 %v2348, %v2388
      %v2453 = vmul.f32 %v2347, %v2389
      %v2454 = vmul.f32 %v2348, %v2390
      %v2455 = vmul.f32 %v2347, %v2391
      %v2456 = vmul.f32 %v2348, %v2392
      %v2457 = vmul.f32 %v2347, %v2393
      %v2458 = vmul.f32 %v2348, %v2394
      %v2459 = vmul.f32 %v2347, %v2395
      %v2460 = vmul.f32 %v2348, %v2396
      %v2461 = vmul.f32 %v2347, %v2397
      %v2462 = vmul.f32 %v2348, %v2398
      %v2463 = vmul.f32 %v2347, %v2399
      %v2464 = vmul.f32 %v2348, %v2400
      %v2465 = vmul.f32 %v2347, %v2401
      %v2466 = vmul.f32 %v2348, %v2402
      %v2467 = vmul.f32 %v2347, %v2403
      %v2468 = vmul.f32 %v2348, %v2404
      %v2469 = vmul.f32 %v2347, %v2405
      %v2470 = vmul.f32 %v2348, %v2406
      %v2471 = vmul.f32 %v2347, %v2407
      %v2472 = vmul.f32 %v2348, %v2408
      %v2473 = vmul.f32 %v2349, %v2377
      %v2474 = vmul.f32 %v2350, %v2378
      %v2475 = vmul.f32 %v2349, %v2379
      %v2476 = vmul.f32 %v2350, %v2380
      %v2477 = vmul.f32 %v2349, %v2381
      %v2478 = vmul.f32 %v2350, %v2382
      %v2479 = vmul.f32 %v2349, %v2383
      %v2480 = vmul.f32 %v2350, %v2384
      %v2481 = vmul.f32 %v2349, %v2385
      %v2482 = vmul.f32 %v2350, %v2386
      %v2483 = vmul.f32 %v2349, %v2387
      %v2484 = vmul.f32 %v2350, %v2388
      %v2485 = vmul.f32 %v2349, %v2389
      %v2486 = vmul.f32 %v2350, %v2390
      %v2487 = vmul.f32 %v2349, %v2391
      %v2488 = vmul.f32 %v2350, %v2392
      %v2489 = vmul.f32 %v2349, %v2393
      %v2490 = vmul.f32 %v2350, %v2394
      %v2491 = vmul.f32 %v2349, %v2395
      %v2492 = vmul.f32 %v2350, %v2396
      %v2493 = vmul.f32 %v2349, %v2397
      %v2494 = vmul.f32 %v2350, %v2398
      %v2495 = vmul.f32 %v2349, %v2399
      %v2496 = vmul.f32 %v2350, %v2400
      %v2497 = vmul.f32 %v2349, %v2401
      %v2498 = vmul.f32 %v2350, %v2402
      %v2499 = vmul.f32 %v2349, %v2403
      %v2500 = vmul.f32 %v2350, %v2404
      %v2501 = vmul.f32 %v2349, %v2405
      %v2502 = vmul.f32 %v2350, %v2406
      %v2503 = vmul.f32 %v2349, %v2407
      %v2504 = vmul.f32 %v2350, %v2408
      %v2505 = vmul.f32 %v2351, %v2377
      %v2506 = vmul.f32 %v2352, %v2378
      %v2507 = vmul.f32 %v2351, %v2379
      %v2508 = vmul.f32 %v2352, %v2380
      %v2509 = vmul.f32 %v2351, %v2381
      %v2510 = vmul.f32 %v2352, %v2382
      %v2511 = vmul.f32 %v2351, %v2383
      %v2512 = vmul.f32 %v2352, %v2384
      %v2513 = vmul.f32 %v2351, %v2385
      %v2514 = vmul.f32 %v2352, %v2386
      %v2515 = vmul.f32 %v2351, %v2387
      %v2516 = vmul.f32 %v2352, %v2388
      %v2517 = vmul.f32 %v2351, %v2389
      %v2518 = vmul.f32 %v2352, %v2390
      %v2519 = vmul.f32 %v2351, %v2391
      %v2520 = vmul.f32 %v2352, %v2392
      %v2521 = vmul.f32 %v2351, %v2393
      %v2522 = vmul.f32 %v2352, %v2394
      %v2523 = vmul.f32 %v2351, %v2395
      %v2524 = vmul.f32 %v2352, %v2396
      %v2525 = vmul.f32 %v2351, %v2397
      %v2526 = vmul.f32 %v2352, %v2398
      %v2527 = vmul.f32 %v2351, %v2399
      %v2528 = vmul.f32 %v2352, %v2400
      %v2529 = vmul.f32 %v2351, %v2401
      %v2530 = vmul.f32 %v2352, %v2402
      %v2531 = vmul.f32 %v2351, %v2403
      %v2532 = vmul.f32 %v2352, %v2404
      %v2533 = vmul.f32 %v2351, %v2405
      %v2534 = vmul.f32 %v2352, %v2406
      %v2535 = vmul.f32 %v2351, %v2407
      %v2536 = vmul.f32 %v2352, %v2408
      %v2537 = vmul.f32 %v2353, %v2377
      %v2538 = vmul.f32 %v2354, %v2378
      %v2539 = vmul.f32 %v2353, %v2379
      %v2540 = vmul.f32 %v2354, %v2380
      %v2541 = vmul.f32 %v2353, %v2381
      %v2542 = vmul.f32 %v2354, %v2382
      %v2543 = vmul.f32 %v2353, %v2383
      %v2544 = vmul.f32 %v2354, %v2384
      %v2545 = vmul.f32 %v2353, %v2385
      %v2546 = vmul.f32 %v2354, %v2386
      %v2547 = vmul.f32 %v2353, %v2387
      %v2548 = vmul.f32 %v2354, %v2388
      %v2549 = vmul.f32 %v2353, %v2389
      %v2550 = vmul.f32 %v2354, %v2390
      %v2551 = vmul.f32 %v2353, %v2391
      %v2552 = vmul.f32 %v2354, %v2392
      %v2553 = vmul.f32 %v2353, %v2393
      %v2554 = vmul.f32 %v2354, %v2394
      %v2555 = vmul.f32 %v2353, %v2395
      %v2556 = vmul.f32 %v2354, %v2396
      %v2557 = vmul.f32 %v2353, %v2397
      %v2558 = vmul.f32 %v2354, %v2398
      %v2559 = vmul.f32 %v2353, %v2399
      %v2560 = vmul.f32 %v2354, %v2400
      %v2561 = vmul.f32 %v2353, %v2401
      %v2562 = vmul.f32 %v2354, %v2402
      %v2563 = vmul.f32 %v2353, %v2403
      %v2564 = vmul.f32 %v2354, %v2404
      %v2565 = vmul.f32 %v2353, %v2405
      %v2566 = vmul.f32 %v2354, %v2406
      %v2567 = vmul.f32 %v2353, %v2407
      %v2568 = vmul.f32 %v2354, %v2408
      %v2569 = vmul.f32 %v2355, %v2377
      %v2570 = vmul.f32 %v2356, %v2378
      %v2571 = vmul.f32 %v2355, %v2379
      %v2572 = vmul.f32 %v2356, %v2380
      %v2573 = vmul.f32 %v2355, %v2381
      %v2574 = vmul.f32 %v2356, %v2382
      %v2575 = vmul.f32 %v2355, %v2383
      %v2576 = vmul.f32 %v2356, %v2384
      %v2577 = vmul.f32 %v2355, %v2385
      %v2578 = vmul.f32 %v2356, %v2386
      %v2579 = vmul.f32 %v2355, %v2387
      %v2580 = vmul.f32 %v2356, %v2388
      %v2581 = vmul.f32 %v2355, %v2389
      %v2582 = vmul.f32 %v2356, %v2390
      %v2583 = vmul.f32 %v2355, %v2391
      %v2584 = vmul.f32 %v2356, %v2392
      %v2585 = vmul.f32 %v2355, %v2393
      %v2586 = vmul.f32 %v2356, %v2394
      %v2587 = vmul.f32 %v2355, %v2395
      %v2588 = vmul.f32 %v2356, %v2396
      %v2589 = vmul.f32 %v2355, %v2397
      %v2590 = vmul.f32 %v2356, %v2398
      %v2591 = vmul.f32 %v2355, %v2399
      %v2592 = vmul.f32 %v2356, %v2400
      %v2593 = vmul.f32 %v2355, %v2401
      %v2594 = vmul.f32 %v2356, %v2402
      %v2595 = vmul.f32 %v2355, %v2403
      %v2596 = vmul.f32 %v2356, %v2404
      %v2597 = vmul.f32 %v2355, %v2405
      %v2598 = vmul.f32 %v2356, %v2406
      %v2599 = vmul.f32 %v2355, %v2407
      %v2600 = vmul.f32 %v2356, %v2408
      %v2601 = vmul.f32 %v2357, %v2377
      %v2602 = vmul.f32 %v2358, %v2378
      %v2603 = vmul.f32 %v2357, %v2379
      %v2604 = vmul.f32 %v2358, %v2380
      %v2605 = vmul.f32 %v2357, %v2381
      %v2606 = vmul.f32 %v2358, %v2382
      %v2607 = vmul.f32 %v2357, %v2383
      %v2608 = vmul.f32 %v2358, %v2384
      %v2609 = vmul.f32 %v2357, %v2385
      %v2610 = vmul.f32 %v2358, %v2386
      %v2611 = vmul.f32 %v2357, %v2387
      %v2612 = vmul.f32 %v2358, %v2388
      %v2613 = vmul.f32 %v2357, %v2389
      %v2614 = vmul.f32 %v2358, %v2390
      %v2615 = vmul.f32 %v2357, %v2391
      %v2616 = vmul.f32 %v2358, %v2392
      %v2617 = vmul.f32 %v2357, %v2393
      %v2618 = vmul.f32 %v2358, %v2394
      %v2619 = vmul.f32 %v2357, %v2395
      %v2620 = vmul.f32 %v2358, %v2396
      %v2621 = vmul.f32 %v2357, %v2397
      %v2622 = vmul.f32 %v2358, %v2398
      %v2623 = vmul.f32 %v2357, %v2399
      %v2624 = vmul.f32 %v2358, %v2400
      %v2625 = vmul.f32 %v2357, %v2401
      %v2626 = vmul.f32 %v2358, %v2402
      %v2627 = vmul.f32 %v2357, %v2403
      %v2628 = vmul.f32 %v2358, %v2404
      %v2629 = vmul.f32 %v2357, %v2405
      %v2630 = vmul.f32 %v2358, %v2406
      %v2631 = vmul.f32 %v2357, %v2407
      %v2632 = vmul.f32 %v2358, %v2408
      %v2633 = vmul.f32 %v2359, %v2377
      %v2634 = vmul.f32 %v2360, %v2378
      %v2635 = vmul.f32 %v2359, %v2379
      %v2636 = vmul.f32 %v2360, %v2380
      %v2637 = vmul.f32 %v2359, %v2381
      %v2638 = vmul.f32 %v2360, %v2382
      %v2639 = vmul.f32 %v2359, %v2383
      %v2640 = vmul.f32 %v2360, %v2384
      %v2641 = vmul.f32 %v2359, %v2385
      %v2642 = vmul.f32 %v2360, %v2386
      %v2643 = vmul.f32 %v2359, %v2387
      %v2644 = vmul.f32 %v2360, %v2388
      %v2645 = vmul.f32 %v2359, %v2389
      %v2646 = vmul.f32 %v2360, %v2390
      %v2647 = vmul.f32 %v2359, %v2391
      %v2648 = vmul.f32 %v2360, %v2392
      %v2649 = vmul.f32 %v2359, %v2393
      %v2650 = vmul.f32 %v2360, %v2394
      %v2651 = vmul.f32 %v2359, %v2395
      %v2652 = vmul.f32 %v2360, %v2396
      %v2653 = vmul.f32 %v2359, %v2397
      %v2654 = vmul.f32 %v2360, %v2398
      %v2655 = vmul.f32 %v2359, %v2399
      %v2656 = vmul.f32 %v2360, %v2400
      %v2657 = vmul.f32 %v2359, %v2401
      %v2658 = vmul.f32 %v2360, %v2402
      %v2659 = vmul.f32 %v2359, %v2403
      %v2660 = vmul.f32 %v2360, %v2404
      %v2661 = vmul.f32 %v2359, %v2405
      %v2662 = vmul.f32 %v2360, %v2406
      %v2663 = vmul.f32 %v2359, %v2407
      %v2664 = vmul.f32 %v2360, %v2408
      %v2665 = vmul.f32 %v2361, %v2377
      %v2666 = vmul.f32 %v2362, %v2378
      %v2667 = vmul.f32 %v2361, %v2379
      %v2668 = vmul.f32 %v2362, %v2380
      %v2669 = vmul.f32 %v2361, %v2381
      %v2670 = vmul.f32 %v2362, %v2382
      %v2671 = vmul.f32 %v2361, %v2383
      %v2672 = vmul.f32 %v2362, %v2384
      %v2673 = vmul.f32 %v2361, %v2385
      %v2674 = vmul.f32 %v2362, %v2386
      %v2675 = vmul.f32 %v2361, %v2387
      %v2676 = vmul.f32 %v2362, %v2388
      %v2677 = vmul.f32 %v2361, %v2389
      %v2678 = vmul.f32 %v2362, %v2390
      %v2679 = vmul.f32 %v2361, %v2391
      %v2680 = vmul.f32 %v2362, %v2392
      %v2681 = vmul.f32 %v2361, %v2393
      %v2682 = vmul.f32 %v2362, %v2394
      %v2683 = vmul.f32 %v2361, %v2395
      %v2684 = vmul.f32 %v2362, %v2396
      %v2685 = vmul.f32 %v2361, %v2397
      %v2686 = vmul.f32 %v2362, %v2398
      %v2687 = vmul.f32 %v2361, %v2399
      %v2688 = vmul.f32 %v2362, %v2400
      %v2689 = vmul.f32 %v2361, %v2401
      %v2690 = vmul.f32 %v2362, %v2402
      %v2691 = vmul.f32 %v2361, %v2403
      %v2692 = vmul.f32 %v2362, %v2404
      %v2693 = vmul.f32 %v2361, %v2405
      %v2694 = vmul.f32 %v2362, %v2406
      %v2695 = vmul.f32 %v2361, %v2407
      %v2696 = vmul.f32 %v2362, %v2408
      %v2697 = vmul.f32 %v2363, %v2377
      %v2698 = vmul.f32 %v2364, %v2378
      %v2699 = vmul.f32 %v2363, %v2379
      %v2700 = vmul.f32 %v2364, %v2380
      %v2701 = vmul.f32 %v2363, %v2381
      %v2702 = vmul.f32 %v2364, %v2382
      %v2703 = vmul.f32 %v2363, %v2383
      %v2704 = vmul.f32 %v2364, %v2384
      %v2705 = vmul.f32 %v2363, %v2385
      %v2706 = vmul.f32 %v2364, %v2386
      %v2707 = vmul.f32 %v2363, %v2387
      %v2708 = vmul.f32 %v2364, %v2388
      %v2709 = vmul.f32 %v2363, %v2389
      %v2710 = vmul.f32 %v2364, %v2390
      %v2711 = vmul.f32 %v2363, %v2391
      %v2712 = vmul.f32 %v2364, %v2392
      %v2713 = vmul.f32 %v2363, %v2393
      %v2714 = vmul.f32 %v2364, %v2394
      %v2715 = vmul.f32 %v2363, %v2395
      %v2716 = vmul.f32 %v2364, %v2396
      %v2717 = vmul.f32 %v2363, %v2397
      %v2718 = vmul.f32 %v2364, %v2398
      %v2719 = vmul.f32 %v2363, %v2399
      %v2720 = vmul.f32 %v2364, %v2400
      %v2721 = vmul.f32 %v2363, %v2401
      %v2722 = vmul.f32 %v2364, %v2402
      %v2723 = vmul.f32 %v2363, %v2403
      %v2724 = vmul.f32 %v2364, %v2404
      %v2725 = vmul.f32 %v2363, %v2405
      %v2726 = vmul.f32 %v2364, %v2406
      %v2727 = vmul.f32 %v2363, %v2407
      %v2728 = vmul.f32 %v2364, %v2408
      %v2729 = vmul.f32 %v2365, %v2377
      %v2730 = vmul.f32 %v2366, %v2378
      %v2731 = vmul.f32 %v2365, %v2379
      %v2732 = vmul.f32 %v2366, %v2380
      %v2733 = vmul.f32 %v2365, %v2381
      %v2734 = vmul.f32 %v2366, %v2382
      %v2735 = vmul.f32 %v2365, %v2383
      %v2736 = vmul.f32 %v2366, %v2384
      %v2737 = vmul.f32 %v2365, %v2385
      %v2738 = vmul.f32 %v2366, %v2386
      %v2739 = vmul.f32 %v2365, %v2387
      %v2740 = vmul.f32 %v2366, %v2388
      %v2741 = vmul.f32 %v2365, %v2389
      %v2742 = vmul.f32 %v2366, %v2390
      %v2743 = vmul.f32 %v2365, %v2391
      %v2744 = vmul.f32 %v2366, %v2392
      %v2745 = vmul.f32 %v2365, %v2393
      %v2746 = vmul.f32 %v2366, %v2394
      %v2747 = vmul.f32 %v2365, %v2395
      %v2748 = vmul.f32 %v2366, %v2396
      %v2749 = vmul.f32 %v2365, %v2397
      %v2750 = vmul.f32 %v2366, %v2398
      %v2751 = vmul.f32 %v2365, %v2399
      %v2752 = vmul.f32 %v2366, %v2400
      %v2753 = vmul.f32 %v2365, %v2401
      %v2754 = vmul.f32 %v2366, %v2402
      %v2755 = vmul.f32 %v2365, %v2403
      %v2756 = vmul.f32 %v2366, %v2404
      %v2757 = vmul.f32 %v2365, %v2405
      %v2758 = vmul.f32 %v2366, %v2406
      %v2759 = vmul.f32 %v2365, %v2407
      %v2760 = vmul.f32 %v2366, %v2408
      %v2761 = vmul.f32 %v2367, %v2377
      %v2762 = vmul.f32 %v2368, %v2378
      %v2763 = vmul.f32 %v2367, %v2379
      %v2764 = vmul.f32 %v2368, %v2380
      %v2765 = vmul.f32 %v2367, %v2381
      %v2766 = vmul.f32 %v2368, %v2382
      %v2767 = vmul.f32 %v2367, %v2383
      %v2768 = vmul.f32 %v2368, %v2384
      %v2769 = vmul.f32 %v2367, %v2385
      %v2770 = vmul.f32 %v2368, %v2386
      %v2771 = vmul.f32 %v2367, %v2387
      %v2772 = vmul.f32 %v2368, %v2388
      %v2773 = vmul.f32 %v2367, %v2389
      %v2774 = vmul.f32 %v2368, %v2390
      %v2775 = vmul.f32 %v2367, %v2391
      %v2776 = vmul.f32 %v2368, %v2392
      %v2777 = vmul.f32 %v2367, %v2393
      %v2778 = vmul.f32 %v2368, %v2394
      %v2779 = vmul.f32 %v2367, %v2395
      %v2780 = vmul.f32 %v2368, %v2396
      %v2781 = vmul.f32 %v2367, %v2397
      %v2782 = vmul.f32 %v2368, %v2398
      %v2783 = vmul.f32 %v2367, %v2399
      %v2784 = vmul.f32 %v2368, %v2400
      %v2785 = vmul.f32 %v2367, %v2401
      %v2786 = vmul.f32 %v2368, %v2402
      %v2787 = vmul.f32 %v2367, %v2403
      %v2788 = vmul.f32 %v2368, %v2404
      %v2789 = vmul.f32 %v2367, %v2405
      %v2790 = vmul.f32 %v2368, %v2406
      %v2791 = vmul.f32 %v2367, %v2407
      %v2792 = vmul.f32 %v2368, %v2408
      %v2793 = vmul.f32 %v2369, %v2377
      %v2794 = vmul.f32 %v2370, %v2378
      %v2795 = vmul.f32 %v2369, %v2379
      %v2796 = vmul.f32 %v2370, %v2380
      %v2797 = vmul.f32 %v2369, %v2381
      %v2798 = vmul.f32 %v2370, %v2382
      %v2799 = vmul.f32 %v2369, %v2383
      %v2800 = vmul.f32 %v2370, %v2384
      %v2801 = vmul.f32 %v2369, %v2385
      %v2802 = vmul.f32 %v2370, %v2386
      %v2803 = vmul.f32 %v2369, %v2387
      %v2804 = vmul.f32 %v2370, %v2388
      %v2805 = vmul.f32 %v2369, %v2389
      %v2806 = vmul.f32 %v2370, %v2390
      %v2807 = vmul.f32 %v2369, %v2391
      %v2808 = vmul.f32 %v2370, %v2392
      %v2809 = vmul.f32 %v2369, %v2393
      %v2810 = vmul.f32 %v2370, %v2394
      %v2811 = vmul.f32 %v2369, %v2395
      %v2812 = vmul.f32 %v2370, %v2396
      %v2813 = vmul.f32 %v2369, %v2397
      %v2814 = vmul.f32 %v2370, %v2398
      %v2815 = vmul.f32 %v2369, %v2399
      %v2816 = vmul.f32 %v2370, %v2400
      %v2817 = vmul.f32 %v2369, %v2401
      %v2818 = vmul.f32 %v2370, %v2402
      %v2819 = vmul.f32 %v2369, %v2403
      %v2820 = vmul.f32 %v2370, %v2404
      %v2821 = vmul.f32 %v2369, %v2405
      %v2822 = vmul.f32 %v2370, %v2406
      %v2823 = vmul.f32 %v2369, %v2407
      %v2824 = vmul.f32 %v2370, %v2408
      %v2825 = vmul.f32 %v2371, %v2377
      %v2826 = vmul.f32 %v2372, %v2378
      %v2827 = vmul.f32 %v2371, %v2379
      %v2828 = vmul.f32 %v2372, %v2380
      %v2829 = vmul.f32 %v2371, %v2381
      %v2830 = vmul.f32 %v2372, %v2382
      %v2831 = vmul.f32 %v2371, %v2383
      %v2832 = vmul.f32 %v2372, %v2384
      %v2833 = vmul.f32 %v2371, %v2385
      %v2834 = vmul.f32 %v2372, %v2386
      %v2835 = vmul.f32 %v2371, %v2387
      %v2836 = vmul.f32 %v2372, %v2388
      %v2837 = vmul.f32 %v2371, %v2389
      %v2838 = vmul.f32 %v2372, %v2390
      %v2839 = vmul.f32 %v2371, %v2391
      %v2840 = vmul.f32 %v2372, %v2392
      %v2841 = vmul.f32 %v2371, %v2393
      %v2842 = vmul.f32 %v2372, %v2394
      %v2843 = vmul.f32 %v2371, %v2395
      %v2844 = vmul.f32 %v2372, %v2396
      %v2845 = vmul.f32 %v2371, %v2397
      %v2846 = vmul.f32 %v2372, %v2398
      %v2847 = vmul.f32 %v2371, %v2399
      %v2848 = vmul.f32 %v2372, %v2400
      %v2849 = vmul.f32 %v2371, %v2401
      %v2850 = vmul.f32 %v2372, %v2402
      %v2851 = vmul.f32 %v2371, %v2403
      %v2852 = vmul.f32 %v2372, %v2404
      %v2853 = vmul.f32 %v2371, %v2405
      %v2854 = vmul.f32 %v2372, %v2406
      %v2855 = vmul.f32 %v2371, %v2407
      %v2856 = vmul.f32 %v2372, %v2408
      %v2857 = vmul.f32 %v2373, %v2377
      %v2858 = vmul.f32 %v2374, %v2378
      %v2859 = vmul.f32 %v2373, %v2379
      %v2860 = vmul.f32 %v2374, %v2380
      %v2861 = vmul.f32 %v2373, %v2381
      %v2862 = vmul.f32 %v2374, %v2382
      %v2863 = vmul.f32 %v2373, %v2383
      %v2864 = vmul.f32 %v2374, %v2384
      %v2865 = vmul.f32 %v2373, %v2385
      %v2866 = vmul.f32 %v2374, %v2386
      %v2867 = vmul.f32 %v2373, %v2387
      %v2868 = vmul.f32 %v2374, %v2388
      %v2869 = vmul.f32 %v2373, %v2389
      %v2870 = vmul.f32 %v2374, %v2390
      %v2871 = vmul.f32 %v2373, %v2391
      %v2872 = vmul.f32 %v2374, %v2392
      %v2873 = vmul.f32 %v2373, %v2393
      %v2874 = vmul.f32 %v2374, %v2394
      %v2875 = vmul.f32 %v2373, %v2395
      %v2876 = vmul.f32 %v2374, %v2396
      %v2877 = vmul.f32 %v2373, %v2397
      %v2878 = vmul.f32 %v2374, %v2398
      %v2879 = vmul.f32 %v2373, %v2399
      %v2880 = vmul.f32 %v2374, %v2400
      %v2881 = vmul.f32 %v2373, %v2401
      %v2882 = vmul.f32 %v2374, %v2402
      %v2883 = vmul.f32 %v2373, %v2403
      %v2884 = vmul.f32 %v2374, %v2404
      %v2885 = vmul.f32 %v2373, %v2405
      %v2886 = vmul.f32 %v2374, %v2406
      %v2887 = vmul.f32 %v2373, %v2407
      %v2888 = vmul.f32 %v2374, %v2408
      %v2889 = vmul.f32 %v2375, %v2377
      %v2890 = vmul.f32 %v2376, %v2378
      %v2891 = vmul.f32 %v2375, %v2379
      %v2892 = vmul.f32 %v2376, %v2380
      %v2893 = vmul.f32 %v2375, %v2381
      %v2894 = vmul.f32 %v2376, %v2382
      %v2895 = vmul.f32 %v2375, %v2383
      %v2896 = vmul.f32 %v2376, %v2384
      %v2897 = vmul.f32 %v2375, %v2385
      %v2898 = vmul.f32 %v2376, %v2386
      %v2899 = vmul.f32 %v2375, %v2387
      %v2900 = vmul.f32 %v2376, %v2388
      %v2901 = vmul.f32 %v2375, %v2389
      %v2902 = vmul.f32 %v2376, %v2390
      %v2903 = vmul.f32 %v2375, %v2391
      %v2904 = vmul.f32 %v2376, %v2392
      %v2905 = vmul.f32 %v2375, %v2393
      %v2906 = vmul.f32 %v2376, %v2394
      %v2907 = vmul.f32 %v2375, %v2395
      %v2908 = vmul.f32 %v2376, %v2396
      %v2909 = vmul.f32 %v2375, %v2397
      %v2910 = vmul.f32 %v2376, %v2398
      %v2911 = vmul.f32 %v2375, %v2399
      %v2912 = vmul.f32 %v2376, %v2400
      %v2913 = vmul.f32 %v2375, %v2401
      %v2914 = vmul.f32 %v2376, %v2402
      %v2915 = vmul.f32 %v2375, %v2403
      %v2916 = vmul.f32 %v2376, %v2404
      %v2917 = vmul.f32 %v2375, %v2405
      %v2918 = vmul.f32 %v2376, %v2406
      %v2919 = vmul.f32 %v2375, %v2407
      %v2920 = vmul.f32 %v2376, %v2408
      %v2921 = vpack.c.bf16 %v2409, %v2409
      %v2922 = vpack.c.bf16 %v2410, %v2410
      %v2923 = vpack.c.bf16 %v2411, %v2411
      %v2924 = vpack.c.bf16 %v2412, %v2412
      %v2925 = vpack.c.bf16 %v2413, %v2413
      %v2926 = vpack.c.bf16 %v2414, %v2414
      %v2927 = vpack.c.bf16 %v2415, %v2415
      %v2928 = vpack.c.bf16 %v2416, %v2416
      %v2929 = vpack.c.bf16 %v2417, %v2417
      %v2930 = vpack.c.bf16 %v2418, %v2418
      %v2931 = vpack.c.bf16 %v2419, %v2419
      %v2932 = vpack.c.bf16 %v2420, %v2420
      %v2933 = vpack.c.bf16 %v2421, %v2421
      %v2934 = vpack.c.bf16 %v2422, %v2422
      %v2935 = vpack.c.bf16 %v2423, %v2423
      %v2936 = vpack.c.bf16 %v2424, %v2424
      %v2937 = vpack.c.bf16 %v2425, %v2425
      %v2938 = vpack.c.bf16 %v2426, %v2426
      %v2939 = vpack.c.bf16 %v2427, %v2427
      %v2940 = vpack.c.bf16 %v2428, %v2428
      %v2941 = vpack.c.bf16 %v2429, %v2429
      %v2942 = vpack.c.bf16 %v2430, %v2430
      %v2943 = vpack.c.bf16 %v2431, %v2431
      %v2944 = vpack.c.bf16 %v2432, %v2432
      %v2945 = vpack.c.bf16 %v2433, %v2433
      %v2946 = vpack.c.bf16 %v2434, %v2434
      %v2947 = vpack.c.bf16 %v2435, %v2435
      %v2948 = vpack.c.bf16 %v2436, %v2436
      %v2949 = vpack.c.bf16 %v2437, %v2437
      %v2950 = vpack.c.bf16 %v2438, %v2438
      %v2951 = vpack.c.bf16 %v2439, %v2439
      %v2952 = vpack.c.bf16 %v2440, %v2440
      %v2953 = vpack.c.bf16 %v2441, %v2441
      %v2954 = vpack.c.bf16 %v2442, %v2442
      %v2955 = vpack.c.bf16 %v2443, %v2443
      %v2956 = vpack.c.bf16 %v2444, %v2444
      %v2957 = vpack.c.bf16 %v2445, %v2445
      %v2958 = vpack.c.bf16 %v2446, %v2446
      %v2959 = vpack.c.bf16 %v2447, %v2447
      %v2960 = vpack.c.bf16 %v2448, %v2448
      %v2961 = vpack.c.bf16 %v2449, %v2449
      %v2962 = vpack.c.bf16 %v2450, %v2450
      %v2963 = vpack.c.bf16 %v2451, %v2451
      %v2964 = vpack.c.bf16 %v2452, %v2452
      %v2965 = vpack.c.bf16 %v2453, %v2453
      %v2966 = vpack.c.bf16 %v2454, %v2454
      %v2967 = vpack.c.bf16 %v2455, %v2455
      %v2968 = vpack.c.bf16 %v2456, %v2456
      %v2969 = vpack.c.bf16 %v2457, %v2457
      %v2970 = vpack.c.bf16 %v2458, %v2458
      %v2971 = vpack.c.bf16 %v2459, %v2459
      %v2972 = vpack.c.bf16 %v2460, %v2460
      %v2973 = vpack.c.bf16 %v2461, %v2461
      %v2974 = vpack.c.bf16 %v2462, %v2462
      %v2975 = vpack.c.bf16 %v2463, %v2463
      %v2976 = vpack.c.bf16 %v2464, %v2464
      %v2977 = vpack.c.bf16 %v2465, %v2465
      %v2978 = vpack.c.bf16 %v2466, %v2466
      %v2979 = vpack.c.bf16 %v2467, %v2467
      %v2980 = vpack.c.bf16 %v2468, %v2468
      %v2981 = vpack.c.bf16 %v2469, %v2469
      %v2982 = vpack.c.bf16 %v2470, %v2470
      %v2983 = vpack.c.bf16 %v2471, %v2471
      %v2984 = vpack.c.bf16 %v2472, %v2472
      %v2985 = vpack.c.bf16 %v2473, %v2473
      %v2986 = vpack.c.bf16 %v2474, %v2474
      %v2987 = vpack.c.bf16 %v2475, %v2475
      %v2988 = vpack.c.bf16 %v2476, %v2476
      %v2989 = vpack.c.bf16 %v2477, %v2477
      %v2990 = vpack.c.bf16 %v2478, %v2478
      %v2991 = vpack.c.bf16 %v2479, %v2479
      %v2992 = vpack.c.bf16 %v2480, %v2480
      %v2993 = vpack.c.bf16 %v2481, %v2481
      %v2994 = vpack.c.bf16 %v2482, %v2482
      %v2995 = vpack.c.bf16 %v2483, %v2483
      %v2996 = vpack.c.bf16 %v2484, %v2484
      %v2997 = vpack.c.bf16 %v2485, %v2485
      %v2998 = vpack.c.bf16 %v2486, %v2486
      %v2999 = vpack.c.bf16 %v2487, %v2487
      %v3000 = vpack.c.bf16 %v2488, %v2488
      %v3001 = vpack.c.bf16 %v2489, %v2489
      %v3002 = vpack.c.bf16 %v2490, %v2490
      %v3003 = vpack.c.bf16 %v2491, %v2491
      %v3004 = vpack.c.bf16 %v2492, %v2492
      %v3005 = vpack.c.bf16 %v2493, %v2493
      %v3006 = vpack.c.bf16 %v2494, %v2494
      %v3007 = vpack.c.bf16 %v2495, %v2495
      %v3008 = vpack.c.bf16 %v2496, %v2496
      %v3009 = vpack.c.bf16 %v2497, %v2497
      %v3010 = vpack.c.bf16 %v2498, %v2498
      %v3011 = vpack.c.bf16 %v2499, %v2499
      %v3012 = vpack.c.bf16 %v2500, %v2500
      %v3013 = vpack.c.bf16 %v2501, %v2501
      %v3014 = vpack.c.bf16 %v2502, %v2502
      %v3015 = vpack.c.bf16 %v2503, %v2503
      %v3016 = vpack.c.bf16 %v2504, %v2504
      %v3017 = vpack.c.bf16 %v2505, %v2505
      %v3018 = vpack.c.bf16 %v2506, %v2506
      %v3019 = vpack.c.bf16 %v2507, %v2507
      %v3020 = vpack.c.bf16 %v2508, %v2508
      %v3021 = vpack.c.bf16 %v2509, %v2509
      %v3022 = vpack.c.bf16 %v2510, %v2510
      %v3023 = vpack.c.bf16 %v2511, %v2511
      %v3024 = vpack.c.bf16 %v2512, %v2512
      %v3025 = vpack.c.bf16 %v2513, %v2513
      %v3026 = vpack.c.bf16 %v2514, %v2514
      %v3027 = vpack.c.bf16 %v2515, %v2515
      %v3028 = vpack.c.bf16 %v2516, %v2516
      %v3029 = vpack.c.bf16 %v2517, %v2517
      %v3030 = vpack.c.bf16 %v2518, %v2518
      %v3031 = vpack.c.bf16 %v2519, %v2519
      %v3032 = vpack.c.bf16 %v2520, %v2520
      %v3033 = vpack.c.bf16 %v2521, %v2521
      %v3034 = vpack.c.bf16 %v2522, %v2522
      %v3035 = vpack.c.bf16 %v2523, %v2523
      %v3036 = vpack.c.bf16 %v2524, %v2524
      %v3037 = vpack.c.bf16 %v2525, %v2525
      %v3038 = vpack.c.bf16 %v2526, %v2526
      %v3039 = vpack.c.bf16 %v2527, %v2527
      %v3040 = vpack.c.bf16 %v2528, %v2528
      %v3041 = vpack.c.bf16 %v2529, %v2529
      %v3042 = vpack.c.bf16 %v2530, %v2530
      %v3043 = vpack.c.bf16 %v2531, %v2531
      %v3044 = vpack.c.bf16 %v2532, %v2532
      %v3045 = vpack.c.bf16 %v2533, %v2533
      %v3046 = vpack.c.bf16 %v2534, %v2534
      %v3047 = vpack.c.bf16 %v2535, %v2535
      %v3048 = vpack.c.bf16 %v2536, %v2536
      %v3049 = vpack.c.bf16 %v2537, %v2537
      %v3050 = vpack.c.bf16 %v2538, %v2538
      %v3051 = vpack.c.bf16 %v2539, %v2539
      %v3052 = vpack.c.bf16 %v2540, %v2540
      %v3053 = vpack.c.bf16 %v2541, %v2541
      %v3054 = vpack.c.bf16 %v2542, %v2542
      %v3055 = vpack.c.bf16 %v2543, %v2543
      %v3056 = vpack.c.bf16 %v2544, %v2544
      %v3057 = vpack.c.bf16 %v2545, %v2545
      %v3058 = vpack.c.bf16 %v2546, %v2546
      %v3059 = vpack.c.bf16 %v2547, %v2547
      %v3060 = vpack.c.bf16 %v2548, %v2548
      %v3061 = vpack.c.bf16 %v2549, %v2549
      %v3062 = vpack.c.bf16 %v2550, %v2550
      %v3063 = vpack.c.bf16 %v2551, %v2551
      %v3064 = vpack.c.bf16 %v2552, %v2552
      %v3065 = vpack.c.bf16 %v2553, %v2553
      %v3066 = vpack.c.bf16 %v2554, %v2554
      %v3067 = vpack.c.bf16 %v2555, %v2555
      %v3068 = vpack.c.bf16 %v2556, %v2556
      %v3069 = vpack.c.bf16 %v2557, %v2557
      %v3070 = vpack.c.bf16 %v2558, %v2558
      %v3071 = vpack.c.bf16 %v2559, %v2559
      %v3072 = vpack.c.bf16 %v2560, %v2560
      %v3073 = vpack.c.bf16 %v2561, %v2561
      %v3074 = vpack.c.bf16 %v2562, %v2562
      %v3075 = vpack.c.bf16 %v2563, %v2563
      %v3076 = vpack.c.bf16 %v2564, %v2564
      %v3077 = vpack.c.bf16 %v2565, %v2565
      %v3078 = vpack.c.bf16 %v2566, %v2566
      %v3079 = vpack.c.bf16 %v2567, %v2567
      %v3080 = vpack.c.bf16 %v2568, %v2568
      %v3081 = vpack.c.bf16 %v2569, %v2569
      %v3082 = vpack.c.bf16 %v2570, %v2570
      %v3083 = vpack.c.bf16 %v2571, %v2571
      %v3084 = vpack.c.bf16 %v2572, %v2572
      %v3085 = vpack.c.bf16 %v2573, %v2573
      %v3086 = vpack.c.bf16 %v2574, %v2574
      %v3087 = vpack.c.bf16 %v2575, %v2575
      %v3088 = vpack.c.bf16 %v2576, %v2576
      %v3089 = vpack.c.bf16 %v2577, %v2577
      %v3090 = vpack.c.bf16 %v2578, %v2578
      %v3091 = vpack.c.bf16 %v2579, %v2579
      %v3092 = vpack.c.bf16 %v2580, %v2580
      %v3093 = vpack.c.bf16 %v2581, %v2581
      %v3094 = vpack.c.bf16 %v2582, %v2582
      %v3095 = vpack.c.bf16 %v2583, %v2583
      %v3096 = vpack.c.bf16 %v2584, %v2584
      %v3097 = vpack.c.bf16 %v2585, %v2585
      %v3098 = vpack.c.bf16 %v2586, %v2586
      %v3099 = vpack.c.bf16 %v2587, %v2587
      %v3100 = vpack.c.bf16 %v2588, %v2588
      %v3101 = vpack.c.bf16 %v2589, %v2589
      %v3102 = vpack.c.bf16 %v2590, %v2590
      %v3103 = vpack.c.bf16 %v2591, %v2591
      %v3104 = vpack.c.bf16 %v2592, %v2592
      %v3105 = vpack.c.bf16 %v2593, %v2593
      %v3106 = vpack.c.bf16 %v2594, %v2594
      %v3107 = vpack.c.bf16 %v2595, %v2595
      %v3108 = vpack.c.bf16 %v2596, %v2596
      %v3109 = vpack.c.bf16 %v2597, %v2597
      %v3110 = vpack.c.bf16 %v2598, %v2598
      %v3111 = vpack.c.bf16 %v2599, %v2599
      %v3112 = vpack.c.bf16 %v2600, %v2600
      %v3113 = vpack.c.bf16 %v2601, %v2601
      %v3114 = vpack.c.bf16 %v2602, %v2602
      %v3115 = vpack.c.bf16 %v2603, %v2603
      %v3116 = vpack.c.bf16 %v2604, %v2604
      %v3117 = vpack.c.bf16 %v2605, %v2605
      %v3118 = vpack.c.bf16 %v2606, %v2606
      %v3119 = vpack.c.bf16 %v2607, %v2607
      %v3120 = vpack.c.bf16 %v2608, %v2608
      %v3121 = vpack.c.bf16 %v2609, %v2609
      %v3122 = vpack.c.bf16 %v2610, %v2610
      %v3123 = vpack.c.bf16 %v2611, %v2611
      %v3124 = vpack.c.bf16 %v2612, %v2612
      %v3125 = vpack.c.bf16 %v2613, %v2613
      %v3126 = vpack.c.bf16 %v2614, %v2614
      %v3127 = vpack.c.bf16 %v2615, %v2615
      %v3128 = vpack.c.bf16 %v2616, %v2616
      %v3129 = vpack.c.bf16 %v2617, %v2617
      %v3130 = vpack.c.bf16 %v2618, %v2618
      %v3131 = vpack.c.bf16 %v2619, %v2619
      %v3132 = vpack.c.bf16 %v2620, %v2620
      %v3133 = vpack.c.bf16 %v2621, %v2621
      %v3134 = vpack.c.bf16 %v2622, %v2622
      %v3135 = vpack.c.bf16 %v2623, %v2623
      %v3136 = vpack.c.bf16 %v2624, %v2624
      %v3137 = vpack.c.bf16 %v2625, %v2625
      %v3138 = vpack.c.bf16 %v2626, %v2626
      %v3139 = vpack.c.bf16 %v2627, %v2627
      %v3140 = vpack.c.bf16 %v2628, %v2628
      %v3141 = vpack.c.bf16 %v2629, %v2629
      %v3142 = vpack.c.bf16 %v2630, %v2630
      %v3143 = vpack.c.bf16 %v2631, %v2631
      %v3144 = vpack.c.bf16 %v2632, %v2632
      %v3145 = vpack.c.bf16 %v2633, %v2633
      %v3146 = vpack.c.bf16 %v2634, %v2634
      %v3147 = vpack.c.bf16 %v2635, %v2635
      %v3148 = vpack.c.bf16 %v2636, %v2636
      %v3149 = vpack.c.bf16 %v2637, %v2637
      %v3150 = vpack.c.bf16 %v2638, %v2638
      %v3151 = vpack.c.bf16 %v2639, %v2639
      %v3152 = vpack.c.bf16 %v2640, %v2640
      %v3153 = vpack.c.bf16 %v2641, %v2641
      %v3154 = vpack.c.bf16 %v2642, %v2642
      %v3155 = vpack.c.bf16 %v2643, %v2643
      %v3156 = vpack.c.bf16 %v2644, %v2644
      %v3157 = vpack.c.bf16 %v2645, %v2645
      %v3158 = vpack.c.bf16 %v2646, %v2646
      %v3159 = vpack.c.bf16 %v2647, %v2647
      %v3160 = vpack.c.bf16 %v2648, %v2648
      %v3161 = vpack.c.bf16 %v2649, %v2649
      %v3162 = vpack.c.bf16 %v2650, %v2650
      %v3163 = vpack.c.bf16 %v2651, %v2651
      %v3164 = vpack.c.bf16 %v2652, %v2652
      %v3165 = vpack.c.bf16 %v2653, %v2653
      %v3166 = vpack.c.bf16 %v2654, %v2654
      %v3167 = vpack.c.bf16 %v2655, %v2655
      %v3168 = vpack.c.bf16 %v2656, %v2656
      %v3169 = vpack.c.bf16 %v2657, %v2657
      %v3170 = vpack.c.bf16 %v2658, %v2658
      %v3171 = vpack.c.bf16 %v2659, %v2659
      %v3172 = vpack.c.bf16 %v2660, %v2660
      %v3173 = vpack.c.bf16 %v2661, %v2661
      %v3174 = vpack.c.bf16 %v2662, %v2662
      %v3175 = vpack.c.bf16 %v2663, %v2663
      %v3176 = vpack.c.bf16 %v2664, %v2664
      %v3177 = vpack.c.bf16 %v2665, %v2665
      %v3178 = vpack.c.bf16 %v2666, %v2666
      %v3179 = vpack.c.bf16 %v2667, %v2667
      %v3180 = vpack.c.bf16 %v2668, %v2668
      %v3181 = vpack.c.bf16 %v2669, %v2669
      %v3182 = vpack.c.bf16 %v2670, %v2670
      %v3183 = vpack.c.bf16 %v2671, %v2671
      %v3184 = vpack.c.bf16 %v2672, %v2672
      %v3185 = vpack.c.bf16 %v2673, %v2673
      %v3186 = vpack.c.bf16 %v2674, %v2674
      %v3187 = vpack.c.bf16 %v2675, %v2675
      %v3188 = vpack.c.bf16 %v2676, %v2676
      %v3189 = vpack.c.bf16 %v2677, %v2677
      %v3190 = vpack.c.bf16 %v2678, %v2678
      %v3191 = vpack.c.bf16 %v2679, %v2679
      %v3192 = vpack.c.bf16 %v2680, %v2680
      %v3193 = vpack.c.bf16 %v2681, %v2681
      %v3194 = vpack.c.bf16 %v2682, %v2682
      %v3195 = vpack.c.bf16 %v2683, %v2683
      %v3196 = vpack.c.bf16 %v2684, %v2684
      %v3197 = vpack.c.bf16 %v2685, %v2685
      %v3198 = vpack.c.bf16 %v2686, %v2686
      %v3199 = vpack.c.bf16 %v2687, %v2687
      %v3200 = vpack.c.bf16 %v2688, %v2688
      %v3201 = vpack.c.bf16 %v2689, %v2689
      %v3202 = vpack.c.bf16 %v2690, %v2690
      %v3203 = vpack.c.bf16 %v2691, %v2691
      %v3204 = vpack.c.bf16 %v2692, %v2692
      %v3205 = vpack.c.bf16 %v2693, %v2693
      %v3206 = vpack.c.bf16 %v2694, %v2694
      %v3207 = vpack.c.bf16 %v2695, %v2695
      %v3208 = vpack.c.bf16 %v2696, %v2696
      %v3209 = vpack.c.bf16 %v2697, %v2697
      %v3210 = vpack.c.bf16 %v2698, %v2698
      %v3211 = vpack.c.bf16 %v2699, %v2699
      %v3212 = vpack.c.bf16 %v2700, %v2700
      %v3213 = vpack.c.bf16 %v2701, %v2701
      %v3214 = vpack.c.bf16 %v2702, %v2702
      %v3215 = vpack.c.bf16 %v2703, %v2703
      %v3216 = vpack.c.bf16 %v2704, %v2704
      %v3217 = vpack.c.bf16 %v2705, %v2705
      %v3218 = vpack.c.bf16 %v2706, %v2706
      %v3219 = vpack.c.bf16 %v2707, %v2707
      %v3220 = vpack.c.bf16 %v2708, %v2708
      %v3221 = vpack.c.bf16 %v2709, %v2709
      %v3222 = vpack.c.bf16 %v2710, %v2710
      %v3223 = vpack.c.bf16 %v2711, %v2711
      %v3224 = vpack.c.bf16 %v2712, %v2712
      %v3225 = vpack.c.bf16 %v2713, %v2713
      %v3226 = vpack.c.bf16 %v2714, %v2714
      %v3227 = vpack.c.bf16 %v2715, %v2715
      %v3228 = vpack.c.bf16 %v2716, %v2716
      %v3229 = vpack.c.bf16 %v2717, %v2717
      %v3230 = vpack.c.bf16 %v2718, %v2718
      %v3231 = vpack.c.bf16 %v2719, %v2719
      %v3232 = vpack.c.bf16 %v2720, %v2720
      %v3233 = vpack.c.bf16 %v2721, %v2721
      %v3234 = vpack.c.bf16 %v2722, %v2722
      %v3235 = vpack.c.bf16 %v2723, %v2723
      %v3236 = vpack.c.bf16 %v2724, %v2724
      %v3237 = vpack.c.bf16 %v2725, %v2725
      %v3238 = vpack.c.bf16 %v2726, %v2726
      %v3239 = vpack.c.bf16 %v2727, %v2727
      %v3240 = vpack.c.bf16 %v2728, %v2728
      %v3241 = vpack.c.bf16 %v2729, %v2729
      %v3242 = vpack.c.bf16 %v2730, %v2730
      %v3243 = vpack.c.bf16 %v2731, %v2731
      %v3244 = vpack.c.bf16 %v2732, %v2732
      %v3245 = vpack.c.bf16 %v2733, %v2733
      %v3246 = vpack.c.bf16 %v2734, %v2734
      %v3247 = vpack.c.bf16 %v2735, %v2735
      %v3248 = vpack.c.bf16 %v2736, %v2736
      %v3249 = vpack.c.bf16 %v2737, %v2737
      %v3250 = vpack.c.bf16 %v2738, %v2738
      %v3251 = vpack.c.bf16 %v2739, %v2739
      %v3252 = vpack.c.bf16 %v2740, %v2740
      %v3253 = vpack.c.bf16 %v2741, %v2741
      %v3254 = vpack.c.bf16 %v2742, %v2742
      %v3255 = vpack.c.bf16 %v2743, %v2743
      %v3256 = vpack.c.bf16 %v2744, %v2744
      %v3257 = vpack.c.bf16 %v2745, %v2745
      %v3258 = vpack.c.bf16 %v2746, %v2746
      %v3259 = vpack.c.bf16 %v2747, %v2747
      %v3260 = vpack.c.bf16 %v2748, %v2748
      %v3261 = vpack.c.bf16 %v2749, %v2749
      %v3262 = vpack.c.bf16 %v2750, %v2750
      %v3263 = vpack.c.bf16 %v2751, %v2751
      %v3264 = vpack.c.bf16 %v2752, %v2752
      %v3265 = vpack.c.bf16 %v2753, %v2753
      %v3266 = vpack.c.bf16 %v2754, %v2754
      %v3267 = vpack.c.bf16 %v2755, %v2755
      %v3268 = vpack.c.bf16 %v2756, %v2756
      %v3269 = vpack.c.bf16 %v2757, %v2757
      %v3270 = vpack.c.bf16 %v2758, %v2758
      %v3271 = vpack.c.bf16 %v2759, %v2759
      %v3272 = vpack.c.bf16 %v2760, %v2760
      %v3273 = vpack.c.bf16 %v2761, %v2761
      %v3274 = vpack.c.bf16 %v2762, %v2762
      %v3275 = vpack.c.bf16 %v2763, %v2763
      %v3276 = vpack.c.bf16 %v2764, %v2764
      %v3277 = vpack.c.bf16 %v2765, %v2765
      %v3278 = vpack.c.bf16 %v2766, %v2766
      %v3279 = vpack.c.bf16 %v2767, %v2767
      %v3280 = vpack.c.bf16 %v2768, %v2768
      %v3281 = vpack.c.bf16 %v2769, %v2769
      %v3282 = vpack.c.bf16 %v2770, %v2770
      %v3283 = vpack.c.bf16 %v2771, %v2771
      %v3284 = vpack.c.bf16 %v2772, %v2772
      %v3285 = vpack.c.bf16 %v2773, %v2773
      %v3286 = vpack.c.bf16 %v2774, %v2774
      %v3287 = vpack.c.bf16 %v2775, %v2775
      %v3288 = vpack.c.bf16 %v2776, %v2776
      %v3289 = vpack.c.bf16 %v2777, %v2777
      %v3290 = vpack.c.bf16 %v2778, %v2778
      %v3291 = vpack.c.bf16 %v2779, %v2779
      %v3292 = vpack.c.bf16 %v2780, %v2780
      %v3293 = vpack.c.bf16 %v2781, %v2781
      %v3294 = vpack.c.bf16 %v2782, %v2782
      %v3295 = vpack.c.bf16 %v2783, %v2783
      %v3296 = vpack.c.bf16 %v2784, %v2784
      %v3297 = vpack.c.bf16 %v2785, %v2785
      %v3298 = vpack.c.bf16 %v2786, %v2786
      %v3299 = vpack.c.bf16 %v2787, %v2787
      %v3300 = vpack.c.bf16 %v2788, %v2788
      %v3301 = vpack.c.bf16 %v2789, %v2789
      %v3302 = vpack.c.bf16 %v2790, %v2790
      %v3303 = vpack.c.bf16 %v2791, %v2791
      %v3304 = vpack.c.bf16 %v2792, %v2792
      %v3305 = vpack.c.bf16 %v2793, %v2793
      %v3306 = vpack.c.bf16 %v2794, %v2794
      %v3307 = vpack.c.bf16 %v2795, %v2795
      %v3308 = vpack.c.bf16 %v2796, %v2796
      %v3309 = vpack.c.bf16 %v2797, %v2797
      %v3310 = vpack.c.bf16 %v2798, %v2798
      %v3311 = vpack.c.bf16 %v2799, %v2799
      %v3312 = vpack.c.bf16 %v2800, %v2800
      %v3313 = vpack.c.bf16 %v2801, %v2801
      %v3314 = vpack.c.bf16 %v2802, %v2802
      %v3315 = vpack.c.bf16 %v2803, %v2803
      %v3316 = vpack.c.bf16 %v2804, %v2804
      %v3317 = vpack.c.bf16 %v2805, %v2805
      %v3318 = vpack.c.bf16 %v2806, %v2806
      %v3319 = vpack.c.bf16 %v2807, %v2807
      %v3320 = vpack.c.bf16 %v2808, %v2808
      %v3321 = vpack.c.bf16 %v2809, %v2809
      %v3322 = vpack.c.bf16 %v2810, %v2810
      %v3323 = vpack.c.bf16 %v2811, %v2811
      %v3324 = vpack.c.bf16 %v2812, %v2812
      %v3325 = vpack.c.bf16 %v2813, %v2813
      %v3326 = vpack.c.bf16 %v2814, %v2814
      %v3327 = vpack.c.bf16 %v2815, %v2815
      %v3328 = vpack.c.bf16 %v2816, %v2816
      %v3329 = vpack.c.bf16 %v2817, %v2817
      %v3330 = vpack.c.bf16 %v2818, %v2818
      %v3331 = vpack.c.bf16 %v2819, %v2819
      %v3332 = vpack.c.bf16 %v2820, %v2820
      %v3333 = vpack.c.bf16 %v2821, %v2821
      %v3334 = vpack.c.bf16 %v2822, %v2822
      %v3335 = vpack.c.bf16 %v2823, %v2823
      %v3336 = vpack.c.bf16 %v2824, %v2824
      %v3337 = vpack.c.bf16 %v2825, %v2825
      %v3338 = vpack.c.bf16 %v2826, %v2826
      %v3339 = vpack.c.bf16 %v2827, %v2827
      %v3340 = vpack.c.bf16 %v2828, %v2828
      %v3341 = vpack.c.bf16 %v2829, %v2829
      %v3342 = vpack.c.bf16 %v2830, %v2830
      %v3343 = vpack.c.bf16 %v2831, %v2831
      %v3344 = vpack.c.bf16 %v2832, %v2832
      %v3345 = vpack.c.bf16 %v2833, %v2833
      %v3346 = vpack.c.bf16 %v2834, %v2834
      %v3347 = vpack.c.bf16 %v2835, %v2835
      %v3348 = vpack.c.bf16 %v2836, %v2836
      %v3349 = vpack.c.bf16 %v2837, %v2837
      %v3350 = vpack.c.bf16 %v2838, %v2838
      %v3351 = vpack.c.bf16 %v2839, %v2839
      %v3352 = vpack.c.bf16 %v2840, %v2840
      %v3353 = vpack.c.bf16 %v2841, %v2841
      %v3354 = vpack.c.bf16 %v2842, %v2842
      %v3355 = vpack.c.bf16 %v2843, %v2843
      %v3356 = vpack.c.bf16 %v2844, %v2844
      %v3357 = vpack.c.bf16 %v2845, %v2845
      %v3358 = vpack.c.bf16 %v2846, %v2846
      %v3359 = vpack.c.bf16 %v2847, %v2847
      %v3360 = vpack.c.bf16 %v2848, %v2848
      %v3361 = vpack.c.bf16 %v2849, %v2849
      %v3362 = vpack.c.bf16 %v2850, %v2850
      %v3363 = vpack.c.bf16 %v2851, %v2851
      %v3364 = vpack.c.bf16 %v2852, %v2852
      %v3365 = vpack.c.bf16 %v2853, %v2853
      %v3366 = vpack.c.bf16 %v2854, %v2854
      %v3367 = vpack.c.bf16 %v2855, %v2855
      %v3368 = vpack.c.bf16 %v2856, %v2856
      %v3369 = vpack.c.bf16 %v2857, %v2857
      %v3370 = vpack.c.bf16 %v2858, %v2858
      %v3371 = vpack.c.bf16 %v2859, %v2859
      %v3372 = vpack.c.bf16 %v2860, %v2860
      %v3373 = vpack.c.bf16 %v2861, %v2861
      %v3374 = vpack.c.bf16 %v2862, %v2862
      %v3375 = vpack.c.bf16 %v2863, %v2863
      %v3376 = vpack.c.bf16 %v2864, %v2864
      %v3377 = vpack.c.bf16 %v2865, %v2865
      %v3378 = vpack.c.bf16 %v2866, %v2866
      %v3379 = vpack.c.bf16 %v2867, %v2867
      %v3380 = vpack.c.bf16 %v2868, %v2868
      %v3381 = vpack.c.bf16 %v2869, %v2869
      %v3382 = vpack.c.bf16 %v2870, %v2870
      %v3383 = vpack.c.bf16 %v2871, %v2871
      %v3384 = vpack.c.bf16 %v2872, %v2872
      %v3385 = vpack.c.bf16 %v2873, %v2873
      %v3386 = vpack.c.bf16 %v2874, %v2874
      %v3387 = vpack.c.bf16 %v2875, %v2875
      %v3388 = vpack.c.bf16 %v2876, %v2876
      %v3389 = vpack.c.bf16 %v2877, %v2877
      %v3390 = vpack.c.bf16 %v2878, %v2878
      %v3391 = vpack.c.bf16 %v2879, %v2879
      %v3392 = vpack.c.bf16 %v2880, %v2880
      %v3393 = vpack.c.bf16 %v2881, %v2881
      %v3394 = vpack.c.bf16 %v2882, %v2882
      %v3395 = vpack.c.bf16 %v2883, %v2883
      %v3396 = vpack.c.bf16 %v2884, %v2884
      %v3397 = vpack.c.bf16 %v2885, %v2885
      %v3398 = vpack.c.bf16 %v2886, %v2886
      %v3399 = vpack.c.bf16 %v2887, %v2887
      %v3400 = vpack.c.bf16 %v2888, %v2888
      %v3401 = vpack.c.bf16 %v2889, %v2889
      %v3402 = vpack.c.bf16 %v2890, %v2890
      %v3403 = vpack.c.bf16 %v2891, %v2891
      %v3404 = vpack.c.bf16 %v2892, %v2892
      %v3405 = vpack.c.bf16 %v2893, %v2893
      %v3406 = vpack.c.bf16 %v2894, %v2894
      %v3407 = vpack.c.bf16 %v2895, %v2895
      %v3408 = vpack.c.bf16 %v2896, %v2896
      %v3409 = vpack.c.bf16 %v2897, %v2897
      %v3410 = vpack.c.bf16 %v2898, %v2898
      %v3411 = vpack.c.bf16 %v2899, %v2899
      %v3412 = vpack.c.bf16 %v2900, %v2900
      %v3413 = vpack.c.bf16 %v2901, %v2901
      %v3414 = vpack.c.bf16 %v2902, %v2902
      %v3415 = vpack.c.bf16 %v2903, %v2903
      %v3416 = vpack.c.bf16 %v2904, %v2904
      %v3417 = vpack.c.bf16 %v2905, %v2905
      %v3418 = vpack.c.bf16 %v2906, %v2906
      %v3419 = vpack.c.bf16 %v2907, %v2907
      %v3420 = vpack.c.bf16 %v2908, %v2908
      %v3421 = vpack.c.bf16 %v2909, %v2909
      %v3422 = vpack.c.bf16 %v2910, %v2910
      %v3423 = vpack.c.bf16 %v2911, %v2911
      %v3424 = vpack.c.bf16 %v2912, %v2912
      %v3425 = vpack.c.bf16 %v2913, %v2913
      %v3426 = vpack.c.bf16 %v2914, %v2914
      %v3427 = vpack.c.bf16 %v2915, %v2915
      %v3428 = vpack.c.bf16 %v2916, %v2916
      %v3429 = vpack.c.bf16 %v2917, %v2917
      %v3430 = vpack.c.bf16 %v2918, %v2918
      %v3431 = vpack.c.bf16 %v2919, %v2919
      %v3432 = vpack.c.bf16 %v2920, %v2920
      %v3465 = vunpack.c.l.b16 %v2921
      %v3466 = vunpack.c.l.b16 %v2922
      %v3467 = vunpack.c.l.b16 %v2923
      %v3468 = vunpack.c.l.b16 %v2924
      %v3469 = vunpack.c.l.b16 %v2925
      %v3470 = vunpack.c.l.b16 %v2926
      %v3471 = vunpack.c.l.b16 %v2927
      %v3472 = vunpack.c.l.b16 %v2928
      %v3473 = vunpack.c.l.b16 %v2929
      %v3474 = vunpack.c.l.b16 %v2930
      %v3475 = vunpack.c.l.b16 %v2931
      %v3476 = vunpack.c.l.b16 %v2932
      %v3477 = vunpack.c.l.b16 %v2933
      %v3478 = vunpack.c.l.b16 %v2934
      %v3479 = vunpack.c.l.b16 %v2935
      %v3480 = vunpack.c.l.b16 %v2936
      %v3481 = vunpack.c.l.b16 %v2937
      %v3482 = vunpack.c.l.b16 %v2938
      %v3483 = vunpack.c.l.b16 %v2939
      %v3484 = vunpack.c.l.b16 %v2940
      %v3485 = vunpack.c.l.b16 %v2941
      %v3486 = vunpack.c.l.b16 %v2942
      %v3487 = vunpack.c.l.b16 %v2943
      %v3488 = vunpack.c.l.b16 %v2944
      %v3489 = vunpack.c.l.b16 %v2945
      %v3490 = vunpack.c.l.b16 %v2946
      %v3491 = vunpack.c.l.b16 %v2947
      %v3492 = vunpack.c.l.b16 %v2948
      %v3493 = vunpack.c.l.b16 %v2949
      %v3494 = vunpack.c.l.b16 %v2950
      %v3495 = vunpack.c.l.b16 %v2951
      %v3496 = vunpack.c.l.b16 %v2952
      %v3497 = vpack.c.b16 %v3466, %v3465
      %v3498 = vpack.c.b16 %v3468, %v3467
      %v3499 = vpack.c.b16 %v3470, %v3469
      %v3500 = vpack.c.b16 %v3472, %v3471
      %v3501 = vpack.c.b16 %v3474, %v3473
      %v3502 = vpack.c.b16 %v3476, %v3475
      %v3503 = vpack.c.b16 %v3478, %v3477
      %v3504 = vpack.c.b16 %v3480, %v3479
      %v3505 = vpack.c.b16 %v3482, %v3481
      %v3506 = vpack.c.b16 %v3484, %v3483
      %v3507 = vpack.c.b16 %v3486, %v3485
      %v3508 = vpack.c.b16 %v3488, %v3487
      %v3509 = vpack.c.b16 %v3490, %v3489
      %v3510 = vpack.c.b16 %v3492, %v3491
      %v3511 = vpack.c.b16 %v3494, %v3493
      %v3512 = vpack.c.b16 %v3496, %v3495
      %3529 = vmatpush.bf16.msra.mxu0 %v3504
      %3530 = vmatpush.bf16.msra.mxu0 %v3503
      %3531 = vmatpush.bf16.msra.mxu0 %v3502
      %3532 = vmatpush.bf16.msra.mxu0 %v3501
      %3533 = vmatpush.bf16.msra.mxu0 %v3500
      %3534 = vmatpush.bf16.msra.mxu0 %v3499
      %3535 = vmatpush.bf16.msra.mxu0 %v3498
      %3536 = vmatpush.bf16.msra.mxu0 %v3497
      %3537 = vmatmul.bf16.gmra.mxu0 %v1879
      %v3538 = vpop.f32.mrf.mxu0
      %v3539 = vadd.f32 0.0, %v3538
      %v3540 = vpop.f32.mrf.mxu0
      %v3541 = vadd.f32 0.0, %v3540
      %3542 = vdwg.mxu0
      %3543 = vmatpush.bf16.msra.mxu0 %v3512
      %3544 = vmatpush.bf16.msra.mxu0 %v3511
      %3545 = vmatpush.bf16.msra.mxu0 %v3510
      %3546 = vmatpush.bf16.msra.mxu0 %v3509
      %3547 = vmatpush.bf16.msra.mxu0 %v3508
      %3548 = vmatpush.bf16.msra.mxu0 %v3507
      %3549 = vmatpush.bf16.msra.mxu0 %v3506
      %3550 = vmatpush.bf16.msra.mxu0 %v3505
      %3551 = vmatmul.bf16.gmra.mxu0 %v1880
      %v3552 = vpop.f32.mrf.mxu0
      %v3553 = vadd.f32 %v3539, %v3552
      %v3554 = vpop.f32.mrf.mxu0
      %v3555 = vadd.f32 %v3541, %v3554
      %3556 = vdwg.mxu0
      %v3589 = vunpack.c.l.b16 %v2953
      %v3590 = vunpack.c.l.b16 %v2954
      %v3591 = vunpack.c.l.b16 %v2955
      %v3592 = vunpack.c.l.b16 %v2956
      %v3593 = vunpack.c.l.b16 %v2957
      %v3594 = vunpack.c.l.b16 %v2958
      %v3595 = vunpack.c.l.b16 %v2959
      %v3596 = vunpack.c.l.b16 %v2960
      %v3597 = vunpack.c.l.b16 %v2961
      %v3598 = vunpack.c.l.b16 %v2962
      %v3599 = vunpack.c.l.b16 %v2963
      %v3600 = vunpack.c.l.b16 %v2964
      %v3601 = vunpack.c.l.b16 %v2965
      %v3602 = vunpack.c.l.b16 %v2966
      %v3603 = vunpack.c.l.b16 %v2967
      %v3604 = vunpack.c.l.b16 %v2968
      %v3605 = vunpack.c.l.b16 %v2969
      %v3606 = vunpack.c.l.b16 %v2970
      %v3607 = vunpack.c.l.b16 %v2971
      %v3608 = vunpack.c.l.b16 %v2972
      %v3609 = vunpack.c.l.b16 %v2973
      %v3610 = vunpack.c.l.b16 %v2974
      %v3611 = vunpack.c.l.b16 %v2975
      %v3612 = vunpack.c.l.b16 %v2976
      %v3613 = vunpack.c.l.b16 %v2977
      %v3614 = vunpack.c.l.b16 %v2978
      %v3615 = vunpack.c.l.b16 %v2979
      %v3616 = vunpack.c.l.b16 %v2980
      %v3617 = vunpack.c.l.b16 %v2981
      %v3618 = vunpack.c.l.b16 %v2982
      %v3619 = vunpack.c.l.b16 %v2983
      %v3620 = vunpack.c.l.b16 %v2984
      %v3621 = vpack.c.b16 %v3590, %v3589
      %v3622 = vpack.c.b16 %v3592, %v3591
      %v3623 = vpack.c.b16 %v3594, %v3593
      %v3624 = vpack.c.b16 %v3596, %v3595
      %v3625 = vpack.c.b16 %v3598, %v3597
      %v3626 = vpack.c.b16 %v3600, %v3599
      %v3627 = vpack.c.b16 %v3602, %v3601
      %v3628 = vpack.c.b16 %v3604, %v3603
      %v3629 = vpack.c.b16 %v3606, %v3605
      %v3630 = vpack.c.b16 %v3608, %v3607
      %v3631 = vpack.c.b16 %v3610, %v3609
      %v3632 = vpack.c.b16 %v3612, %v3611
      %v3633 = vpack.c.b16 %v3614, %v3613
      %v3634 = vpack.c.b16 %v3616, %v3615
      %v3635 = vpack.c.b16 %v3618, %v3617
      %v3636 = vpack.c.b16 %v3620, %v3619
      %3653 = vmatpush.bf16.msra.mxu0 %v3628
      %3654 = vmatpush.bf16.msra.mxu0 %v3627
      %3655 = vmatpush.bf16.msra.mxu0 %v3626
      %3656 = vmatpush.bf16.msra.mxu0 %v3625
      %3657 = vmatpush.bf16.msra.mxu0 %v3624
      %3658 = vmatpush.bf16.msra.mxu0 %v3623
      %3659 = vmatpush.bf16.msra.mxu0 %v3622
      %3660 = vmatpush.bf16.msra.mxu0 %v3621
      %3661 = vmatmul.bf16.gmra.mxu0 %v1881
      %v3662 = vpop.f32.mrf.mxu0
      %v3663 = vadd.f32 0.0, %v3662
      %v3664 = vpop.f32.mrf.mxu0
      %v3665 = vadd.f32 0.0, %v3664
      %3666 = vdwg.mxu0
      %3667 = vmatpush.bf16.msra.mxu0 %v3636
      %3668 = vmatpush.bf16.msra.mxu0 %v3635
      %3669 = vmatpush.bf16.msra.mxu0 %v3634
      %3670 = vmatpush.bf16.msra.mxu0 %v3633
      %3671 = vmatpush.bf16.msra.mxu0 %v3632
      %3672 = vmatpush.bf16.msra.mxu0 %v3631
      %3673 = vmatpush.bf16.msra.mxu0 %v3630
      %3674 = vmatpush.bf16.msra.mxu0 %v3629
      %3675 = vmatmul.bf16.gmra.mxu0 %v1882
      %v3676 = vpop.f32.mrf.mxu0
      %v3677 = vadd.f32 %v3663, %v3676
      %v3678 = vpop.f32.mrf.mxu0
      %v3679 = vadd.f32 %v3665, %v3678
      %3680 = vdwg.mxu0
      %v3713 = vunpack.c.l.b16 %v2985
      %v3714 = vunpack.c.l.b16 %v2986
      %v3715 = vunpack.c.l.b16 %v2987
      %v3716 = vunpack.c.l.b16 %v2988
      %v3717 = vunpack.c.l.b16 %v2989
      %v3718 = vunpack.c.l.b16 %v2990
      %v3719 = vunpack.c.l.b16 %v2991
      %v3720 = vunpack.c.l.b16 %v2992
      %v3721 = vunpack.c.l.b16 %v2993
      %v3722 = vunpack.c.l.b16 %v2994
      %v3723 = vunpack.c.l.b16 %v2995
      %v3724 = vunpack.c.l.b16 %v2996
      %v3725 = vunpack.c.l.b16 %v2997
      %v3726 = vunpack.c.l.b16 %v2998
      %v3727 = vunpack.c.l.b16 %v2999
      %v3728 = vunpack.c.l.b16 %v3000
      %v3729 = vunpack.c.l.b16 %v3001
      %v3730 = vunpack.c.l.b16 %v3002
      %v3731 = vunpack.c.l.b16 %v3003
      %v3732 = vunpack.c.l.b16 %v3004
      %v3733 = vunpack.c.l.b16 %v3005
      %v3734 = vunpack.c.l.b16 %v3006
      %v3735 = vunpack.c.l.b16 %v3007
      %v3736 = vunpack.c.l.b16 %v3008
      %v3737 = vunpack.c.l.b16 %v3009
      %v3738 = vunpack.c.l.b16 %v3010
      %v3739 = vunpack.c.l.b16 %v3011
      %v3740 = vunpack.c.l.b16 %v3012
      %v3741 = vunpack.c.l.b16 %v3013
      %v3742 = vunpack.c.l.b16 %v3014
      %v3743 = vunpack.c.l.b16 %v3015
      %v3744 = vunpack.c.l.b16 %v3016
      %v3745 = vpack.c.b16 %v3714, %v3713
      %v3746 = vpack.c.b16 %v3716, %v3715
      %v3747 = vpack.c.b16 %v3718, %v3717
      %v3748 = vpack.c.b16 %v3720, %v3719
      %v3749 = vpack.c.b16 %v3722, %v3721
      %v3750 = vpack.c.b16 %v3724, %v3723
      %v3751 = vpack.c.b16 %v3726, %v3725
      %v3752 = vpack.c.b16 %v3728, %v3727
      %v3753 = vpack.c.b16 %v3730, %v3729
      %v3754 = vpack.c.b16 %v3732, %v3731
      %v3755 = vpack.c.b16 %v3734, %v3733
      %v3756 = vpack.c.b16 %v3736, %v3735
      %v3757 = vpack.c.b16 %v3738, %v3737
      %v3758 = vpack.c.b16 %v3740, %v3739
      %v3759 = vpack.c.b16 %v3742, %v3741
      %v3760 = vpack.c.b16 %v3744, %v3743
      %3777 = vmatpush.bf16.msra.mxu0 %v3752
      %3778 = vmatpush.bf16.msra.mxu0 %v3751
      %3779 = vmatpush.bf16.msra.mxu0 %v3750
      %3780 = vmatpush.bf16.msra.mxu0 %v3749
      %3781 = vmatpush.bf16.msra.mxu0 %v3748
      %3782 = vmatpush.bf16.msra.mxu0 %v3747
      %3783 = vmatpush.bf16.msra.mxu0 %v3746
      %3784 = vmatpush.bf16.msra.mxu0 %v3745
      %3785 = vmatmul.bf16.gmra.mxu0 %v1883
      %v3786 = vpop.f32.mrf.mxu0
      %v3787 = vadd.f32 0.0, %v3786
      %v3788 = vpop.f32.mrf.mxu0
      %v3789 = vadd.f32 0.0, %v3788
      %3790 = vdwg.mxu0
      %3791 = vmatpush.bf16.msra.mxu0 %v3760
      %3792 = vmatpush.bf16.msra.mxu0 %v3759
      %3793 = vmatpush.bf16.msra.mxu0 %v3758
      %3794 = vmatpush.bf16.msra.mxu0 %v3757
      %3795 = vmatpush.bf16.msra.mxu0 %v3756
      %3796 = vmatpush.bf16.msra.mxu0 %v3755
      %3797 = vmatpush.bf16.msra.mxu0 %v3754
      %3798 = vmatpush.bf16.msra.mxu0 %v3753
      %3799 = vmatmul.bf16.gmra.mxu0 %v1884
      %v3800 = vpop.f32.mrf.mxu0
      %v3801 = vadd.f32 %v3787, %v3800
      %v3802 = vpop.f32.mrf.mxu0
      %v3803 = vadd.f32 %v3789, %v3802
      %3804 = vdwg.mxu0
      %v3837 = vunpack.c.l.b16 %v3017
      %v3838 = vunpack.c.l.b16 %v3018
      %v3839 = vunpack.c.l.b16 %v3019
      %v3840 = vunpack.c.l.b16 %v3020
      %v3841 = vunpack.c.l.b16 %v3021
      %v3842 = vunpack.c.l.b16 %v3022
      %v3843 = vunpack.c.l.b16 %v3023
      %v3844 = vunpack.c.l.b16 %v3024
      %v3845 = vunpack.c.l.b16 %v3025
      %v3846 = vunpack.c.l.b16 %v3026
      %v3847 = vunpack.c.l.b16 %v3027
      %v3848 = vunpack.c.l.b16 %v3028
      %v3849 = vunpack.c.l.b16 %v3029
      %v3850 = vunpack.c.l.b16 %v3030
      %v3851 = vunpack.c.l.b16 %v3031
      %v3852 = vunpack.c.l.b16 %v3032
      %v3853 = vunpack.c.l.b16 %v3033
      %v3854 = vunpack.c.l.b16 %v3034
      %v3855 = vunpack.c.l.b16 %v3035
      %v3856 = vunpack.c.l.b16 %v3036
      %v3857 = vunpack.c.l.b16 %v3037
      %v3858 = vunpack.c.l.b16 %v3038
      %v3859 = vunpack.c.l.b16 %v3039
      %v3860 = vunpack.c.l.b16 %v3040
      %v3861 = vunpack.c.l.b16 %v3041
      %v3862 = vunpack.c.l.b16 %v3042
      %v3863 = vunpack.c.l.b16 %v3043
      %v3864 = vunpack.c.l.b16 %v3044
      %v3865 = vunpack.c.l.b16 %v3045
      %v3866 = vunpack.c.l.b16 %v3046
      %v3867 = vunpack.c.l.b16 %v3047
      %v3868 = vunpack.c.l.b16 %v3048
      %v3869 = vpack.c.b16 %v3838, %v3837
      %v3870 = vpack.c.b16 %v3840, %v3839
      %v3871 = vpack.c.b16 %v3842, %v3841
      %v3872 = vpack.c.b16 %v3844, %v3843
      %v3873 = vpack.c.b16 %v3846, %v3845
      %v3874 = vpack.c.b16 %v3848, %v3847
      %v3875 = vpack.c.b16 %v3850, %v3849
      %v3876 = vpack.c.b16 %v3852, %v3851
      %v3877 = vpack.c.b16 %v3854, %v3853
      %v3878 = vpack.c.b16 %v3856, %v3855
      %v3879 = vpack.c.b16 %v3858, %v3857
      %v3880 = vpack.c.b16 %v3860, %v3859
      %v3881 = vpack.c.b16 %v3862, %v3861
      %v3882 = vpack.c.b16 %v3864, %v3863
      %v3883 = vpack.c.b16 %v3866, %v3865
      %v3884 = vpack.c.b16 %v3868, %v3867
      %3901 = vmatpush.bf16.msra.mxu0 %v3876
      %3902 = vmatpush.bf16.msra.mxu0 %v3875
      %3903 = vmatpush.bf16.msra.mxu0 %v3874
      %3904 = vmatpush.bf16.msra.mxu0 %v3873
      %3905 = vmatpush.bf16.msra.mxu0 %v3872
      %3906 = vmatpush.bf16.msra.mxu0 %v3871
      %3907 = vmatpush.bf16.msra.mxu0 %v3870
      %3908 = vmatpush.bf16.msra.mxu0 %v3869
      %3909 = vmatmul.bf16.gmra.mxu0 %v1885
      %v3910 = vpop.f32.mrf.mxu0
      %v3911 = vadd.f32 0.0, %v3910
      %v3912 = vpop.f32.mrf.mxu0
      %v3913 = vadd.f32 0.0, %v3912
      %3914 = vdwg.mxu0
      %3915 = vmatpush.bf16.msra.mxu0 %v3884
      %3916 = vmatpush.bf16.msra.mxu0 %v3883
      %3917 = vmatpush.bf16.msra.mxu0 %v3882
      %3918 = vmatpush.bf16.msra.mxu0 %v3881
      %3919 = vmatpush.bf16.msra.mxu0 %v3880
      %3920 = vmatpush.bf16.msra.mxu0 %v3879
      %3921 = vmatpush.bf16.msra.mxu0 %v3878
      %3922 = vmatpush.bf16.msra.mxu0 %v3877
      %3923 = vmatmul.bf16.gmra.mxu0 %v1886
      %v3924 = vpop.f32.mrf.mxu0
      %v3925 = vadd.f32 %v3911, %v3924
      %v3926 = vpop.f32.mrf.mxu0
      %v3927 = vadd.f32 %v3913, %v3926
      %3928 = vdwg.mxu0
      %v3961 = vunpack.c.l.b16 %v3049
      %v3962 = vunpack.c.l.b16 %v3050
      %v3963 = vunpack.c.l.b16 %v3051
      %v3964 = vunpack.c.l.b16 %v3052
      %v3965 = vunpack.c.l.b16 %v3053
      %v3966 = vunpack.c.l.b16 %v3054
      %v3967 = vunpack.c.l.b16 %v3055
      %v3968 = vunpack.c.l.b16 %v3056
      %v3969 = vunpack.c.l.b16 %v3057
      %v3970 = vunpack.c.l.b16 %v3058
      %v3971 = vunpack.c.l.b16 %v3059
      %v3972 = vunpack.c.l.b16 %v3060
      %v3973 = vunpack.c.l.b16 %v3061
      %v3974 = vunpack.c.l.b16 %v3062
      %v3975 = vunpack.c.l.b16 %v3063
      %v3976 = vunpack.c.l.b16 %v3064
      %v3977 = vunpack.c.l.b16 %v3065
      %v3978 = vunpack.c.l.b16 %v3066
      %v3979 = vunpack.c.l.b16 %v3067
      %v3980 = vunpack.c.l.b16 %v3068
      %v3981 = vunpack.c.l.b16 %v3069
      %v3982 = vunpack.c.l.b16 %v3070
      %v3983 = vunpack.c.l.b16 %v3071
      %v3984 = vunpack.c.l.b16 %v3072
      %v3985 = vunpack.c.l.b16 %v3073
      %v3986 = vunpack.c.l.b16 %v3074
      %v3987 = vunpack.c.l.b16 %v3075
      %v3988 = vunpack.c.l.b16 %v3076
      %v3989 = vunpack.c.l.b16 %v3077
      %v3990 = vunpack.c.l.b16 %v3078
      %v3991 = vunpack.c.l.b16 %v3079
      %v3992 = vunpack.c.l.b16 %v3080
      %v3993 = vpack.c.b16 %v3962, %v3961
      %v3994 = vpack.c.b16 %v3964, %v3963
      %v3995 = vpack.c.b16 %v3966, %v3965
      %v3996 = vpack.c.b16 %v3968, %v3967
      %v3997 = vpack.c.b16 %v3970, %v3969
      %v3998 = vpack.c.b16 %v3972, %v3971
      %v3999 = vpack.c.b16 %v3974, %v3973
      %v4000 = vpack.c.b16 %v3976, %v3975
      %v4001 = vpack.c.b16 %v3978, %v3977
      %v4002 = vpack.c.b16 %v3980, %v3979
      %v4003 = vpack.c.b16 %v3982, %v3981
      %v4004 = vpack.c.b16 %v3984, %v3983
      %v4005 = vpack.c.b16 %v3986, %v3985
      %v4006 = vpack.c.b16 %v3988, %v3987
      %v4007 = vpack.c.b16 %v3990, %v3989
      %v4008 = vpack.c.b16 %v3992, %v3991
      %4025 = vmatpush.bf16.msra.mxu0 %v4000
      %4026 = vmatpush.bf16.msra.mxu0 %v3999
      %4027 = vmatpush.bf16.msra.mxu0 %v3998
      %4028 = vmatpush.bf16.msra.mxu0 %v3997
      %4029 = vmatpush.bf16.msra.mxu0 %v3996
      %4030 = vmatpush.bf16.msra.mxu0 %v3995
      %4031 = vmatpush.bf16.msra.mxu0 %v3994
      %4032 = vmatpush.bf16.msra.mxu0 %v3993
      %4033 = vmatmul.bf16.gmra.mxu0 %v1887
      %v4034 = vpop.f32.mrf.mxu0
      %v4035 = vadd.f32 0.0, %v4034
      %v4036 = vpop.f32.mrf.mxu0
      %v4037 = vadd.f32 0.0, %v4036
      %4038 = vdwg.mxu0
      %4039 = vmatpush.bf16.msra.mxu0 %v4008
      %4040 = vmatpush.bf16.msra.mxu0 %v4007
      %4041 = vmatpush.bf16.msra.mxu0 %v4006
      %4042 = vmatpush.bf16.msra.mxu0 %v4005
      %4043 = vmatpush.bf16.msra.mxu0 %v4004
      %4044 = vmatpush.bf16.msra.mxu0 %v4003
      %4045 = vmatpush.bf16.msra.mxu0 %v4002
      %4046 = vmatpush.bf16.msra.mxu0 %v4001
      %4047 = vmatmul.bf16.gmra.mxu0 %v1888
      %v4048 = vpop.f32.mrf.mxu0
      %v4049 = vadd.f32 %v4035, %v4048
      %v4050 = vpop.f32.mrf.mxu0
      %v4051 = vadd.f32 %v4037, %v4050
      %4052 = vdwg.mxu0
      %v4085 = vunpack.c.l.b16 %v3081
      %v4086 = vunpack.c.l.b16 %v3082
      %v4087 = vunpack.c.l.b16 %v3083
      %v4088 = vunpack.c.l.b16 %v3084
      %v4089 = vunpack.c.l.b16 %v3085
      %v4090 = vunpack.c.l.b16 %v3086
      %v4091 = vunpack.c.l.b16 %v3087
      %v4092 = vunpack.c.l.b16 %v3088
      %v4093 = vunpack.c.l.b16 %v3089
      %v4094 = vunpack.c.l.b16 %v3090
      %v4095 = vunpack.c.l.b16 %v3091
      %v4096 = vunpack.c.l.b16 %v3092
      %v4097 = vunpack.c.l.b16 %v3093
      %v4098 = vunpack.c.l.b16 %v3094
      %v4099 = vunpack.c.l.b16 %v3095
      %v4100 = vunpack.c.l.b16 %v3096
      %v4101 = vunpack.c.l.b16 %v3097
      %v4102 = vunpack.c.l.b16 %v3098
      %v4103 = vunpack.c.l.b16 %v3099
      %v4104 = vunpack.c.l.b16 %v3100
      %v4105 = vunpack.c.l.b16 %v3101
      %v4106 = vunpack.c.l.b16 %v3102
      %v4107 = vunpack.c.l.b16 %v3103
      %v4108 = vunpack.c.l.b16 %v3104
      %v4109 = vunpack.c.l.b16 %v3105
      %v4110 = vunpack.c.l.b16 %v3106
      %v4111 = vunpack.c.l.b16 %v3107
      %v4112 = vunpack.c.l.b16 %v3108
      %v4113 = vunpack.c.l.b16 %v3109
      %v4114 = vunpack.c.l.b16 %v3110
      %v4115 = vunpack.c.l.b16 %v3111
      %v4116 = vunpack.c.l.b16 %v3112
      %v4117 = vpack.c.b16 %v4086, %v4085
      %v4118 = vpack.c.b16 %v4088, %v4087
      %v4119 = vpack.c.b16 %v4090, %v4089
      %v4120 = vpack.c.b16 %v4092, %v4091
      %v4121 = vpack.c.b16 %v4094, %v4093
      %v4122 = vpack.c.b16 %v4096, %v4095
      %v4123 = vpack.c.b16 %v4098, %v4097
      %v4124 = vpack.c.b16 %v4100, %v4099
      %v4125 = vpack.c.b16 %v4102, %v4101
      %v4126 = vpack.c.b16 %v4104, %v4103
      %v4127 = vpack.c.b16 %v4106, %v4105
      %v4128 = vpack.c.b16 %v4108, %v4107
      %v4129 = vpack.c.b16 %v4110, %v4109
      %v4130 = vpack.c.b16 %v4112, %v4111
      %v4131 = vpack.c.b16 %v4114, %v4113
      %v4132 = vpack.c.b16 %v4116, %v4115
      %4149 = vmatpush.bf16.msra.mxu0 %v4124
      %4150 = vmatpush.bf16.msra.mxu0 %v4123
      %4151 = vmatpush.bf16.msra.mxu0 %v4122
      %4152 = vmatpush.bf16.msra.mxu0 %v4121
      %4153 = vmatpush.bf16.msra.mxu0 %v4120
      %4154 = vmatpush.bf16.msra.mxu0 %v4119
      %4155 = vmatpush.bf16.msra.mxu0 %v4118
      %4156 = vmatpush.bf16.msra.mxu0 %v4117
      %4157 = vmatmul.bf16.gmra.mxu0 %v1889
      %v4158 = vpop.f32.mrf.mxu0
      %v4159 = vadd.f32 0.0, %v4158
      %v4160 = vpop.f32.mrf.mxu0
      %v4161 = vadd.f32 0.0, %v4160
      %4162 = vdwg.mxu0
      %4163 = vmatpush.bf16.msra.mxu0 %v4132
      %4164 = vmatpush.bf16.msra.mxu0 %v4131
      %4165 = vmatpush.bf16.msra.mxu0 %v4130
      %4166 = vmatpush.bf16.msra.mxu0 %v4129
      %4167 = vmatpush.bf16.msra.mxu0 %v4128
      %4168 = vmatpush.bf16.msra.mxu0 %v4127
      %4169 = vmatpush.bf16.msra.mxu0 %v4126
      %4170 = vmatpush.bf16.msra.mxu0 %v4125
      %4171 = vmatmul.bf16.gmra.mxu0 %v1890
      %v4172 = vpop.f32.mrf.mxu0
      %v4173 = vadd.f32 %v4159, %v4172
      %v4174 = vpop.f32.mrf.mxu0
      %v4175 = vadd.f32 %v4161, %v4174
      %4176 = vdwg.mxu0
      %v4209 = vunpack.c.l.b16 %v3113
      %v4210 = vunpack.c.l.b16 %v3114
      %v4211 = vunpack.c.l.b16 %v3115
      %v4212 = vunpack.c.l.b16 %v3116
      %v4213 = vunpack.c.l.b16 %v3117
      %v4214 = vunpack.c.l.b16 %v3118
      %v4215 = vunpack.c.l.b16 %v3119
      %v4216 = vunpack.c.l.b16 %v3120
      %v4217 = vunpack.c.l.b16 %v3121
      %v4218 = vunpack.c.l.b16 %v3122
      %v4219 = vunpack.c.l.b16 %v3123
      %v4220 = vunpack.c.l.b16 %v3124
      %v4221 = vunpack.c.l.b16 %v3125
      %v4222 = vunpack.c.l.b16 %v3126
      %v4223 = vunpack.c.l.b16 %v3127
      %v4224 = vunpack.c.l.b16 %v3128
      %v4225 = vunpack.c.l.b16 %v3129
      %v4226 = vunpack.c.l.b16 %v3130
      %v4227 = vunpack.c.l.b16 %v3131
      %v4228 = vunpack.c.l.b16 %v3132
      %v4229 = vunpack.c.l.b16 %v3133
      %v4230 = vunpack.c.l.b16 %v3134
      %v4231 = vunpack.c.l.b16 %v3135
      %v4232 = vunpack.c.l.b16 %v3136
      %v4233 = vunpack.c.l.b16 %v3137
      %v4234 = vunpack.c.l.b16 %v3138
      %v4235 = vunpack.c.l.b16 %v3139
      %v4236 = vunpack.c.l.b16 %v3140
      %v4237 = vunpack.c.l.b16 %v3141
      %v4238 = vunpack.c.l.b16 %v3142
      %v4239 = vunpack.c.l.b16 %v3143
      %v4240 = vunpack.c.l.b16 %v3144
      %v4241 = vpack.c.b16 %v4210, %v4209
      %v4242 = vpack.c.b16 %v4212, %v4211
      %v4243 = vpack.c.b16 %v4214, %v4213
      %v4244 = vpack.c.b16 %v4216, %v4215
      %v4245 = vpack.c.b16 %v4218, %v4217
      %v4246 = vpack.c.b16 %v4220, %v4219
      %v4247 = vpack.c.b16 %v4222, %v4221
      %v4248 = vpack.c.b16 %v4224, %v4223
      %v4249 = vpack.c.b16 %v4226, %v4225
      %v4250 = vpack.c.b16 %v4228, %v4227
      %v4251 = vpack.c.b16 %v4230, %v4229
      %v4252 = vpack.c.b16 %v4232, %v4231
      %v4253 = vpack.c.b16 %v4234, %v4233
      %v4254 = vpack.c.b16 %v4236, %v4235
      %v4255 = vpack.c.b16 %v4238, %v4237
      %v4256 = vpack.c.b16 %v4240, %v4239
      %4273 = vmatpush.bf16.msra.mxu0 %v4248
      %4274 = vmatpush.bf16.msra.mxu0 %v4247
      %4275 = vmatpush.bf16.msra.mxu0 %v4246
      %4276 = vmatpush.bf16.msra.mxu0 %v4245
      %4277 = vmatpush.bf16.msra.mxu0 %v4244
      %4278 = vmatpush.bf16.msra.mxu0 %v4243
      %4279 = vmatpush.bf16.msra.mxu0 %v4242
      %4280 = vmatpush.bf16.msra.mxu0 %v4241
      %4281 = vmatmul.bf16.gmra.mxu0 %v1891
      %v4282 = vpop.f32.mrf.mxu0
      %v4283 = vadd.f32 0.0, %v4282
      %v4284 = vpop.f32.mrf.mxu0
      %v4285 = vadd.f32 0.0, %v4284
      %4286 = vdwg.mxu0
      %4287 = vmatpush.bf16.msra.mxu0 %v4256
      %4288 = vmatpush.bf16.msra.mxu0 %v4255
      %4289 = vmatpush.bf16.msra.mxu0 %v4254
      %4290 = vmatpush.bf16.msra.mxu0 %v4253
      %4291 = vmatpush.bf16.msra.mxu0 %v4252
      %4292 = vmatpush.bf16.msra.mxu0 %v4251
      %4293 = vmatpush.bf16.msra.mxu0 %v4250
      %4294 = vmatpush.bf16.msra.mxu0 %v4249
      %4295 = vmatmul.bf16.gmra.mxu0 %v1892
      %v4296 = vpop.f32.mrf.mxu0
      %v4297 = vadd.f32 %v4283, %v4296
      %v4298 = vpop.f32.mrf.mxu0
      %v4299 = vadd.f32 %v4285, %v4298
      %4300 = vdwg.mxu0
      %v4333 = vunpack.c.l.b16 %v3145
      %v4334 = vunpack.c.l.b16 %v3146
      %v4335 = vunpack.c.l.b16 %v3147
      %v4336 = vunpack.c.l.b16 %v3148
      %v4337 = vunpack.c.l.b16 %v3149
      %v4338 = vunpack.c.l.b16 %v3150
      %v4339 = vunpack.c.l.b16 %v3151
      %v4340 = vunpack.c.l.b16 %v3152
      %v4341 = vunpack.c.l.b16 %v3153
      %v4342 = vunpack.c.l.b16 %v3154
      %v4343 = vunpack.c.l.b16 %v3155
      %v4344 = vunpack.c.l.b16 %v3156
      %v4345 = vunpack.c.l.b16 %v3157
      %v4346 = vunpack.c.l.b16 %v3158
      %v4347 = vunpack.c.l.b16 %v3159
      %v4348 = vunpack.c.l.b16 %v3160
      %v4349 = vunpack.c.l.b16 %v3161
      %v4350 = vunpack.c.l.b16 %v3162
      %v4351 = vunpack.c.l.b16 %v3163
      %v4352 = vunpack.c.l.b16 %v3164
      %v4353 = vunpack.c.l.b16 %v3165
      %v4354 = vunpack.c.l.b16 %v3166
      %v4355 = vunpack.c.l.b16 %v3167
      %v4356 = vunpack.c.l.b16 %v3168
      %v4357 = vunpack.c.l.b16 %v3169
      %v4358 = vunpack.c.l.b16 %v3170
      %v4359 = vunpack.c.l.b16 %v3171
      %v4360 = vunpack.c.l.b16 %v3172
      %v4361 = vunpack.c.l.b16 %v3173
      %v4362 = vunpack.c.l.b16 %v3174
      %v4363 = vunpack.c.l.b16 %v3175
      %v4364 = vunpack.c.l.b16 %v3176
      %v4365 = vpack.c.b16 %v4334, %v4333
      %v4366 = vpack.c.b16 %v4336, %v4335
      %v4367 = vpack.c.b16 %v4338, %v4337
      %v4368 = vpack.c.b16 %v4340, %v4339
      %v4369 = vpack.c.b16 %v4342, %v4341
      %v4370 = vpack.c.b16 %v4344, %v4343
      %v4371 = vpack.c.b16 %v4346, %v4345
      %v4372 = vpack.c.b16 %v4348, %v4347
      %v4373 = vpack.c.b16 %v4350, %v4349
      %v4374 = vpack.c.b16 %v4352, %v4351
      %v4375 = vpack.c.b16 %v4354, %v4353
      %v4376 = vpack.c.b16 %v4356, %v4355
      %v4377 = vpack.c.b16 %v4358, %v4357
      %v4378 = vpack.c.b16 %v4360, %v4359
      %v4379 = vpack.c.b16 %v4362, %v4361
      %v4380 = vpack.c.b16 %v4364, %v4363
      %4397 = vmatpush.bf16.msra.mxu0 %v4372
      %4398 = vmatpush.bf16.msra.mxu0 %v4371
      %4399 = vmatpush.bf16.msra.mxu0 %v4370
      %4400 = vmatpush.bf16.msra.mxu0 %v4369
      %4401 = vmatpush.bf16.msra.mxu0 %v4368
      %4402 = vmatpush.bf16.msra.mxu0 %v4367
      %4403 = vmatpush.bf16.msra.mxu0 %v4366
      %4404 = vmatpush.bf16.msra.mxu0 %v4365
      %4405 = vmatmul.bf16.gmra.mxu0 %v1893
      %v4406 = vpop.f32.mrf.mxu0
      %v4407 = vadd.f32 0.0, %v4406
      %v4408 = vpop.f32.mrf.mxu0
      %v4409 = vadd.f32 0.0, %v4408
      %4410 = vdwg.mxu0
      %4411 = vmatpush.bf16.msra.mxu0 %v4380
      %4412 = vmatpush.bf16.msra.mxu0 %v4379
      %4413 = vmatpush.bf16.msra.mxu0 %v4378
      %4414 = vmatpush.bf16.msra.mxu0 %v4377
      %4415 = vmatpush.bf16.msra.mxu0 %v4376
      %4416 = vmatpush.bf16.msra.mxu0 %v4375
      %4417 = vmatpush.bf16.msra.mxu0 %v4374
      %4418 = vmatpush.bf16.msra.mxu0 %v4373
      %4419 = vmatmul.bf16.gmra.mxu0 %v1894
      %v4420 = vpop.f32.mrf.mxu0
      %v4421 = vadd.f32 %v4407, %v4420
      %v4422 = vpop.f32.mrf.mxu0
      %v4423 = vadd.f32 %v4409, %v4422
      %4424 = vdwg.mxu0
      %v4457 = vunpack.c.l.b16 %v3177
      %v4458 = vunpack.c.l.b16 %v3178
      %v4459 = vunpack.c.l.b16 %v3179
      %v4460 = vunpack.c.l.b16 %v3180
      %v4461 = vunpack.c.l.b16 %v3181
      %v4462 = vunpack.c.l.b16 %v3182
      %v4463 = vunpack.c.l.b16 %v3183
      %v4464 = vunpack.c.l.b16 %v3184
      %v4465 = vunpack.c.l.b16 %v3185
      %v4466 = vunpack.c.l.b16 %v3186
      %v4467 = vunpack.c.l.b16 %v3187
      %v4468 = vunpack.c.l.b16 %v3188
      %v4469 = vunpack.c.l.b16 %v3189
      %v4470 = vunpack.c.l.b16 %v3190
      %v4471 = vunpack.c.l.b16 %v3191
      %v4472 = vunpack.c.l.b16 %v3192
      %v4473 = vunpack.c.l.b16 %v3193
      %v4474 = vunpack.c.l.b16 %v3194
      %v4475 = vunpack.c.l.b16 %v3195
      %v4476 = vunpack.c.l.b16 %v3196
      %v4477 = vunpack.c.l.b16 %v3197
      %v4478 = vunpack.c.l.b16 %v3198
      %v4479 = vunpack.c.l.b16 %v3199
      %v4480 = vunpack.c.l.b16 %v3200
      %v4481 = vunpack.c.l.b16 %v3201
      %v4482 = vunpack.c.l.b16 %v3202
      %v4483 = vunpack.c.l.b16 %v3203
      %v4484 = vunpack.c.l.b16 %v3204
      %v4485 = vunpack.c.l.b16 %v3205
      %v4486 = vunpack.c.l.b16 %v3206
      %v4487 = vunpack.c.l.b16 %v3207
      %v4488 = vunpack.c.l.b16 %v3208
      %v4489 = vpack.c.b16 %v4458, %v4457
      %v4490 = vpack.c.b16 %v4460, %v4459
      %v4491 = vpack.c.b16 %v4462, %v4461
      %v4492 = vpack.c.b16 %v4464, %v4463
      %v4493 = vpack.c.b16 %v4466, %v4465
      %v4494 = vpack.c.b16 %v4468, %v4467
      %v4495 = vpack.c.b16 %v4470, %v4469
      %v4496 = vpack.c.b16 %v4472, %v4471
      %v4497 = vpack.c.b16 %v4474, %v4473
      %v4498 = vpack.c.b16 %v4476, %v4475
      %v4499 = vpack.c.b16 %v4478, %v4477
      %v4500 = vpack.c.b16 %v4480, %v4479
      %v4501 = vpack.c.b16 %v4482, %v4481
      %v4502 = vpack.c.b16 %v4484, %v4483
      %v4503 = vpack.c.b16 %v4486, %v4485
      %v4504 = vpack.c.b16 %v4488, %v4487
      %4521 = vmatpush.bf16.msra.mxu0 %v4496
      %4522 = vmatpush.bf16.msra.mxu0 %v4495
      %4523 = vmatpush.bf16.msra.mxu0 %v4494
      %4524 = vmatpush.bf16.msra.mxu0 %v4493
      %4525 = vmatpush.bf16.msra.mxu0 %v4492
      %4526 = vmatpush.bf16.msra.mxu0 %v4491
      %4527 = vmatpush.bf16.msra.mxu0 %v4490
      %4528 = vmatpush.bf16.msra.mxu0 %v4489
      %4529 = vmatmul.bf16.gmra.mxu0 %v1895
      %v4530 = vpop.f32.mrf.mxu0
      %v4531 = vadd.f32 0.0, %v4530
      %v4532 = vpop.f32.mrf.mxu0
      %v4533 = vadd.f32 0.0, %v4532
      %4534 = vdwg.mxu0
      %4535 = vmatpush.bf16.msra.mxu0 %v4504
      %4536 = vmatpush.bf16.msra.mxu0 %v4503
      %4537 = vmatpush.bf16.msra.mxu0 %v4502
      %4538 = vmatpush.bf16.msra.mxu0 %v4501
      %4539 = vmatpush.bf16.msra.mxu0 %v4500
      %4540 = vmatpush.bf16.msra.mxu0 %v4499
      %4541 = vmatpush.bf16.msra.mxu0 %v4498
      %4542 = vmatpush.bf16.msra.mxu0 %v4497
      %4543 = vmatmul.bf16.gmra.mxu0 %v1896
      %v4544 = vpop.f32.mrf.mxu0
      %v4545 = vadd.f32 %v4531, %v4544
      %v4546 = vpop.f32.mrf.mxu0
      %v4547 = vadd.f32 %v4533, %v4546
      %4548 = vdwg.mxu0
      %v4581 = vunpack.c.l.b16 %v3209
      %v4582 = vunpack.c.l.b16 %v3210
      %v4583 = vunpack.c.l.b16 %v3211
      %v4584 = vunpack.c.l.b16 %v3212
      %v4585 = vunpack.c.l.b16 %v3213
      %v4586 = vunpack.c.l.b16 %v3214
      %v4587 = vunpack.c.l.b16 %v3215
      %v4588 = vunpack.c.l.b16 %v3216
      %v4589 = vunpack.c.l.b16 %v3217
      %v4590 = vunpack.c.l.b16 %v3218
      %v4591 = vunpack.c.l.b16 %v3219
      %v4592 = vunpack.c.l.b16 %v3220
      %v4593 = vunpack.c.l.b16 %v3221
      %v4594 = vunpack.c.l.b16 %v3222
      %v4595 = vunpack.c.l.b16 %v3223
      %v4596 = vunpack.c.l.b16 %v3224
      %v4597 = vunpack.c.l.b16 %v3225
      %v4598 = vunpack.c.l.b16 %v3226
      %v4599 = vunpack.c.l.b16 %v3227
      %v4600 = vunpack.c.l.b16 %v3228
      %v4601 = vunpack.c.l.b16 %v3229
      %v4602 = vunpack.c.l.b16 %v3230
      %v4603 = vunpack.c.l.b16 %v3231
      %v4604 = vunpack.c.l.b16 %v3232
      %v4605 = vunpack.c.l.b16 %v3233
      %v4606 = vunpack.c.l.b16 %v3234
      %v4607 = vunpack.c.l.b16 %v3235
      %v4608 = vunpack.c.l.b16 %v3236
      %v4609 = vunpack.c.l.b16 %v3237
      %v4610 = vunpack.c.l.b16 %v3238
      %v4611 = vunpack.c.l.b16 %v3239
      %v4612 = vunpack.c.l.b16 %v3240
      %v4613 = vpack.c.b16 %v4582, %v4581
      %v4614 = vpack.c.b16 %v4584, %v4583
      %v4615 = vpack.c.b16 %v4586, %v4585
      %v4616 = vpack.c.b16 %v4588, %v4587
      %v4617 = vpack.c.b16 %v4590, %v4589
      %v4618 = vpack.c.b16 %v4592, %v4591
      %v4619 = vpack.c.b16 %v4594, %v4593
      %v4620 = vpack.c.b16 %v4596, %v4595
      %v4621 = vpack.c.b16 %v4598, %v4597
      %v4622 = vpack.c.b16 %v4600, %v4599
      %v4623 = vpack.c.b16 %v4602, %v4601
      %v4624 = vpack.c.b16 %v4604, %v4603
      %v4625 = vpack.c.b16 %v4606, %v4605
      %v4626 = vpack.c.b16 %v4608, %v4607
      %v4627 = vpack.c.b16 %v4610, %v4609
      %v4628 = vpack.c.b16 %v4612, %v4611
      %4645 = vmatpush.bf16.msra.mxu0 %v4620
      %4646 = vmatpush.bf16.msra.mxu0 %v4619
      %4647 = vmatpush.bf16.msra.mxu0 %v4618
      %4648 = vmatpush.bf16.msra.mxu0 %v4617
      %4649 = vmatpush.bf16.msra.mxu0 %v4616
      %4650 = vmatpush.bf16.msra.mxu0 %v4615
      %4651 = vmatpush.bf16.msra.mxu0 %v4614
      %4652 = vmatpush.bf16.msra.mxu0 %v4613
      %4653 = vmatmul.bf16.gmra.mxu0 %v1897
      %v4654 = vpop.f32.mrf.mxu0
      %v4655 = vadd.f32 0.0, %v4654
      %v4656 = vpop.f32.mrf.mxu0
      %v4657 = vadd.f32 0.0, %v4656
      %4658 = vdwg.mxu0
      %4659 = vmatpush.bf16.msra.mxu0 %v4628
      %4660 = vmatpush.bf16.msra.mxu0 %v4627
      %4661 = vmatpush.bf16.msra.mxu0 %v4626
      %4662 = vmatpush.bf16.msra.mxu0 %v4625
      %4663 = vmatpush.bf16.msra.mxu0 %v4624
      %4664 = vmatpush.bf16.msra.mxu0 %v4623
      %4665 = vmatpush.bf16.msra.mxu0 %v4622
      %4666 = vmatpush.bf16.msra.mxu0 %v4621
      %4667 = vmatmul.bf16.gmra.mxu0 %v1898
      %v4668 = vpop.f32.mrf.mxu0
      %v4669 = vadd.f32 %v4655, %v4668
      %v4670 = vpop.f32.mrf.mxu0
      %v4671 = vadd.f32 %v4657, %v4670
      %4672 = vdwg.mxu0
      %v4705 = vunpack.c.l.b16 %v3241
      %v4706 = vunpack.c.l.b16 %v3242
      %v4707 = vunpack.c.l.b16 %v3243
      %v4708 = vunpack.c.l.b16 %v3244
      %v4709 = vunpack.c.l.b16 %v3245
      %v4710 = vunpack.c.l.b16 %v3246
      %v4711 = vunpack.c.l.b16 %v3247
      %v4712 = vunpack.c.l.b16 %v3248
      %v4713 = vunpack.c.l.b16 %v3249
      %v4714 = vunpack.c.l.b16 %v3250
      %v4715 = vunpack.c.l.b16 %v3251
      %v4716 = vunpack.c.l.b16 %v3252
      %v4717 = vunpack.c.l.b16 %v3253
      %v4718 = vunpack.c.l.b16 %v3254
      %v4719 = vunpack.c.l.b16 %v3255
      %v4720 = vunpack.c.l.b16 %v3256
      %v4721 = vunpack.c.l.b16 %v3257
      %v4722 = vunpack.c.l.b16 %v3258
      %v4723 = vunpack.c.l.b16 %v3259
      %v4724 = vunpack.c.l.b16 %v3260
      %v4725 = vunpack.c.l.b16 %v3261
      %v4726 = vunpack.c.l.b16 %v3262
      %v4727 = vunpack.c.l.b16 %v3263
      %v4728 = vunpack.c.l.b16 %v3264
      %v4729 = vunpack.c.l.b16 %v3265
      %v4730 = vunpack.c.l.b16 %v3266
      %v4731 = vunpack.c.l.b16 %v3267
      %v4732 = vunpack.c.l.b16 %v3268
      %v4733 = vunpack.c.l.b16 %v3269
      %v4734 = vunpack.c.l.b16 %v3270
      %v4735 = vunpack.c.l.b16 %v3271
      %v4736 = vunpack.c.l.b16 %v3272
      %v4737 = vpack.c.b16 %v4706, %v4705
      %v4738 = vpack.c.b16 %v4708, %v4707
      %v4739 = vpack.c.b16 %v4710, %v4709
      %v4740 = vpack.c.b16 %v4712, %v4711
      %v4741 = vpack.c.b16 %v4714, %v4713
      %v4742 = vpack.c.b16 %v4716, %v4715
      %v4743 = vpack.c.b16 %v4718, %v4717
      %v4744 = vpack.c.b16 %v4720, %v4719
      %v4745 = vpack.c.b16 %v4722, %v4721
      %v4746 = vpack.c.b16 %v4724, %v4723
      %v4747 = vpack.c.b16 %v4726, %v4725
      %v4748 = vpack.c.b16 %v4728, %v4727
      %v4749 = vpack.c.b16 %v4730, %v4729
      %v4750 = vpack.c.b16 %v4732, %v4731
      %v4751 = vpack.c.b16 %v4734, %v4733
      %v4752 = vpack.c.b16 %v4736, %v4735
      %4769 = vmatpush.bf16.msra.mxu0 %v4744
      %4770 = vmatpush.bf16.msra.mxu0 %v4743
      %4771 = vmatpush.bf16.msra.mxu0 %v4742
      %4772 = vmatpush.bf16.msra.mxu0 %v4741
      %4773 = vmatpush.bf16.msra.mxu0 %v4740
      %4774 = vmatpush.bf16.msra.mxu0 %v4739
      %4775 = vmatpush.bf16.msra.mxu0 %v4738
      %4776 = vmatpush.bf16.msra.mxu0 %v4737
      %4777 = vmatmul.bf16.gmra.mxu0 %v1899
      %v4778 = vpop.f32.mrf.mxu0
      %v4779 = vadd.f32 0.0, %v4778
      %v4780 = vpop.f32.mrf.mxu0
      %v4781 = vadd.f32 0.0, %v4780
      %4782 = vdwg.mxu0
      %4783 = vmatpush.bf16.msra.mxu0 %v4752
      %4784 = vmatpush.bf16.msra.mxu0 %v4751
      %4785 = vmatpush.bf16.msra.mxu0 %v4750
      %4786 = vmatpush.bf16.msra.mxu0 %v4749
      %4787 = vmatpush.bf16.msra.mxu0 %v4748
      %4788 = vmatpush.bf16.msra.mxu0 %v4747
      %4789 = vmatpush.bf16.msra.mxu0 %v4746
      %4790 = vmatpush.bf16.msra.mxu0 %v4745
      %4791 = vmatmul.bf16.gmra.mxu0 %v1900
      %v4792 = vpop.f32.mrf.mxu0
      %v4793 = vadd.f32 %v4779, %v4792
      %v4794 = vpop.f32.mrf.mxu0
      %v4795 = vadd.f32 %v4781, %v4794
      %4796 = vdwg.mxu0
      %v4829 = vunpack.c.l.b16 %v3273
      %v4830 = vunpack.c.l.b16 %v3274
      %v4831 = vunpack.c.l.b16 %v3275
      %v4832 = vunpack.c.l.b16 %v3276
      %v4833 = vunpack.c.l.b16 %v3277
      %v4834 = vunpack.c.l.b16 %v3278
      %v4835 = vunpack.c.l.b16 %v3279
      %v4836 = vunpack.c.l.b16 %v3280
      %v4837 = vunpack.c.l.b16 %v3281
      %v4838 = vunpack.c.l.b16 %v3282
      %v4839 = vunpack.c.l.b16 %v3283
      %v4840 = vunpack.c.l.b16 %v3284
      %v4841 = vunpack.c.l.b16 %v3285
      %v4842 = vunpack.c.l.b16 %v3286
      %v4843 = vunpack.c.l.b16 %v3287
      %v4844 = vunpack.c.l.b16 %v3288
      %v4845 = vunpack.c.l.b16 %v3289
      %v4846 = vunpack.c.l.b16 %v3290
      %v4847 = vunpack.c.l.b16 %v3291
      %v4848 = vunpack.c.l.b16 %v3292
      %v4849 = vunpack.c.l.b16 %v3293
      %v4850 = vunpack.c.l.b16 %v3294
      %v4851 = vunpack.c.l.b16 %v3295
      %v4852 = vunpack.c.l.b16 %v3296
      %v4853 = vunpack.c.l.b16 %v3297
      %v4854 = vunpack.c.l.b16 %v3298
      %v4855 = vunpack.c.l.b16 %v3299
      %v4856 = vunpack.c.l.b16 %v3300
      %v4857 = vunpack.c.l.b16 %v3301
      %v4858 = vunpack.c.l.b16 %v3302
      %v4859 = vunpack.c.l.b16 %v3303
      %v4860 = vunpack.c.l.b16 %v3304
      %v4861 = vpack.c.b16 %v4830, %v4829
      %v4862 = vpack.c.b16 %v4832, %v4831
      %v4863 = vpack.c.b16 %v4834, %v4833
      %v4864 = vpack.c.b16 %v4836, %v4835
      %v4865 = vpack.c.b16 %v4838, %v4837
      %v4866 = vpack.c.b16 %v4840, %v4839
      %v4867 = vpack.c.b16 %v4842, %v4841
      %v4868 = vpack.c.b16 %v4844, %v4843
      %v4869 = vpack.c.b16 %v4846, %v4845
      %v4870 = vpack.c.b16 %v4848, %v4847
      %v4871 = vpack.c.b16 %v4850, %v4849
      %v4872 = vpack.c.b16 %v4852, %v4851
      %v4873 = vpack.c.b16 %v4854, %v4853
      %v4874 = vpack.c.b16 %v4856, %v4855
      %v4875 = vpack.c.b16 %v4858, %v4857
      %v4876 = vpack.c.b16 %v4860, %v4859
      %4893 = vmatpush.bf16.msra.mxu0 %v4868
      %4894 = vmatpush.bf16.msra.mxu0 %v4867
      %4895 = vmatpush.bf16.msra.mxu0 %v4866
      %4896 = vmatpush.bf16.msra.mxu0 %v4865
      %4897 = vmatpush.bf16.msra.mxu0 %v4864
      %4898 = vmatpush.bf16.msra.mxu0 %v4863
      %4899 = vmatpush.bf16.msra.mxu0 %v4862
      %4900 = vmatpush.bf16.msra.mxu0 %v4861
      %4901 = vmatmul.bf16.gmra.mxu0 %v1901
      %v4902 = vpop.f32.mrf.mxu0
      %v4903 = vadd.f32 0.0, %v4902
      %v4904 = vpop.f32.mrf.mxu0
      %v4905 = vadd.f32 0.0, %v4904
      %4906 = vdwg.mxu0
      %4907 = vmatpush.bf16.msra.mxu0 %v4876
      %4908 = vmatpush.bf16.msra.mxu0 %v4875
      %4909 = vmatpush.bf16.msra.mxu0 %v4874
      %4910 = vmatpush.bf16.msra.mxu0 %v4873
      %4911 = vmatpush.bf16.msra.mxu0 %v4872
      %4912 = vmatpush.bf16.msra.mxu0 %v4871
      %4913 = vmatpush.bf16.msra.mxu0 %v4870
      %4914 = vmatpush.bf16.msra.mxu0 %v4869
      %4915 = vmatmul.bf16.gmra.mxu0 %v1902
      %v4916 = vpop.f32.mrf.mxu0
      %v4917 = vadd.f32 %v4903, %v4916
      %v4918 = vpop.f32.mrf.mxu0
      %v4919 = vadd.f32 %v4905, %v4918
      %4920 = vdwg.mxu0
      %v4953 = vunpack.c.l.b16 %v3305
      %v4954 = vunpack.c.l.b16 %v3306
      %v4955 = vunpack.c.l.b16 %v3307
      %v4956 = vunpack.c.l.b16 %v3308
      %v4957 = vunpack.c.l.b16 %v3309
      %v4958 = vunpack.c.l.b16 %v3310
      %v4959 = vunpack.c.l.b16 %v3311
      %v4960 = vunpack.c.l.b16 %v3312
      %v4961 = vunpack.c.l.b16 %v3313
      %v4962 = vunpack.c.l.b16 %v3314
      %v4963 = vunpack.c.l.b16 %v3315
      %v4964 = vunpack.c.l.b16 %v3316
      %v4965 = vunpack.c.l.b16 %v3317
      %v4966 = vunpack.c.l.b16 %v3318
      %v4967 = vunpack.c.l.b16 %v3319
      %v4968 = vunpack.c.l.b16 %v3320
      %v4969 = vunpack.c.l.b16 %v3321
      %v4970 = vunpack.c.l.b16 %v3322
      %v4971 = vunpack.c.l.b16 %v3323
      %v4972 = vunpack.c.l.b16 %v3324
      %v4973 = vunpack.c.l.b16 %v3325
      %v4974 = vunpack.c.l.b16 %v3326
      %v4975 = vunpack.c.l.b16 %v3327
      %v4976 = vunpack.c.l.b16 %v3328
      %v4977 = vunpack.c.l.b16 %v3329
      %v4978 = vunpack.c.l.b16 %v3330
      %v4979 = vunpack.c.l.b16 %v3331
      %v4980 = vunpack.c.l.b16 %v3332
      %v4981 = vunpack.c.l.b16 %v3333
      %v4982 = vunpack.c.l.b16 %v3334
      %v4983 = vunpack.c.l.b16 %v3335
      %v4984 = vunpack.c.l.b16 %v3336
      %v4985 = vpack.c.b16 %v4954, %v4953
      %v4986 = vpack.c.b16 %v4956, %v4955
      %v4987 = vpack.c.b16 %v4958, %v4957
      %v4988 = vpack.c.b16 %v4960, %v4959
      %v4989 = vpack.c.b16 %v4962, %v4961
      %v4990 = vpack.c.b16 %v4964, %v4963
      %v4991 = vpack.c.b16 %v4966, %v4965
      %v4992 = vpack.c.b16 %v4968, %v4967
      %v4993 = vpack.c.b16 %v4970, %v4969
      %v4994 = vpack.c.b16 %v4972, %v4971
      %v4995 = vpack.c.b16 %v4974, %v4973
      %v4996 = vpack.c.b16 %v4976, %v4975
      %v4997 = vpack.c.b16 %v4978, %v4977
      %v4998 = vpack.c.b16 %v4980, %v4979
      %v4999 = vpack.c.b16 %v4982, %v4981
      %v5000 = vpack.c.b16 %v4984, %v4983
      %5017 = vmatpush.bf16.msra.mxu0 %v4992
      %5018 = vmatpush.bf16.msra.mxu0 %v4991
      %5019 = vmatpush.bf16.msra.mxu0 %v4990
      %5020 = vmatpush.bf16.msra.mxu0 %v4989
      %5021 = vmatpush.bf16.msra.mxu0 %v4988
      %5022 = vmatpush.bf16.msra.mxu0 %v4987
      %5023 = vmatpush.bf16.msra.mxu0 %v4986
      %5024 = vmatpush.bf16.msra.mxu0 %v4985
      %5025 = vmatmul.bf16.gmra.mxu0 %v1903
      %v5026 = vpop.f32.mrf.mxu0
      %v5027 = vadd.f32 0.0, %v5026
      %v5028 = vpop.f32.mrf.mxu0
      %v5029 = vadd.f32 0.0, %v5028
      %5030 = vdwg.mxu0
      %5031 = vmatpush.bf16.msra.mxu0 %v5000
      %5032 = vmatpush.bf16.msra.mxu0 %v4999
      %5033 = vmatpush.bf16.msra.mxu0 %v4998
      %5034 = vmatpush.bf16.msra.mxu0 %v4997
      %5035 = vmatpush.bf16.msra.mxu0 %v4996
      %5036 = vmatpush.bf16.msra.mxu0 %v4995
      %5037 = vmatpush.bf16.msra.mxu0 %v4994
      %5038 = vmatpush.bf16.msra.mxu0 %v4993
      %5039 = vmatmul.bf16.gmra.mxu0 %v1904
      %v5040 = vpop.f32.mrf.mxu0
      %v5041 = vadd.f32 %v5027, %v5040
      %v5042 = vpop.f32.mrf.mxu0
      %v5043 = vadd.f32 %v5029, %v5042
      %5044 = vdwg.mxu0
      %v5077 = vunpack.c.l.b16 %v3337
      %v5078 = vunpack.c.l.b16 %v3338
      %v5079 = vunpack.c.l.b16 %v3339
      %v5080 = vunpack.c.l.b16 %v3340
      %v5081 = vunpack.c.l.b16 %v3341
      %v5082 = vunpack.c.l.b16 %v3342
      %v5083 = vunpack.c.l.b16 %v3343
      %v5084 = vunpack.c.l.b16 %v3344
      %v5085 = vunpack.c.l.b16 %v3345
      %v5086 = vunpack.c.l.b16 %v3346
      %v5087 = vunpack.c.l.b16 %v3347
      %v5088 = vunpack.c.l.b16 %v3348
      %v5089 = vunpack.c.l.b16 %v3349
      %v5090 = vunpack.c.l.b16 %v3350
      %v5091 = vunpack.c.l.b16 %v3351
      %v5092 = vunpack.c.l.b16 %v3352
      %v5093 = vunpack.c.l.b16 %v3353
      %v5094 = vunpack.c.l.b16 %v3354
      %v5095 = vunpack.c.l.b16 %v3355
      %v5096 = vunpack.c.l.b16 %v3356
      %v5097 = vunpack.c.l.b16 %v3357
      %v5098 = vunpack.c.l.b16 %v3358
      %v5099 = vunpack.c.l.b16 %v3359
      %v5100 = vunpack.c.l.b16 %v3360
      %v5101 = vunpack.c.l.b16 %v3361
      %v5102 = vunpack.c.l.b16 %v3362
      %v5103 = vunpack.c.l.b16 %v3363
      %v5104 = vunpack.c.l.b16 %v3364
      %v5105 = vunpack.c.l.b16 %v3365
      %v5106 = vunpack.c.l.b16 %v3366
      %v5107 = vunpack.c.l.b16 %v3367
      %v5108 = vunpack.c.l.b16 %v3368
      %v5109 = vpack.c.b16 %v5078, %v5077
      %v5110 = vpack.c.b16 %v5080, %v5079
      %v5111 = vpack.c.b16 %v5082, %v5081
      %v5112 = vpack.c.b16 %v5084, %v5083
      %v5113 = vpack.c.b16 %v5086, %v5085
      %v5114 = vpack.c.b16 %v5088, %v5087
      %v5115 = vpack.c.b16 %v5090, %v5089
      %v5116 = vpack.c.b16 %v5092, %v5091
      %v5117 = vpack.c.b16 %v5094, %v5093
      %v5118 = vpack.c.b16 %v5096, %v5095
      %v5119 = vpack.c.b16 %v5098, %v5097
      %v5120 = vpack.c.b16 %v5100, %v5099
      %v5121 = vpack.c.b16 %v5102, %v5101
      %v5122 = vpack.c.b16 %v5104, %v5103
      %v5123 = vpack.c.b16 %v5106, %v5105
      %v5124 = vpack.c.b16 %v5108, %v5107
      %5141 = vmatpush.bf16.msra.mxu0 %v5116
      %5142 = vmatpush.bf16.msra.mxu0 %v5115
      %5143 = vmatpush.bf16.msra.mxu0 %v5114
      %5144 = vmatpush.bf16.msra.mxu0 %v5113
      %5145 = vmatpush.bf16.msra.mxu0 %v5112
      %5146 = vmatpush.bf16.msra.mxu0 %v5111
      %5147 = vmatpush.bf16.msra.mxu0 %v5110
      %5148 = vmatpush.bf16.msra.mxu0 %v5109
      %5149 = vmatmul.bf16.gmra.mxu0 %v1905
      %v5150 = vpop.f32.mrf.mxu0
      %v5151 = vadd.f32 0.0, %v5150
      %v5152 = vpop.f32.mrf.mxu0
      %v5153 = vadd.f32 0.0, %v5152
      %5154 = vdwg.mxu0
      %5155 = vmatpush.bf16.msra.mxu0 %v5124
      %5156 = vmatpush.bf16.msra.mxu0 %v5123
      %5157 = vmatpush.bf16.msra.mxu0 %v5122
      %5158 = vmatpush.bf16.msra.mxu0 %v5121
      %5159 = vmatpush.bf16.msra.mxu0 %v5120
      %5160 = vmatpush.bf16.msra.mxu0 %v5119
      %5161 = vmatpush.bf16.msra.mxu0 %v5118
      %5162 = vmatpush.bf16.msra.mxu0 %v5117
      %5163 = vmatmul.bf16.gmra.mxu0 %v1906
      %v5164 = vpop.f32.mrf.mxu0
      %v5165 = vadd.f32 %v5151, %v5164
      %v5166 = vpop.f32.mrf.mxu0
      %v5167 = vadd.f32 %v5153, %v5166
      %5168 = vdwg.mxu0
      %v5201 = vunpack.c.l.b16 %v3369
      %v5202 = vunpack.c.l.b16 %v3370
      %v5203 = vunpack.c.l.b16 %v3371
      %v5204 = vunpack.c.l.b16 %v3372
      %v5205 = vunpack.c.l.b16 %v3373
      %v5206 = vunpack.c.l.b16 %v3374
      %v5207 = vunpack.c.l.b16 %v3375
      %v5208 = vunpack.c.l.b16 %v3376
      %v5209 = vunpack.c.l.b16 %v3377
      %v5210 = vunpack.c.l.b16 %v3378
      %v5211 = vunpack.c.l.b16 %v3379
      %v5212 = vunpack.c.l.b16 %v3380
      %v5213 = vunpack.c.l.b16 %v3381
      %v5214 = vunpack.c.l.b16 %v3382
      %v5215 = vunpack.c.l.b16 %v3383
      %v5216 = vunpack.c.l.b16 %v3384
      %v5217 = vunpack.c.l.b16 %v3385
      %v5218 = vunpack.c.l.b16 %v3386
      %v5219 = vunpack.c.l.b16 %v3387
      %v5220 = vunpack.c.l.b16 %v3388
      %v5221 = vunpack.c.l.b16 %v3389
      %v5222 = vunpack.c.l.b16 %v3390
      %v5223 = vunpack.c.l.b16 %v3391
      %v5224 = vunpack.c.l.b16 %v3392
      %v5225 = vunpack.c.l.b16 %v3393
      %v5226 = vunpack.c.l.b16 %v3394
      %v5227 = vunpack.c.l.b16 %v3395
      %v5228 = vunpack.c.l.b16 %v3396
      %v5229 = vunpack.c.l.b16 %v3397
      %v5230 = vunpack.c.l.b16 %v3398
      %v5231 = vunpack.c.l.b16 %v3399
      %v5232 = vunpack.c.l.b16 %v3400
      %v5233 = vpack.c.b16 %v5202, %v5201
      %v5234 = vpack.c.b16 %v5204, %v5203
      %v5235 = vpack.c.b16 %v5206, %v5205
      %v5236 = vpack.c.b16 %v5208, %v5207
      %v5237 = vpack.c.b16 %v5210, %v5209
      %v5238 = vpack.c.b16 %v5212, %v5211
      %v5239 = vpack.c.b16 %v5214, %v5213
      %v5240 = vpack.c.b16 %v5216, %v5215
      %v5241 = vpack.c.b16 %v5218, %v5217
      %v5242 = vpack.c.b16 %v5220, %v5219
      %v5243 = vpack.c.b16 %v5222, %v5221
      %v5244 = vpack.c.b16 %v5224, %v5223
      %v5245 = vpack.c.b16 %v5226, %v5225
      %v5246 = vpack.c.b16 %v5228, %v5227
      %v5247 = vpack.c.b16 %v5230, %v5229
      %v5248 = vpack.c.b16 %v5232, %v5231
      %5265 = vmatpush.bf16.msra.mxu0 %v5240
      %5266 = vmatpush.bf16.msra.mxu0 %v5239
      %5267 = vmatpush.bf16.msra.mxu0 %v5238
      %5268 = vmatpush.bf16.msra.mxu0 %v5237
      %5269 = vmatpush.bf16.msra.mxu0 %v5236
      %5270 = vmatpush.bf16.msra.mxu0 %v5235
      %5271 = vmatpush.bf16.msra.mxu0 %v5234
      %5272 = vmatpush.bf16.msra.mxu0 %v5233
      %5273 = vmatmul.bf16.gmra.mxu0 %v1907
      %v5274 = vpop.f32.mrf.mxu0
      %v5275 = vadd.f32 0.0, %v5274
      %v5276 = vpop.f32.mrf.mxu0
      %v5277 = vadd.f32 0.0, %v5276
      %5278 = vdwg.mxu0
      %5279 = vmatpush.bf16.msra.mxu0 %v5248
      %5280 = vmatpush.bf16.msra.mxu0 %v5247
      %5281 = vmatpush.bf16.msra.mxu0 %v5246
      %5282 = vmatpush.bf16.msra.mxu0 %v5245
      %5283 = vmatpush.bf16.msra.mxu0 %v5244
      %5284 = vmatpush.bf16.msra.mxu0 %v5243
      %5285 = vmatpush.bf16.msra.mxu0 %v5242
      %5286 = vmatpush.bf16.msra.mxu0 %v5241
      %5287 = vmatmul.bf16.gmra.mxu0 %v1908
      %v5288 = vpop.f32.mrf.mxu0
      %v5289 = vadd.f32 %v5275, %v5288
      %v5290 = vpop.f32.mrf.mxu0
      %v5291 = vadd.f32 %v5277, %v5290
      %5292 = vdwg.mxu0
      %v5325 = vunpack.c.l.b16 %v3401
      %v5326 = vunpack.c.l.b16 %v3402
      %v5327 = vunpack.c.l.b16 %v3403
      %v5328 = vunpack.c.l.b16 %v3404
      %v5329 = vunpack.c.l.b16 %v3405
      %v5330 = vunpack.c.l.b16 %v3406
      %v5331 = vunpack.c.l.b16 %v3407
      %v5332 = vunpack.c.l.b16 %v3408
      %v5333 = vunpack.c.l.b16 %v3409
      %v5334 = vunpack.c.l.b16 %v3410
      %v5335 = vunpack.c.l.b16 %v3411
      %v5336 = vunpack.c.l.b16 %v3412
      %v5337 = vunpack.c.l.b16 %v3413
      %v5338 = vunpack.c.l.b16 %v3414
      %v5339 = vunpack.c.l.b16 %v3415
      %v5340 = vunpack.c.l.b16 %v3416
      %v5341 = vunpack.c.l.b16 %v3417
      %v5342 = vunpack.c.l.b16 %v3418
      %v5343 = vunpack.c.l.b16 %v3419
      %v5344 = vunpack.c.l.b16 %v3420
      %v5345 = vunpack.c.l.b16 %v3421
      %v5346 = vunpack.c.l.b16 %v3422
      %v5347 = vunpack.c.l.b16 %v3423
      %v5348 = vunpack.c.l.b16 %v3424
      %v5349 = vunpack.c.l.b16 %v3425
      %v5350 = vunpack.c.l.b16 %v3426
      %v5351 = vunpack.c.l.b16 %v3427
      %v5352 = vunpack.c.l.b16 %v3428
      %v5353 = vunpack.c.l.b16 %v3429
      %v5354 = vunpack.c.l.b16 %v3430
      %v5355 = vunpack.c.l.b16 %v3431
      %v5356 = vunpack.c.l.b16 %v3432
      %v5357 = vpack.c.b16 %v5326, %v5325
      %v5358 = vpack.c.b16 %v5328, %v5327
      %v5359 = vpack.c.b16 %v5330, %v5329
      %v5360 = vpack.c.b16 %v5332, %v5331
      %v5361 = vpack.c.b16 %v5334, %v5333
      %v5362 = vpack.c.b16 %v5336, %v5335
      %v5363 = vpack.c.b16 %v5338, %v5337
      %v5364 = vpack.c.b16 %v5340, %v5339
      %v5365 = vpack.c.b16 %v5342, %v5341
      %v5366 = vpack.c.b16 %v5344, %v5343
      %v5367 = vpack.c.b16 %v5346, %v5345
      %v5368 = vpack.c.b16 %v5348, %v5347
      %v5369 = vpack.c.b16 %v5350, %v5349
      %v5370 = vpack.c.b16 %v5352, %v5351
      %v5371 = vpack.c.b16 %v5354, %v5353
      %v5372 = vpack.c.b16 %v5356, %v5355
      %5389 = vmatpush.bf16.msra.mxu0 %v5364
      %5390 = vmatpush.bf16.msra.mxu0 %v5363
      %5391 = vmatpush.bf16.msra.mxu0 %v5362
      %5392 = vmatpush.bf16.msra.mxu0 %v5361
      %5393 = vmatpush.bf16.msra.mxu0 %v5360
      %5394 = vmatpush.bf16.msra.mxu0 %v5359
      %5395 = vmatpush.bf16.msra.mxu0 %v5358
      %5396 = vmatpush.bf16.msra.mxu0 %v5357
      %5397 = vmatmul.bf16.gmra.mxu0 %v1909
      %v5398 = vpop.f32.mrf.mxu0
      %v5399 = vadd.f32 0.0, %v5398
      %v5400 = vpop.f32.mrf.mxu0
      %v5401 = vadd.f32 0.0, %v5400
      %5402 = vdwg.mxu0
      %5403 = vmatpush.bf16.msra.mxu0 %v5372
      %5404 = vmatpush.bf16.msra.mxu0 %v5371
      %5405 = vmatpush.bf16.msra.mxu0 %v5370
      %5406 = vmatpush.bf16.msra.mxu0 %v5369
      %5407 = vmatpush.bf16.msra.mxu0 %v5368
      %5408 = vmatpush.bf16.msra.mxu0 %v5367
      %5409 = vmatpush.bf16.msra.mxu0 %v5366
      %5410 = vmatpush.bf16.msra.mxu0 %v5365
      %5411 = vmatmul.bf16.gmra.mxu0 %v1910
      %v5412 = vpop.f32.mrf.mxu0
      %v5413 = vadd.f32 %v5399, %v5412
      %v5414 = vpop.f32.mrf.mxu0
      %v5415 = vadd.f32 %v5401, %v5414
      %5416 = vdwg.mxu0
      %v5417 = vrcp.pop %v2138
      %v5418 = vrcp.pop %v2140
      %v5419 = vrcp.pop %v2143
      %v5420 = vrcp.pop %v2145
      %v5421 = vrcp.pop %v2148
      %v5422 = vrcp.pop %v2150
      %v5423 = vrcp.pop %v2153
      %v5424 = vrcp.pop %v2155
      %v5425 = vrcp.pop %v2158
      %v5426 = vrcp.pop %v2160
      %v5427 = vrcp.pop %v2163
      %v5428 = vrcp.pop %v2165
      %v5429 = vrcp.pop %v2168
      %v5430 = vrcp.pop %v2170
      %v5431 = vrcp.pop %v2173
      %v5432 = vrcp.pop %v2175
      %v5433 = vrcp.pop %v2178
      %v5434 = vrcp.pop %v2180
      %v5435 = vrcp.pop %v2183
      %v5436 = vrcp.pop %v2185
      %v5437 = vrcp.pop %v2188
      %v5438 = vrcp.pop %v2190
      %v5439 = vrcp.pop %v2193
      %v5440 = vrcp.pop %v2195
      %v5441 = vrcp.pop %v2198
      %v5442 = vrcp.pop %v2200
      %v5443 = vrcp.pop %v2203
      %v5444 = vrcp.pop %v2205
      %v5445 = vrcp.pop %v2208
      %v5446 = vrcp.pop %v2210
      %v5447 = vrcp.pop %v2213
      %v5448 = vrcp.pop %v2215
      %v5449 = vmul.f32 %v3553, %v5417
      %v5450 = vmul.f32 %v3555, %v5418
      %v5451 = vmul.f32 %v3677, %v5419
      %v5452 = vmul.f32 %v3679, %v5420
      %v5453 = vmul.f32 %v3801, %v5421
      %v5454 = vmul.f32 %v3803, %v5422
      %v5455 = vmul.f32 %v3925, %v5423
      %v5456 = vmul.f32 %v3927, %v5424
      %v5457 = vmul.f32 %v4049, %v5425
      %v5458 = vmul.f32 %v4051, %v5426
      %v5459 = vmul.f32 %v4173, %v5427
      %v5460 = vmul.f32 %v4175, %v5428
      %v5461 = vmul.f32 %v4297, %v5429
      %v5462 = vmul.f32 %v4299, %v5430
      %v5463 = vmul.f32 %v4421, %v5431
      %v5464 = vmul.f32 %v4423, %v5432
      %v5465 = vmul.f32 %v4545, %v5433
      %v5466 = vmul.f32 %v4547, %v5434
      %v5467 = vmul.f32 %v4669, %v5435
      %v5468 = vmul.f32 %v4671, %v5436
      %v5469 = vmul.f32 %v4793, %v5437
      %v5470 = vmul.f32 %v4795, %v5438
      %v5471 = vmul.f32 %v4917, %v5439
      %v5472 = vmul.f32 %v4919, %v5440
      %v5473 = vmul.f32 %v5041, %v5441
      %v5474 = vmul.f32 %v5043, %v5442
      %v5475 = vmul.f32 %v5165, %v5443
      %v5476 = vmul.f32 %v5167, %v5444
      %v5477 = vmul.f32 %v5289, %v5445
      %v5478 = vmul.f32 %v5291, %v5446
      %v5479 = vmul.f32 %v5413, %v5447
      %v5480 = vmul.f32 %v5415, %v5448
      %v5481 = vadd.f32 %v5449, %v740
      %v5482 = vadd.f32 %v5450, %v742
      %v5483 = vadd.f32 %v5451, %v745
      %v5484 = vadd.f32 %v5452, %v747
      %v5485 = vadd.f32 %v5453, %v750
      %v5486 = vadd.f32 %v5454, %v752
      %v5487 = vadd.f32 %v5455, %v755
      %v5488 = vadd.f32 %v5456, %v757
      %v5489 = vadd.f32 %v5457, %v760
      %v5490 = vadd.f32 %v5458, %v762
      %v5491 = vadd.f32 %v5459, %v765
      %v5492 = vadd.f32 %v5460, %v767
      %v5493 = vadd.f32 %v5461, %v770
      %v5494 = vadd.f32 %v5462, %v772
      %v5495 = vadd.f32 %v5463, %v775
      %v5496 = vadd.f32 %v5464, %v777
      %v5497 = vadd.f32 %v5465, %v780
      %v5498 = vadd.f32 %v5466, %v782
      %v5499 = vadd.f32 %v5467, %v785
      %v5500 = vadd.f32 %v5468, %v787
      %v5501 = vadd.f32 %v5469, %v790
      %v5502 = vadd.f32 %v5470, %v792
      %v5503 = vadd.f32 %v5471, %v795
      %v5504 = vadd.f32 %v5472, %v797
      %v5505 = vadd.f32 %v5473, %v800
      %v5506 = vadd.f32 %v5474, %v802
      %v5507 = vadd.f32 %v5475, %v805
      %v5508 = vadd.f32 %v5476, %v807
      %v5509 = vadd.f32 %v5477, %v810
      %v5510 = vadd.f32 %v5478, %v812
      %v5511 = vadd.f32 %v5479, %v815
      %v5512 = vadd.f32 %v5480, %v817
      %v5513 = vperm.slane %v335, 0
      %v5514 = vadd.f32 %v5481, %v5513
      %v5515 = vadd.f32 %v5482, %v5513
      %v5516 = vadd.f32 %v5483, %v5513
      %v5517 = vadd.f32 %v5484, %v5513
      %v5518 = vadd.f32 %v5485, %v5513
      %v5519 = vadd.f32 %v5486, %v5513
      %v5520 = vadd.f32 %v5487, %v5513
      %v5521 = vadd.f32 %v5488, %v5513
      %v5522 = vadd.f32 %v5489, %v5513
      %v5523 = vadd.f32 %v5490, %v5513
      %v5524 = vadd.f32 %v5491, %v5513
      %v5525 = vadd.f32 %v5492, %v5513
      %v5526 = vadd.f32 %v5493, %v5513
      %v5527 = vadd.f32 %v5494, %v5513
      %v5528 = vadd.f32 %v5495, %v5513
      %v5529 = vadd.f32 %v5496, %v5513
      %v5530 = vadd.f32 %v5497, %v5513
      %v5531 = vadd.f32 %v5498, %v5513
      %v5532 = vadd.f32 %v5499, %v5513
      %v5533 = vadd.f32 %v5500, %v5513
      %v5534 = vadd.f32 %v5501, %v5513
      %v5535 = vadd.f32 %v5502, %v5513
      %v5536 = vadd.f32 %v5503, %v5513
      %v5537 = vadd.f32 %v5504, %v5513
      %v5538 = vadd.f32 %v5505, %v5513
      %v5539 = vadd.f32 %v5506, %v5513
      %v5540 = vadd.f32 %v5507, %v5513
      %v5541 = vadd.f32 %v5508, %v5513
      %v5542 = vadd.f32 %v5509, %v5513
      %v5543 = vadd.f32 %v5510, %v5513
      %v5544 = vadd.f32 %v5511, %v5513
      %v5545 = vadd.f32 %v5512, %v5513
      %vm5546 = vcmask 261120
      %v5547 = vsel %vm5546, %v5514, 0.0
      %5548 = vadd.xlane.f32.xlu0 %v5547
      %v5549 = vpop.xlane.xlu0 %5548
      %v5550 = vsel %vm5546, %v5515, 0.0
      %5551 = vadd.xlane.f32.xlu0 %v5550
      %v5552 = vpop.xlane.xlu0 %5551
      %v5553 = vsel %vm5546, %v5516, 0.0
      %5554 = vadd.xlane.f32.xlu0 %v5553
      %v5555 = vpop.xlane.xlu0 %5554
      %v5556 = vsel %vm5546, %v5517, 0.0
      %5557 = vadd.xlane.f32.xlu0 %v5556
      %v5558 = vpop.xlane.xlu0 %5557
      %v5559 = vsel %vm5546, %v5518, 0.0
      %5560 = vadd.xlane.f32.xlu0 %v5559
      %v5561 = vpop.xlane.xlu0 %5560
      %v5562 = vsel %vm5546, %v5519, 0.0
      %5563 = vadd.xlane.f32.xlu0 %v5562
      %v5564 = vpop.xlane.xlu0 %5563
      %v5565 = vsel %vm5546, %v5520, 0.0
      %5566 = vadd.xlane.f32.xlu0 %v5565
      %v5567 = vpop.xlane.xlu0 %5566
      %v5568 = vsel %vm5546, %v5521, 0.0
      %5569 = vadd.xlane.f32.xlu0 %v5568
      %v5570 = vpop.xlane.xlu0 %5569
      %v5571 = vsel %vm5546, %v5522, 0.0
      %5572 = vadd.xlane.f32.xlu0 %v5571
      %v5573 = vpop.xlane.xlu0 %5572
      %v5574 = vsel %vm5546, %v5523, 0.0
      %5575 = vadd.xlane.f32.xlu0 %v5574
      %v5576 = vpop.xlane.xlu0 %5575
      %v5577 = vsel %vm5546, %v5524, 0.0
      %5578 = vadd.xlane.f32.xlu0 %v5577
      %v5579 = vpop.xlane.xlu0 %5578
      %v5580 = vsel %vm5546, %v5525, 0.0
      %5581 = vadd.xlane.f32.xlu0 %v5580
      %v5582 = vpop.xlane.xlu0 %5581
      %v5583 = vsel %vm5546, %v5526, 0.0
      %5584 = vadd.xlane.f32.xlu0 %v5583
      %v5585 = vpop.xlane.xlu0 %5584
      %v5586 = vsel %vm5546, %v5527, 0.0
      %5587 = vadd.xlane.f32.xlu0 %v5586
      %v5588 = vpop.xlane.xlu0 %5587
      %v5589 = vsel %vm5546, %v5528, 0.0
      %5590 = vadd.xlane.f32.xlu0 %v5589
      %v5591 = vpop.xlane.xlu0 %5590
      %v5592 = vsel %vm5546, %v5529, 0.0
      %5593 = vadd.xlane.f32.xlu0 %v5592
      %v5594 = vpop.xlane.xlu0 %5593
      %v5595 = vsel %vm5546, %v5530, 0.0
      %5596 = vadd.xlane.f32.xlu0 %v5595
      %v5597 = vpop.xlane.xlu0 %5596
      %v5598 = vsel %vm5546, %v5531, 0.0
      %5599 = vadd.xlane.f32.xlu0 %v5598
      %v5600 = vpop.xlane.xlu0 %5599
      %v5601 = vsel %vm5546, %v5532, 0.0
      %5602 = vadd.xlane.f32.xlu0 %v5601
      %v5603 = vpop.xlane.xlu0 %5602
      %v5604 = vsel %vm5546, %v5533, 0.0
      %5605 = vadd.xlane.f32.xlu0 %v5604
      %v5606 = vpop.xlane.xlu0 %5605
      %v5607 = vsel %vm5546, %v5534, 0.0
      %5608 = vadd.xlane.f32.xlu0 %v5607
      %v5609 = vpop.xlane.xlu0 %5608
      %v5610 = vsel %vm5546, %v5535, 0.0
      %5611 = vadd.xlane.f32.xlu0 %v5610
      %v5612 = vpop.xlane.xlu0 %5611
      %v5613 = vsel %vm5546, %v5536, 0.0
      %5614 = vadd.xlane.f32.xlu0 %v5613
      %v5615 = vpop.xlane.xlu0 %5614
      %v5616 = vsel %vm5546, %v5537, 0.0
      %5617 = vadd.xlane.f32.xlu0 %v5616
      %v5618 = vpop.xlane.xlu0 %5617
      %v5619 = vsel %vm5546, %v5538, 0.0
      %5620 = vadd.xlane.f32.xlu0 %v5619
      %v5621 = vpop.xlane.xlu0 %5620
      %v5622 = vsel %vm5546, %v5539, 0.0
      %5623 = vadd.xlane.f32.xlu0 %v5622
      %v5624 = vpop.xlane.xlu0 %5623
      %v5625 = vsel %vm5546, %v5540, 0.0
      %5626 = vadd.xlane.f32.xlu0 %v5625
      %v5627 = vpop.xlane.xlu0 %5626
      %v5628 = vsel %vm5546, %v5541, 0.0
      %5629 = vadd.xlane.f32.xlu0 %v5628
      %v5630 = vpop.xlane.xlu0 %5629
      %v5631 = vsel %vm5546, %v5542, 0.0
      %5632 = vadd.xlane.f32.xlu0 %v5631
      %v5633 = vpop.xlane.xlu0 %5632
      %v5634 = vsel %vm5546, %v5543, 0.0
      %5635 = vadd.xlane.f32.xlu0 %v5634
      %v5636 = vpop.xlane.xlu0 %5635
      %v5637 = vsel %vm5546, %v5544, 0.0
      %5638 = vadd.xlane.f32.xlu0 %v5637
      %v5639 = vpop.xlane.xlu0 %5638
      %v5640 = vsel %vm5546, %v5545, 0.0
      %5641 = vadd.xlane.f32.xlu0 %v5640
      %v5642 = vpop.xlane.xlu0 %5641
      %v5643 = vrcp.pop 32.0
      %v5644 = vmul.f32 32.0, %v5643
      %v5645 = vsub.f32 1.0, %v5644
      %v5646 = vmul.f32 %v5643, %v5645
      %v5647 = vadd.f32 %v5643, %v5646
      %vm5648 = vweird.f32 %v5643
      %v5649 = vsel %vm5648, %v5643, %v5647
      %v5650 = vmul.f32 %v5549, %v5649
      %v5651 = vmul.f32 %v5552, %v5649
      %v5652 = vmul.f32 %v5555, %v5649
      %v5653 = vmul.f32 %v5558, %v5649
      %v5654 = vmul.f32 %v5561, %v5649
      %v5655 = vmul.f32 %v5564, %v5649
      %v5656 = vmul.f32 %v5567, %v5649
      %v5657 = vmul.f32 %v5570, %v5649
      %v5658 = vmul.f32 %v5573, %v5649
      %v5659 = vmul.f32 %v5576, %v5649
      %v5660 = vmul.f32 %v5579, %v5649
      %v5661 = vmul.f32 %v5582, %v5649
      %v5662 = vmul.f32 %v5585, %v5649
      %v5663 = vmul.f32 %v5588, %v5649
      %v5664 = vmul.f32 %v5591, %v5649
      %v5665 = vmul.f32 %v5594, %v5649
      %v5666 = vmul.f32 %v5597, %v5649
      %v5667 = vmul.f32 %v5600, %v5649
      %v5668 = vmul.f32 %v5603, %v5649
      %v5669 = vmul.f32 %v5606, %v5649
      %v5670 = vmul.f32 %v5609, %v5649
      %v5671 = vmul.f32 %v5612, %v5649
      %v5672 = vmul.f32 %v5615, %v5649
      %v5673 = vmul.f32 %v5618, %v5649
      %v5674 = vmul.f32 %v5621, %v5649
      %v5675 = vmul.f32 %v5624, %v5649
      %v5676 = vmul.f32 %v5627, %v5649
      %v5677 = vmul.f32 %v5630, %v5649
      %v5678 = vmul.f32 %v5633, %v5649
      %v5679 = vmul.f32 %v5636, %v5649
      %v5680 = vmul.f32 %v5639, %v5649
      %v5681 = vmul.f32 %v5642, %v5649
      %v5682 = vsub.f32 %v5514, %v5650
      %v5683 = vsub.f32 %v5515, %v5651
      %v5684 = vsub.f32 %v5516, %v5652
      %v5685 = vsub.f32 %v5517, %v5653
      %v5686 = vsub.f32 %v5518, %v5654
      %v5687 = vsub.f32 %v5519, %v5655
      %v5688 = vsub.f32 %v5520, %v5656
      %v5689 = vsub.f32 %v5521, %v5657
      %v5690 = vsub.f32 %v5522, %v5658
      %v5691 = vsub.f32 %v5523, %v5659
      %v5692 = vsub.f32 %v5524, %v5660
      %v5693 = vsub.f32 %v5525, %v5661
      %v5694 = vsub.f32 %v5526, %v5662
      %v5695 = vsub.f32 %v5527, %v5663
      %v5696 = vsub.f32 %v5528, %v5664
      %v5697 = vsub.f32 %v5529, %v5665
      %v5698 = vsub.f32 %v5530, %v5666
      %v5699 = vsub.f32 %v5531, %v5667
      %v5700 = vsub.f32 %v5532, %v5668
      %v5701 = vsub.f32 %v5533, %v5669
      %v5702 = vsub.f32 %v5534, %v5670
      %v5703 = vsub.f32 %v5535, %v5671
      %v5704 = vsub.f32 %v5536, %v5672
      %v5705 = vsub.f32 %v5537, %v5673
      %v5706 = vsub.f32 %v5538, %v5674
      %v5707 = vsub.f32 %v5539, %v5675
      %v5708 = vsub.f32 %v5540, %v5676
      %v5709 = vsub.f32 %v5541, %v5677
      %v5710 = vsub.f32 %v5542, %v5678
      %v5711 = vsub.f32 %v5543, %v5679
      %v5712 = vsub.f32 %v5544, %v5680
      %v5713 = vsub.f32 %v5545, %v5681
      %v5714 = vmul.f32 %v5682, %v5682
      %v5715 = vmul.f32 %v5683, %v5683
      %v5716 = vmul.f32 %v5684, %v5684
      %v5717 = vmul.f32 %v5685, %v5685
      %v5718 = vmul.f32 %v5686, %v5686
      %v5719 = vmul.f32 %v5687, %v5687
      %v5720 = vmul.f32 %v5688, %v5688
      %v5721 = vmul.f32 %v5689, %v5689
      %v5722 = vmul.f32 %v5690, %v5690
      %v5723 = vmul.f32 %v5691, %v5691
      %v5724 = vmul.f32 %v5692, %v5692
      %v5725 = vmul.f32 %v5693, %v5693
      %v5726 = vmul.f32 %v5694, %v5694
      %v5727 = vmul.f32 %v5695, %v5695
      %v5728 = vmul.f32 %v5696, %v5696
      %v5729 = vmul.f32 %v5697, %v5697
      %v5730 = vmul.f32 %v5698, %v5698
      %v5731 = vmul.f32 %v5699, %v5699
      %v5732 = vmul.f32 %v5700, %v5700
      %v5733 = vmul.f32 %v5701, %v5701
      %v5734 = vmul.f32 %v5702, %v5702
      %v5735 = vmul.f32 %v5703, %v5703
      %v5736 = vmul.f32 %v5704, %v5704
      %v5737 = vmul.f32 %v5705, %v5705
      %v5738 = vmul.f32 %v5706, %v5706
      %v5739 = vmul.f32 %v5707, %v5707
      %v5740 = vmul.f32 %v5708, %v5708
      %v5741 = vmul.f32 %v5709, %v5709
      %v5742 = vmul.f32 %v5710, %v5710
      %v5743 = vmul.f32 %v5711, %v5711
      %v5744 = vmul.f32 %v5712, %v5712
      %v5745 = vmul.f32 %v5713, %v5713
      %v5746 = vsel %vm5546, %v5714, 0.0
      %5747 = vadd.xlane.f32.xlu0 %v5746
      %v5748 = vpop.xlane.xlu0 %5747
      %v5749 = vsel %vm5546, %v5715, 0.0
      %5750 = vadd.xlane.f32.xlu0 %v5749
      %v5751 = vpop.xlane.xlu0 %5750
      %v5752 = vsel %vm5546, %v5716, 0.0
      %5753 = vadd.xlane.f32.xlu0 %v5752
      %v5754 = vpop.xlane.xlu0 %5753
      %v5755 = vsel %vm5546, %v5717, 0.0
      %5756 = vadd.xlane.f32.xlu0 %v5755
      %v5757 = vpop.xlane.xlu0 %5756
      %v5758 = vsel %vm5546, %v5718, 0.0
      %5759 = vadd.xlane.f32.xlu0 %v5758
      %v5760 = vpop.xlane.xlu0 %5759
      %v5761 = vsel %vm5546, %v5719, 0.0
      %5762 = vadd.xlane.f32.xlu0 %v5761
      %v5763 = vpop.xlane.xlu0 %5762
      %v5764 = vsel %vm5546, %v5720, 0.0
      %5765 = vadd.xlane.f32.xlu0 %v5764
      %v5766 = vpop.xlane.xlu0 %5765
      %v5767 = vsel %vm5546, %v5721, 0.0
      %5768 = vadd.xlane.f32.xlu0 %v5767
      %v5769 = vpop.xlane.xlu0 %5768
      %v5770 = vsel %vm5546, %v5722, 0.0
      %5771 = vadd.xlane.f32.xlu0 %v5770
      %v5772 = vpop.xlane.xlu0 %5771
      %v5773 = vsel %vm5546, %v5723, 0.0
      %5774 = vadd.xlane.f32.xlu0 %v5773
      %v5775 = vpop.xlane.xlu0 %5774
      %v5776 = vsel %vm5546, %v5724, 0.0
      %5777 = vadd.xlane.f32.xlu0 %v5776
      %v5778 = vpop.xlane.xlu0 %5777
      %v5779 = vsel %vm5546, %v5725, 0.0
      %5780 = vadd.xlane.f32.xlu0 %v5779
      %v5781 = vpop.xlane.xlu0 %5780
      %v5782 = vsel %vm5546, %v5726, 0.0
      %5783 = vadd.xlane.f32.xlu0 %v5782
      %v5784 = vpop.xlane.xlu0 %5783
      %v5785 = vsel %vm5546, %v5727, 0.0
      %5786 = vadd.xlane.f32.xlu0 %v5785
      %v5787 = vpop.xlane.xlu0 %5786
      %v5788 = vsel %vm5546, %v5728, 0.0
      %5789 = vadd.xlane.f32.xlu0 %v5788
      %v5790 = vpop.xlane.xlu0 %5789
      %v5791 = vsel %vm5546, %v5729, 0.0
      %5792 = vadd.xlane.f32.xlu0 %v5791
      %v5793 = vpop.xlane.xlu0 %5792
      %v5794 = vsel %vm5546, %v5730, 0.0
      %5795 = vadd.xlane.f32.xlu0 %v5794
      %v5796 = vpop.xlane.xlu0 %5795
      %v5797 = vsel %vm5546, %v5731, 0.0
      %5798 = vadd.xlane.f32.xlu0 %v5797
      %v5799 = vpop.xlane.xlu0 %5798
      %v5800 = vsel %vm5546, %v5732, 0.0
      %5801 = vadd.xlane.f32.xlu0 %v5800
      %v5802 = vpop.xlane.xlu0 %5801
      %v5803 = vsel %vm5546, %v5733, 0.0
      %5804 = vadd.xlane.f32.xlu0 %v5803
      %v5805 = vpop.xlane.xlu0 %5804
      %v5806 = vsel %vm5546, %v5734, 0.0
      %5807 = vadd.xlane.f32.xlu0 %v5806
      %v5808 = vpop.xlane.xlu0 %5807
      %v5809 = vsel %vm5546, %v5735, 0.0
      %5810 = vadd.xlane.f32.xlu0 %v5809
      %v5811 = vpop.xlane.xlu0 %5810
      %v5812 = vsel %vm5546, %v5736, 0.0
      %5813 = vadd.xlane.f32.xlu0 %v5812
      %v5814 = vpop.xlane.xlu0 %5813
      %v5815 = vsel %vm5546, %v5737, 0.0
      %5816 = vadd.xlane.f32.xlu0 %v5815
      %v5817 = vpop.xlane.xlu0 %5816
      %v5818 = vsel %vm5546, %v5738, 0.0
      %5819 = vadd.xlane.f32.xlu0 %v5818
      %v5820 = vpop.xlane.xlu0 %5819
      %v5821 = vsel %vm5546, %v5739, 0.0
      %5822 = vadd.xlane.f32.xlu0 %v5821
      %v5823 = vpop.xlane.xlu0 %5822
      %v5824 = vsel %vm5546, %v5740, 0.0
      %5825 = vadd.xlane.f32.xlu0 %v5824
      %v5826 = vpop.xlane.xlu0 %5825
      %v5827 = vsel %vm5546, %v5741, 0.0
      %5828 = vadd.xlane.f32.xlu0 %v5827
      %v5829 = vpop.xlane.xlu0 %5828
      %v5830 = vsel %vm5546, %v5742, 0.0
      %5831 = vadd.xlane.f32.xlu0 %v5830
      %v5832 = vpop.xlane.xlu0 %5831
      %v5833 = vsel %vm5546, %v5743, 0.0
      %5834 = vadd.xlane.f32.xlu0 %v5833
      %v5835 = vpop.xlane.xlu0 %5834
      %v5836 = vsel %vm5546, %v5744, 0.0
      %5837 = vadd.xlane.f32.xlu0 %v5836
      %v5838 = vpop.xlane.xlu0 %5837
      %v5839 = vsel %vm5546, %v5745, 0.0
      %5840 = vadd.xlane.f32.xlu0 %v5839
      %v5841 = vpop.xlane.xlu0 %5840
      %v5842 = vmul.f32 %v5748, %v5649
      %v5843 = vmul.f32 %v5751, %v5649
      %v5844 = vmul.f32 %v5754, %v5649
      %v5845 = vmul.f32 %v5757, %v5649
      %v5846 = vmul.f32 %v5760, %v5649
      %v5847 = vmul.f32 %v5763, %v5649
      %v5848 = vmul.f32 %v5766, %v5649
      %v5849 = vmul.f32 %v5769, %v5649
      %v5850 = vmul.f32 %v5772, %v5649
      %v5851 = vmul.f32 %v5775, %v5649
      %v5852 = vmul.f32 %v5778, %v5649
      %v5853 = vmul.f32 %v5781, %v5649
      %v5854 = vmul.f32 %v5784, %v5649
      %v5855 = vmul.f32 %v5787, %v5649
      %v5856 = vmul.f32 %v5790, %v5649
      %v5857 = vmul.f32 %v5793, %v5649
      %v5858 = vmul.f32 %v5796, %v5649
      %v5859 = vmul.f32 %v5799, %v5649
      %v5860 = vmul.f32 %v5802, %v5649
      %v5861 = vmul.f32 %v5805, %v5649
      %v5862 = vmul.f32 %v5808, %v5649
      %v5863 = vmul.f32 %v5811, %v5649
      %v5864 = vmul.f32 %v5814, %v5649
      %v5865 = vmul.f32 %v5817, %v5649
      %v5866 = vmul.f32 %v5820, %v5649
      %v5867 = vmul.f32 %v5823, %v5649
      %v5868 = vmul.f32 %v5826, %v5649
      %v5869 = vmul.f32 %v5829, %v5649
      %v5870 = vmul.f32 %v5832, %v5649
      %v5871 = vmul.f32 %v5835, %v5649
      %v5872 = vmul.f32 %v5838, %v5649
      %v5873 = vmul.f32 %v5841, %v5649
      %v5874 = vadd.f32 %v5842, 1e-05
      %v5875 = vadd.f32 %v5843, 1e-05
      %v5876 = vadd.f32 %v5844, 1e-05
      %v5877 = vadd.f32 %v5845, 1e-05
      %v5878 = vadd.f32 %v5846, 1e-05
      %v5879 = vadd.f32 %v5847, 1e-05
      %v5880 = vadd.f32 %v5848, 1e-05
      %v5881 = vadd.f32 %v5849, 1e-05
      %v5882 = vadd.f32 %v5850, 1e-05
      %v5883 = vadd.f32 %v5851, 1e-05
      %v5884 = vadd.f32 %v5852, 1e-05
      %v5885 = vadd.f32 %v5853, 1e-05
      %v5886 = vadd.f32 %v5854, 1e-05
      %v5887 = vadd.f32 %v5855, 1e-05
      %v5888 = vadd.f32 %v5856, 1e-05
      %v5889 = vadd.f32 %v5857, 1e-05
      %v5890 = vadd.f32 %v5858, 1e-05
      %v5891 = vadd.f32 %v5859, 1e-05
      %v5892 = vadd.f32 %v5860, 1e-05
      %v5893 = vadd.f32 %v5861, 1e-05
      %v5894 = vadd.f32 %v5862, 1e-05
      %v5895 = vadd.f32 %v5863, 1e-05
      %v5896 = vadd.f32 %v5864, 1e-05
      %v5897 = vadd.f32 %v5865, 1e-05
      %v5898 = vadd.f32 %v5866, 1e-05
      %v5899 = vadd.f32 %v5867, 1e-05
      %v5900 = vadd.f32 %v5868, 1e-05
      %v5901 = vadd.f32 %v5869, 1e-05
      %v5902 = vadd.f32 %v5870, 1e-05
      %v5903 = vadd.f32 %v5871, 1e-05
      %v5904 = vadd.f32 %v5872, 1e-05
      %v5905 = vadd.f32 %v5873, 1e-05
      %v5906 = vrsqrt.pop %v5874
      %v5907 = vmul.f32 %v5906, %v5874
      %v5908 = vmul.f32 %v5907, %v5906
      %v5909 = vmul.f32 0.5, %v5908
      %v5910 = vsub.f32 1.5, %v5909
      %v5911 = vmul.f32 %v5906, %v5910
      %vm5912 = vweird.f32 %v5874
      %vm5913 = vweird.f32 %v5906
      %vm5914 = vmor %vm5912, %vm5913
      %v5915 = vsel %vm5914, %v5906, %v5911
      %v5916 = vrsqrt.pop %v5875
      %v5917 = vmul.f32 %v5916, %v5875
      %v5918 = vmul.f32 %v5917, %v5916
      %v5919 = vmul.f32 0.5, %v5918
      %v5920 = vsub.f32 1.5, %v5919
      %v5921 = vmul.f32 %v5916, %v5920
      %vm5922 = vweird.f32 %v5875
      %vm5923 = vweird.f32 %v5916
      %vm5924 = vmor %vm5922, %vm5923
      %v5925 = vsel %vm5924, %v5916, %v5921
      %v5926 = vrsqrt.pop %v5876
      %v5927 = vmul.f32 %v5926, %v5876
      %v5928 = vmul.f32 %v5927, %v5926
      %v5929 = vmul.f32 0.5, %v5928
      %v5930 = vsub.f32 1.5, %v5929
      %v5931 = vmul.f32 %v5926, %v5930
      %vm5932 = vweird.f32 %v5876
      %vm5933 = vweird.f32 %v5926
      %vm5934 = vmor %vm5932, %vm5933
      %v5935 = vsel %vm5934, %v5926, %v5931
      %v5936 = vrsqrt.pop %v5877
      %v5937 = vmul.f32 %v5936, %v5877
      %v5938 = vmul.f32 %v5937, %v5936
      %v5939 = vmul.f32 0.5, %v5938
      %v5940 = vsub.f32 1.5, %v5939
      %v5941 = vmul.f32 %v5936, %v5940
      %vm5942 = vweird.f32 %v5877
      %vm5943 = vweird.f32 %v5936
      %vm5944 = vmor %vm5942, %vm5943
      %v5945 = vsel %vm5944, %v5936, %v5941
      %v5946 = vrsqrt.pop %v5878
      %v5947 = vmul.f32 %v5946, %v5878
      %v5948 = vmul.f32 %v5947, %v5946
      %v5949 = vmul.f32 0.5, %v5948
      %v5950 = vsub.f32 1.5, %v5949
      %v5951 = vmul.f32 %v5946, %v5950
      %vm5952 = vweird.f32 %v5878
      %vm5953 = vweird.f32 %v5946
      %vm5954 = vmor %vm5952, %vm5953
      %v5955 = vsel %vm5954, %v5946, %v5951
      %v5956 = vrsqrt.pop %v5879
      %v5957 = vmul.f32 %v5956, %v5879
      %v5958 = vmul.f32 %v5957, %v5956
      %v5959 = vmul.f32 0.5, %v5958
      %v5960 = vsub.f32 1.5, %v5959
      %v5961 = vmul.f32 %v5956, %v5960
      %vm5962 = vweird.f32 %v5879
      %vm5963 = vweird.f32 %v5956
      %vm5964 = vmor %vm5962, %vm5963
      %v5965 = vsel %vm5964, %v5956, %v5961
      %v5966 = vrsqrt.pop %v5880
      %v5967 = vmul.f32 %v5966, %v5880
      %v5968 = vmul.f32 %v5967, %v5966
      %v5969 = vmul.f32 0.5, %v5968
      %v5970 = vsub.f32 1.5, %v5969
      %v5971 = vmul.f32 %v5966, %v5970
      %vm5972 = vweird.f32 %v5880
      %vm5973 = vweird.f32 %v5966
      %vm5974 = vmor %vm5972, %vm5973
      %v5975 = vsel %vm5974, %v5966, %v5971
      %v5976 = vrsqrt.pop %v5881
      %v5977 = vmul.f32 %v5976, %v5881
      %v5978 = vmul.f32 %v5977, %v5976
      %v5979 = vmul.f32 0.5, %v5978
      %v5980 = vsub.f32 1.5, %v5979
      %v5981 = vmul.f32 %v5976, %v5980
      %vm5982 = vweird.f32 %v5881
      %vm5983 = vweird.f32 %v5976
      %vm5984 = vmor %vm5982, %vm5983
      %v5985 = vsel %vm5984, %v5976, %v5981
      %v5986 = vrsqrt.pop %v5882
      %v5987 = vmul.f32 %v5986, %v5882
      %v5988 = vmul.f32 %v5987, %v5986
      %v5989 = vmul.f32 0.5, %v5988
      %v5990 = vsub.f32 1.5, %v5989
      %v5991 = vmul.f32 %v5986, %v5990
      %vm5992 = vweird.f32 %v5882
      %vm5993 = vweird.f32 %v5986
      %vm5994 = vmor %vm5992, %vm5993
      %v5995 = vsel %vm5994, %v5986, %v5991
      %v5996 = vrsqrt.pop %v5883
      %v5997 = vmul.f32 %v5996, %v5883
      %v5998 = vmul.f32 %v5997, %v5996
      %v5999 = vmul.f32 0.5, %v5998
      %v6000 = vsub.f32 1.5, %v5999
      %v6001 = vmul.f32 %v5996, %v6000
      %vm6002 = vweird.f32 %v5883
      %vm6003 = vweird.f32 %v5996
      %vm6004 = vmor %vm6002, %vm6003
      %v6005 = vsel %vm6004, %v5996, %v6001
      %v6006 = vrsqrt.pop %v5884
      %v6007 = vmul.f32 %v6006, %v5884
      %v6008 = vmul.f32 %v6007, %v6006
      %v6009 = vmul.f32 0.5, %v6008
      %v6010 = vsub.f32 1.5, %v6009
      %v6011 = vmul.f32 %v6006, %v6010
      %vm6012 = vweird.f32 %v5884
      %vm6013 = vweird.f32 %v6006
      %vm6014 = vmor %vm6012, %vm6013
      %v6015 = vsel %vm6014, %v6006, %v6011
      %v6016 = vrsqrt.pop %v5885
      %v6017 = vmul.f32 %v6016, %v5885
      %v6018 = vmul.f32 %v6017, %v6016
      %v6019 = vmul.f32 0.5, %v6018
      %v6020 = vsub.f32 1.5, %v6019
      %v6021 = vmul.f32 %v6016, %v6020
      %vm6022 = vweird.f32 %v5885
      %vm6023 = vweird.f32 %v6016
      %vm6024 = vmor %vm6022, %vm6023
      %v6025 = vsel %vm6024, %v6016, %v6021
      %v6026 = vrsqrt.pop %v5886
      %v6027 = vmul.f32 %v6026, %v5886
      %v6028 = vmul.f32 %v6027, %v6026
      %v6029 = vmul.f32 0.5, %v6028
      %v6030 = vsub.f32 1.5, %v6029
      %v6031 = vmul.f32 %v6026, %v6030
      %vm6032 = vweird.f32 %v5886
      %vm6033 = vweird.f32 %v6026
      %vm6034 = vmor %vm6032, %vm6033
      %v6035 = vsel %vm6034, %v6026, %v6031
      %v6036 = vrsqrt.pop %v5887
      %v6037 = vmul.f32 %v6036, %v5887
      %v6038 = vmul.f32 %v6037, %v6036
      %v6039 = vmul.f32 0.5, %v6038
      %v6040 = vsub.f32 1.5, %v6039
      %v6041 = vmul.f32 %v6036, %v6040
      %vm6042 = vweird.f32 %v5887
      %vm6043 = vweird.f32 %v6036
      %vm6044 = vmor %vm6042, %vm6043
      %v6045 = vsel %vm6044, %v6036, %v6041
      %v6046 = vrsqrt.pop %v5888
      %v6047 = vmul.f32 %v6046, %v5888
      %v6048 = vmul.f32 %v6047, %v6046
      %v6049 = vmul.f32 0.5, %v6048
      %v6050 = vsub.f32 1.5, %v6049
      %v6051 = vmul.f32 %v6046, %v6050
      %vm6052 = vweird.f32 %v5888
      %vm6053 = vweird.f32 %v6046
      %vm6054 = vmor %vm6052, %vm6053
      %v6055 = vsel %vm6054, %v6046, %v6051
      %v6056 = vrsqrt.pop %v5889
      %v6057 = vmul.f32 %v6056, %v5889
      %v6058 = vmul.f32 %v6057, %v6056
      %v6059 = vmul.f32 0.5, %v6058
      %v6060 = vsub.f32 1.5, %v6059
      %v6061 = vmul.f32 %v6056, %v6060
      %vm6062 = vweird.f32 %v5889
      %vm6063 = vweird.f32 %v6056
      %vm6064 = vmor %vm6062, %vm6063
      %v6065 = vsel %vm6064, %v6056, %v6061
      %v6066 = vrsqrt.pop %v5890
      %v6067 = vmul.f32 %v6066, %v5890
      %v6068 = vmul.f32 %v6067, %v6066
      %v6069 = vmul.f32 0.5, %v6068
      %v6070 = vsub.f32 1.5, %v6069
      %v6071 = vmul.f32 %v6066, %v6070
      %vm6072 = vweird.f32 %v5890
      %vm6073 = vweird.f32 %v6066
      %vm6074 = vmor %vm6072, %vm6073
      %v6075 = vsel %vm6074, %v6066, %v6071
      %v6076 = vrsqrt.pop %v5891
      %v6077 = vmul.f32 %v6076, %v5891
      %v6078 = vmul.f32 %v6077, %v6076
      %v6079 = vmul.f32 0.5, %v6078
      %v6080 = vsub.f32 1.5, %v6079
      %v6081 = vmul.f32 %v6076, %v6080
      %vm6082 = vweird.f32 %v5891
      %vm6083 = vweird.f32 %v6076
      %vm6084 = vmor %vm6082, %vm6083
      %v6085 = vsel %vm6084, %v6076, %v6081
      %v6086 = vrsqrt.pop %v5892
      %v6087 = vmul.f32 %v6086, %v5892
      %v6088 = vmul.f32 %v6087, %v6086
      %v6089 = vmul.f32 0.5, %v6088
      %v6090 = vsub.f32 1.5, %v6089
      %v6091 = vmul.f32 %v6086, %v6090
      %vm6092 = vweird.f32 %v5892
      %vm6093 = vweird.f32 %v6086
      %vm6094 = vmor %vm6092, %vm6093
      %v6095 = vsel %vm6094, %v6086, %v6091
      %v6096 = vrsqrt.pop %v5893
      %v6097 = vmul.f32 %v6096, %v5893
      %v6098 = vmul.f32 %v6097, %v6096
      %v6099 = vmul.f32 0.5, %v6098
      %v6100 = vsub.f32 1.5, %v6099
      %v6101 = vmul.f32 %v6096, %v6100
      %vm6102 = vweird.f32 %v5893
      %vm6103 = vweird.f32 %v6096
      %vm6104 = vmor %vm6102, %vm6103
      %v6105 = vsel %vm6104, %v6096, %v6101
      %v6106 = vrsqrt.pop %v5894
      %v6107 = vmul.f32 %v6106, %v5894
      %v6108 = vmul.f32 %v6107, %v6106
      %v6109 = vmul.f32 0.5, %v6108
      %v6110 = vsub.f32 1.5, %v6109
      %v6111 = vmul.f32 %v6106, %v6110
      %vm6112 = vweird.f32 %v5894
      %vm6113 = vweird.f32 %v6106
      %vm6114 = vmor %vm6112, %vm6113
      %v6115 = vsel %vm6114, %v6106, %v6111
      %v6116 = vrsqrt.pop %v5895
      %v6117 = vmul.f32 %v6116, %v5895
      %v6118 = vmul.f32 %v6117, %v6116
      %v6119 = vmul.f32 0.5, %v6118
      %v6120 = vsub.f32 1.5, %v6119
      %v6121 = vmul.f32 %v6116, %v6120
      %vm6122 = vweird.f32 %v5895
      %vm6123 = vweird.f32 %v6116
      %vm6124 = vmor %vm6122, %vm6123
      %v6125 = vsel %vm6124, %v6116, %v6121
      %v6126 = vrsqrt.pop %v5896
      %v6127 = vmul.f32 %v6126, %v5896
      %v6128 = vmul.f32 %v6127, %v6126
      %v6129 = vmul.f32 0.5, %v6128
      %v6130 = vsub.f32 1.5, %v6129
      %v6131 = vmul.f32 %v6126, %v6130
      %vm6132 = vweird.f32 %v5896
      %vm6133 = vweird.f32 %v6126
      %vm6134 = vmor %vm6132, %vm6133
      %v6135 = vsel %vm6134, %v6126, %v6131
      %v6136 = vrsqrt.pop %v5897
      %v6137 = vmul.f32 %v6136, %v5897
      %v6138 = vmul.f32 %v6137, %v6136
      %v6139 = vmul.f32 0.5, %v6138
      %v6140 = vsub.f32 1.5, %v6139
      %v6141 = vmul.f32 %v6136, %v6140
      %vm6142 = vweird.f32 %v5897
      %vm6143 = vweird.f32 %v6136
      %vm6144 = vmor %vm6142, %vm6143
      %v6145 = vsel %vm6144, %v6136, %v6141
      %v6146 = vrsqrt.pop %v5898
      %v6147 = vmul.f32 %v6146, %v5898
      %v6148 = vmul.f32 %v6147, %v6146
      %v6149 = vmul.f32 0.5, %v6148
      %v6150 = vsub.f32 1.5, %v6149
      %v6151 = vmul.f32 %v6146, %v6150
      %vm6152 = vweird.f32 %v5898
      %vm6153 = vweird.f32 %v6146
      %vm6154 = vmor %vm6152, %vm6153
      %v6155 = vsel %vm6154, %v6146, %v6151
      %v6156 = vrsqrt.pop %v5899
      %v6157 = vmul.f32 %v6156, %v5899
      %v6158 = vmul.f32 %v6157, %v6156
      %v6159 = vmul.f32 0.5, %v6158
      %v6160 = vsub.f32 1.5, %v6159
      %v6161 = vmul.f32 %v6156, %v6160
      %vm6162 = vweird.f32 %v5899
      %vm6163 = vweird.f32 %v6156
      %vm6164 = vmor %vm6162, %vm6163
      %v6165 = vsel %vm6164, %v6156, %v6161
      %v6166 = vrsqrt.pop %v5900
      %v6167 = vmul.f32 %v6166, %v5900
      %v6168 = vmul.f32 %v6167, %v6166
      %v6169 = vmul.f32 0.5, %v6168
      %v6170 = vsub.f32 1.5, %v6169
      %v6171 = vmul.f32 %v6166, %v6170
      %vm6172 = vweird.f32 %v5900
      %vm6173 = vweird.f32 %v6166
      %vm6174 = vmor %vm6172, %vm6173
      %v6175 = vsel %vm6174, %v6166, %v6171
      %v6176 = vrsqrt.pop %v5901
      %v6177 = vmul.f32 %v6176, %v5901
      %v6178 = vmul.f32 %v6177, %v6176
      %v6179 = vmul.f32 0.5, %v6178
      %v6180 = vsub.f32 1.5, %v6179
      %v6181 = vmul.f32 %v6176, %v6180
      %vm6182 = vweird.f32 %v5901
      %vm6183 = vweird.f32 %v6176
      %vm6184 = vmor %vm6182, %vm6183
      %v6185 = vsel %vm6184, %v6176, %v6181
      %v6186 = vrsqrt.pop %v5902
      %v6187 = vmul.f32 %v6186, %v5902
      %v6188 = vmul.f32 %v6187, %v6186
      %v6189 = vmul.f32 0.5, %v6188
      %v6190 = vsub.f32 1.5, %v6189
      %v6191 = vmul.f32 %v6186, %v6190
      %vm6192 = vweird.f32 %v5902
      %vm6193 = vweird.f32 %v6186
      %vm6194 = vmor %vm6192, %vm6193
      %v6195 = vsel %vm6194, %v6186, %v6191
      %v6196 = vrsqrt.pop %v5903
      %v6197 = vmul.f32 %v6196, %v5903
      %v6198 = vmul.f32 %v6197, %v6196
      %v6199 = vmul.f32 0.5, %v6198
      %v6200 = vsub.f32 1.5, %v6199
      %v6201 = vmul.f32 %v6196, %v6200
      %vm6202 = vweird.f32 %v5903
      %vm6203 = vweird.f32 %v6196
      %vm6204 = vmor %vm6202, %vm6203
      %v6205 = vsel %vm6204, %v6196, %v6201
      %v6206 = vrsqrt.pop %v5904
      %v6207 = vmul.f32 %v6206, %v5904
      %v6208 = vmul.f32 %v6207, %v6206
      %v6209 = vmul.f32 0.5, %v6208
      %v6210 = vsub.f32 1.5, %v6209
      %v6211 = vmul.f32 %v6206, %v6210
      %vm6212 = vweird.f32 %v5904
      %vm6213 = vweird.f32 %v6206
      %vm6214 = vmor %vm6212, %vm6213
      %v6215 = vsel %vm6214, %v6206, %v6211
      %v6216 = vrsqrt.pop %v5905
      %v6217 = vmul.f32 %v6216, %v5905
      %v6218 = vmul.f32 %v6217, %v6216
      %v6219 = vmul.f32 0.5, %v6218
      %v6220 = vsub.f32 1.5, %v6219
      %v6221 = vmul.f32 %v6216, %v6220
      %vm6222 = vweird.f32 %v5905
      %vm6223 = vweird.f32 %v6216
      %vm6224 = vmor %vm6222, %vm6223
      %v6225 = vsel %vm6224, %v6216, %v6221
      %v6226 = vmul.f32 %v5682, %v5915
      %v6227 = vmul.f32 %v5683, %v5925
      %v6228 = vmul.f32 %v5684, %v5935
      %v6229 = vmul.f32 %v5685, %v5945
      %v6230 = vmul.f32 %v5686, %v5955
      %v6231 = vmul.f32 %v5687, %v5965
      %v6232 = vmul.f32 %v5688, %v5975
      %v6233 = vmul.f32 %v5689, %v5985
      %v6234 = vmul.f32 %v5690, %v5995
      %v6235 = vmul.f32 %v5691, %v6005
      %v6236 = vmul.f32 %v5692, %v6015
      %v6237 = vmul.f32 %v5693, %v6025
      %v6238 = vmul.f32 %v5694, %v6035
      %v6239 = vmul.f32 %v5695, %v6045
      %v6240 = vmul.f32 %v5696, %v6055
      %v6241 = vmul.f32 %v5697, %v6065
      %v6242 = vmul.f32 %v5698, %v6075
      %v6243 = vmul.f32 %v5699, %v6085
      %v6244 = vmul.f32 %v5700, %v6095
      %v6245 = vmul.f32 %v5701, %v6105
      %v6246 = vmul.f32 %v5702, %v6115
      %v6247 = vmul.f32 %v5703, %v6125
      %v6248 = vmul.f32 %v5704, %v6135
      %v6249 = vmul.f32 %v5705, %v6145
      %v6250 = vmul.f32 %v5706, %v6155
      %v6251 = vmul.f32 %v5707, %v6165
      %v6252 = vmul.f32 %v5708, %v6175
      %v6253 = vmul.f32 %v5709, %v6185
      %v6254 = vmul.f32 %v5710, %v6195
      %v6255 = vmul.f32 %v5711, %v6205
      %v6256 = vmul.f32 %v5712, %v6215
      %v6257 = vmul.f32 %v5713, %v6225
      %v6258 = vperm.slane %v336, 0
      %v6259 = vmul.f32 %v6226, %v6258
      %v6260 = vmul.f32 %v6227, %v6258
      %v6261 = vmul.f32 %v6228, %v6258
      %v6262 = vmul.f32 %v6229, %v6258
      %v6263 = vmul.f32 %v6230, %v6258
      %v6264 = vmul.f32 %v6231, %v6258
      %v6265 = vmul.f32 %v6232, %v6258
      %v6266 = vmul.f32 %v6233, %v6258
      %v6267 = vmul.f32 %v6234, %v6258
      %v6268 = vmul.f32 %v6235, %v6258
      %v6269 = vmul.f32 %v6236, %v6258
      %v6270 = vmul.f32 %v6237, %v6258
      %v6271 = vmul.f32 %v6238, %v6258
      %v6272 = vmul.f32 %v6239, %v6258
      %v6273 = vmul.f32 %v6240, %v6258
      %v6274 = vmul.f32 %v6241, %v6258
      %v6275 = vmul.f32 %v6242, %v6258
      %v6276 = vmul.f32 %v6243, %v6258
      %v6277 = vmul.f32 %v6244, %v6258
      %v6278 = vmul.f32 %v6245, %v6258
      %v6279 = vmul.f32 %v6246, %v6258
      %v6280 = vmul.f32 %v6247, %v6258
      %v6281 = vmul.f32 %v6248, %v6258
      %v6282 = vmul.f32 %v6249, %v6258
      %v6283 = vmul.f32 %v6250, %v6258
      %v6284 = vmul.f32 %v6251, %v6258
      %v6285 = vmul.f32 %v6252, %v6258
      %v6286 = vmul.f32 %v6253, %v6258
      %v6287 = vmul.f32 %v6254, %v6258
      %v6288 = vmul.f32 %v6255, %v6258
      %v6289 = vmul.f32 %v6256, %v6258
      %v6290 = vmul.f32 %v6257, %v6258
      %v6291 = vperm.slane %v337, 0
      %v6292 = vadd.f32 %v6259, %v6291
      %v6293 = vadd.f32 %v6260, %v6291
      %v6294 = vadd.f32 %v6261, %v6291
      %v6295 = vadd.f32 %v6262, %v6291
      %v6296 = vadd.f32 %v6263, %v6291
      %v6297 = vadd.f32 %v6264, %v6291
      %v6298 = vadd.f32 %v6265, %v6291
      %v6299 = vadd.f32 %v6266, %v6291
      %v6300 = vadd.f32 %v6267, %v6291
      %v6301 = vadd.f32 %v6268, %v6291
      %v6302 = vadd.f32 %v6269, %v6291
      %v6303 = vadd.f32 %v6270, %v6291
      %v6304 = vadd.f32 %v6271, %v6291
      %v6305 = vadd.f32 %v6272, %v6291
      %v6306 = vadd.f32 %v6273, %v6291
      %v6307 = vadd.f32 %v6274, %v6291
      %v6308 = vadd.f32 %v6275, %v6291
      %v6309 = vadd.f32 %v6276, %v6291
      %v6310 = vadd.f32 %v6277, %v6291
      %v6311 = vadd.f32 %v6278, %v6291
      %v6312 = vadd.f32 %v6279, %v6291
      %v6313 = vadd.f32 %v6280, %v6291
      %v6314 = vadd.f32 %v6281, %v6291
      %v6315 = vadd.f32 %v6282, %v6291
      %v6316 = vadd.f32 %v6283, %v6291
      %v6317 = vadd.f32 %v6284, %v6291
      %v6318 = vadd.f32 %v6285, %v6291
      %v6319 = vadd.f32 %v6286, %v6291
      %v6320 = vadd.f32 %v6287, %v6291
      %v6321 = vadd.f32 %v6288, %v6291
      %v6322 = vadd.f32 %v6289, %v6291
      %v6323 = vadd.f32 %v6290, %v6291
      %6324 = vst.msk [vmem:[%s256] sm:$0xff] %vm5546, %v6292
      %6325 = vst.msk [vmem:[%s256 + $0x8] sm:$0xff] %vm5546, %v6293
      %6326 = vst.msk [vmem:[%s256 + $0x10] sm:$0xff] %vm5546, %v6294
      %6327 = vst.msk [vmem:[%s256 + $0x18] sm:$0xff] %vm5546, %v6295
      %6328 = vst.msk [vmem:[%s256 + $0x20] sm:$0xff] %vm5546, %v6296
      %6329 = vst.msk [vmem:[%s256 + $0x28] sm:$0xff] %vm5546, %v6297
      %6330 = vst.msk [vmem:[%s256 + $0x30] sm:$0xff] %vm5546, %v6298
      %6331 = vst.msk [vmem:[%s256 + $0x38] sm:$0xff] %vm5546, %v6299
      %6332 = vst.msk [vmem:[%s256 + $0x40] sm:$0xff] %vm5546, %v6300
      %6333 = vst.msk [vmem:[%s256 + $0x48] sm:$0xff] %vm5546, %v6301
      %6334 = vst.msk [vmem:[%s256 + $0x50] sm:$0xff] %vm5546, %v6302
      %6335 = vst.msk [vmem:[%s256 + $0x58] sm:$0xff] %vm5546, %v6303
      %6336 = vst.msk [vmem:[%s256 + $0x60] sm:$0xff] %vm5546, %v6304
      %6337 = vst.msk [vmem:[%s256 + $0x68] sm:$0xff] %vm5546, %v6305
      %6338 = vst.msk [vmem:[%s256 + $0x70] sm:$0xff] %vm5546, %v6306
      %6339 = vst.msk [vmem:[%s256 + $0x78] sm:$0xff] %vm5546, %v6307
      %6340 = vst.msk [vmem:[%s256 + $0x80] sm:$0xff] %vm5546, %v6308
      %6341 = vst.msk [vmem:[%s256 + $0x88] sm:$0xff] %vm5546, %v6309
      %6342 = vst.msk [vmem:[%s256 + $0x90] sm:$0xff] %vm5546, %v6310
      %6343 = vst.msk [vmem:[%s256 + $0x98] sm:$0xff] %vm5546, %v6311
      %6344 = vst.msk [vmem:[%s256 + $0xa0] sm:$0xff] %vm5546, %v6312
      %6345 = vst.msk [vmem:[%s256 + $0xa8] sm:$0xff] %vm5546, %v6313
      %6346 = vst.msk [vmem:[%s256 + $0xb0] sm:$0xff] %vm5546, %v6314
      %6347 = vst.msk [vmem:[%s256 + $0xb8] sm:$0xff] %vm5546, %v6315
      %6348 = vst.msk [vmem:[%s256 + $0xc0] sm:$0xff] %vm5546, %v6316
      %6349 = vst.msk [vmem:[%s256 + $0xc8] sm:$0xff] %vm5546, %v6317
      %6350 = vst.msk [vmem:[%s256 + $0xd0] sm:$0xff] %vm5546, %v6318
      %6351 = vst.msk [vmem:[%s256 + $0xd8] sm:$0xff] %vm5546, %v6319
      %6352 = vst.msk [vmem:[%s256 + $0xe0] sm:$0xff] %vm5546, %v6320
      %6353 = vst.msk [vmem:[%s256 + $0xe8] sm:$0xff] %vm5546, %v6321
      %6354 = vst.msk [vmem:[%s256 + $0xf0] sm:$0xff] %vm5546, %v6322
      %6355 = vst.msk [vmem:[%s256 + $0xf8] sm:$0xff] %vm5546, %v6323
      %s6356 = smul.u32 16, %s16
      %p6357 = scmp.lt.s32.totalorder %s6356, 63
      %s6358 = scalar_select %p6357, %s6356, 63
      %s6359 = smul.addr %s6358, 2
      %s6360 = smul.addr %s6359, 8
      %s6361 = scalar_lea.vmem %s5, %s6360
      // Predicated region
      $region41: #{multihop_resgat_forward.1} parent=39 // pred_check
        %p6362 = pneg %p149
      $region42: #{multihop_resgat_forward.1} parent=39 // pred_check_branch
        %6364 = sbr.rel (%p6362) target = $region44
      $region43: #{multihop_resgat_forward.1} parent=39 // pred_region
        %s6365 = smul.u32 16, %s16
      $region44: #{multihop_resgat_forward.1} parent=39 // pred_fallthru
        _
    $region40: #{multihop_resgat_forward.1} parent=5 // pred_fallthru
      _
    %p6366 = scmp.le.s32.totalorder 2, %s11
    // Predicated region
    $region45: #{multihop_resgat_forward.1} parent=5 // pred_check
      %p6367 = pneg %p6366
    $region46: #{multihop_resgat_forward.1} parent=5 // pred_check_branch
      %6369 = sbr.rel (%p6367) target = $region48
    $region47: #{multihop_resgat_forward.1} parent=5 // pred_region
      %s6370 = ssub.s32 %s11, 2
      // Predicated region
      $region49: #{multihop_resgat_forward.1} parent=47 // pred_check
        %p6371 = pneg %p155
      $region50: #{multihop_resgat_forward.1} parent=47 // pred_check_branch
        %6373 = sbr.rel (%p6371) target = $region52
      $region51: #{multihop_resgat_forward.1} parent=47 // pred_region
        %s6374 = smul.u32 16, %s17
        %p6375 = scmp.lt.s32.totalorder %s6374, 63
        %s6376 = scalar_select %p6375, %s6374, 63
        %s6377 = smul.addr %s6376, 2
        %s6378 = smul.addr %s6377, 8
        %s6379 = scalar_lea.vmem %s5, %s6378
      $region52: #{multihop_resgat_forward.1} parent=47 // pred_fallthru
        _
    $region48: #{multihop_resgat_forward.1} parent=5 // pred_fallthru
      _
  $region6: #{multihop_resgat_forward.1} parent=0 // loop_footer
    %s15 = sadd.s32 1, %s11
  $region7: #{multihop_resgat_forward.1} parent=0 // loop_footer_branch
    %10 = sbr.rel target = $region3
  $region8: #{multihop_resgat_forward.1} parent=0 // loop_exit
    _

</llo_original>
